<compile_context>
chip_gen: v7x
topology: tpu7x:2x2x1
jax: 0.10.0
libtpu: 0.0.40
codegen_flags: <defaults>
</compile_context>

<pallas_src>
import functools
from math import sqrt

import jax
import jax.numpy as jnp
from jax.experimental import pallas as pl
from jax.experimental.pallas import tpu as pltpu


def _attn_kernel(q_ref, k_ref, v_ref,
                 wq_ref, bq_ref, wk_ref, bk_ref, wv_ref, bv_ref,
                 wo_ref, bo_ref,
                 out_ref, attn_ref, *, n_queries, n_keys):
    """One grid step = (BT block i, head h).

    q_ref : (BT_BLK*N, d_model)      k_ref/v_ref : (BT_BLK*S, d_model)
    wq_ref: (1, d_model, dk)         bq_ref      : (1, 1, dk)        (per head)
    wo_ref: (1, dv, d_model)         bo_ref      : (1, d_model)
    out_ref : (BT_BLK*N, d_model)    accumulated across the head axis
    attn_ref: (BT_BLK, 1, N, S)      written once per step (head h slot)
    """
    h = pl.program_id(1)

    q = q_ref[...]                       # (BT_BLK*N, d_model)
    k = k_ref[...]                       # (BT_BLK*S, d_model)
    v = v_ref[...]                       # (BT_BLK*S, d_model)

    wq = wq_ref[0]                       # (d_model, dk)
    wk = wk_ref[0]
    wv = wv_ref[0]
    wo = wo_ref[0]                       # (dv, d_model)

    dk = wq.shape[-1]
    dv = wv.shape[-1]
    bt_blk = q.shape[0] // n_queries
    scale = 1.0 / sqrt(dk)

    # Per-head projections: full-row-block GEMMs on the MXU.  The softmax
    # scale is folded into Q here (cheaper than scaling the NxS score matrix).
    Qh = (jnp.dot(q, wq, preferred_element_type=jnp.float32) + bq_ref[0]) * scale
    Kh = jnp.dot(k, wk, preferred_element_type=jnp.float32) + bk_ref[0]   # (BT_BLK*S, dk)
    Vh = jnp.dot(v, wv, preferred_element_type=jnp.float32) + bv_ref[0]   # (BT_BLK*S, dv)

    # Regroup rows per (b, t) slice — leading-dim split only, no lane movement.
    Qb = Qh.reshape(bt_blk, n_queries, dk)
    Kb = Kh.reshape(bt_blk, n_keys, dk)
    Vb = Vh.reshape(bt_blk, n_keys, dv)

    # Scores + softmax, batched over all (b, t) slices of the block.
    s = jnp.einsum('bne,bse->bns', Qb, Kb,
                   preferred_element_type=jnp.float32)                    # (BT_BLK, N, S)
    s = s - jnp.max(s, axis=-1, keepdims=True)
    p = jnp.exp(s)
    a = p * pl.reciprocal(jnp.sum(p, axis=-1, keepdims=True), approx=False)

    # Single attention-weights store per grid step, directly in the final
    # (bt, H, N, S) layout so the wrapper needs no post-kernel transpose.
    attn_ref[...] = a.reshape(bt_blk, 1, n_queries, n_keys).astype(attn_ref.dtype)

    # A @ V, then fold the head-concat into an accumulation over heads:
    # out += (a_h @ v_h) @ wo[h]   (out block resident in VMEM across h).
    o = jnp.einsum('bns,bsd->bnd', a, Vb,
                   preferred_element_type=jnp.float32)                    # (BT_BLK, N, dv)
    contrib = jnp.dot(o.reshape(bt_blk * n_queries, dv), wo,
                      preferred_element_type=jnp.float32)                 # (BT_BLK*N, d_model)

    @pl.when(h == 0)
    def _():
        out_ref[...] = contrib + bo_ref[...]

    @pl.when(h != 0)
    def _():
        out_ref[...] = out_ref[...] + contrib


def attention_layer_forward(queries, keys, values, params, n_heads, bt_blk=None):
    """queries: (B, T, N, d_model); keys/values: (B, T, S, d_model)."""
    B, T, N, d_model = queries.shape
    S = keys.shape[2]
    H = n_heads
    BT = B * T

    wq, bq, wk, bk, wv, bv, wo, bo = params
    dk = wq.shape[1] // H
    dv = wv.shape[1] // H

    # Pick a BT block so the projection GEMMs have >= 128 rows, and the row
    # blocks satisfy the sublane (8) divisibility constraint.
    if bt_blk is None:
        bt_blk = max(1, -(-128 // max(N, 1)))
    while (bt_blk * N) % 8 != 0 or (bt_blk * S) % 8 != 0:
        bt_blk += 1
    n_blocks = -(-BT // bt_blk)
    bt_pad = n_blocks * bt_blk

    def flatten_pad(x, L):
        x = x.reshape(BT, L, d_model)
        if bt_pad != BT:
            pad = jnp.zeros((bt_pad - BT, L, d_model), x.dtype)
            x = jnp.concatenate([x, pad], axis=0)
        return x.reshape(bt_pad * L, d_model)

    q2 = flatten_pad(queries, N)          # (bt_pad*N, d_model)
    k2 = flatten_pad(keys, S)             # (bt_pad*S, d_model)
    v2 = flatten_pad(values, S)

    # Per-head weight / bias slices, prepared wrapper-side (tiny XLA reshapes).
    wq3 = wq.reshape(d_model, H, dk).transpose(1, 0, 2)   # (H, d_model, dk)
    wk3 = wk.reshape(d_model, H, dk).transpose(1, 0, 2)
    wv3 = wv.reshape(d_model, H, dv).transpose(1, 0, 2)
    wo3 = wo.reshape(H, dv, d_model)                      # (H, dv, d_model)
    bq3 = bq.reshape(H, 1, dk)
    bk3 = bk.reshape(H, 1, dk)
    bv3 = bv.reshape(H, 1, dv)

    out2, attn4 = pl.pallas_call(
        functools.partial(_attn_kernel, n_queries=N, n_keys=S),
        out_shape=(
            jax.ShapeDtypeStruct((bt_pad * N, d_model), jnp.float32),
            jax.ShapeDtypeStruct((bt_pad, H, N, S), jnp.float32),
        ),
        grid_spec=pltpu.PrefetchScalarGridSpec(
            num_scalar_prefetch=0,
            grid=(n_blocks, H),
            in_specs=[
                pl.BlockSpec((bt_blk * N, d_model), lambda i, h: (i, 0)),
                pl.BlockSpec((bt_blk * S, d_model), lambda i, h: (i, 0)),
                pl.BlockSpec((bt_blk * S, d_model), lambda i, h: (i, 0)),
                pl.BlockSpec((1, d_model, dk), lambda i, h: (h, 0, 0)),
                pl.BlockSpec((1, 1, dk), lambda i, h: (h, 0, 0)),
                pl.BlockSpec((1, d_model, dk), lambda i, h: (h, 0, 0)),
                pl.BlockSpec((1, 1, dk), lambda i, h: (h, 0, 0)),
                pl.BlockSpec((1, d_model, dv), lambda i, h: (h, 0, 0)),
                pl.BlockSpec((1, 1, dv), lambda i, h: (h, 0, 0)),
                pl.BlockSpec((1, dv, d_model), lambda i, h: (h, 0, 0)),
                pl.BlockSpec((1, d_model), lambda i, h: (0, 0)),
            ],
            out_specs=[
                pl.BlockSpec((bt_blk * N, d_model), lambda i, h: (i, 0)),
                pl.BlockSpec((bt_blk, 1, N, S), lambda i, h: (i, h, 0, 0)),
            ],
        ),
        compiler_params=pltpu.CompilerParams(
            dimension_semantics=("parallel", "arbitrary")),
    )(q2, k2, v2, wq3, bq3, wk3, bk3, wv3, bv3, wo3, bo)

    out = out2.reshape(bt_pad, N, d_model)[:BT].reshape(B, T, N, d_model)
    attn = attn4[:BT].reshape(B, T, H, N, S)          # pure reshape, no transpose
    return out, attn


def _reference(queries, keys, values, params, n_heads):
    """Pure-JAX reference matching the PyTorch forward (mix=False, mask=None)."""
    wq, bq, wk, bk, wv, bv, wo, bo = params
    B, T, N, d_model = queries.shape
    S = keys.shape[2]
    H = n_heads
    Q = (queries @ wq + bq).reshape(B, T, N, H, -1)
    K = (keys @ wk + bk).reshape(B, T, S, H, -1)
    V = (values @ wv + bv).reshape(B, T, S, H, -1)
    E = Q.shape[-1]
    scores = jnp.einsum('btnhe,btshe->bthns', Q, K) / sqrt(E)
    A = jax.nn.softmax(scores, axis=-1)                        # (B,T,H,N,S)
    O = jnp.einsum('bthns,btshd->btnhd', A, V).reshape(B, T, N, -1)
    return O @ wo + bo, A


if __name__ == "__main__":
    # Small deterministic config consistent with the module's forward.
    B, T, N, S, d_model, H = 2, 3, 8, 8, 32, 4
    d_k = d_model // H
    d_v = d_model // H

    key = jax.random.PRNGKey(0)
    ks = jax.random.split(key, 12)

    queries = jax.random.normal(ks[0], (B, T, N, d_model), jnp.float32)
    keys_in = jax.random.normal(ks[1], (B, T, S, d_model), jnp.float32)
    values = jax.random.normal(ks[2], (B, T, S, d_model), jnp.float32)

    def lin(kw, kb, fan_in, fan_out):
        # deterministic synthetic Linear params (stored as x @ W + b layout)
        w = jax.random.normal(kw, (fan_in, fan_out), jnp.float32) * 0.1
        b = jax.random.normal(kb, (1, fan_out), jnp.float32) * 0.1
        return w, b

    wq, bq = lin(ks[3], ks[4], d_model, d_k * H)
    wk, bk = lin(ks[5], ks[6], d_model, d_k * H)
    wv, bv = lin(ks[7], ks[8], d_model, d_v * H)
    wo, bo = lin(ks[9], ks[10], d_v * H, d_model)
    params = (wq, bq, wk, bk, wv, bv, wo, bo)

    # TODO(synk): mix=True head/seq transpose path and attn_mask path not wired
    # (module defaults: mix=False, attn_mask=None).
    out, attn = attention_layer_forward(queries, keys_in, values, params, H)
    out = jax.block_until_ready(out)
    attn = jax.block_until_ready(attn)

    out_ref, attn_ref = _reference(queries, keys_in, values, params, H)
    assert out.shape == (B, T, N, d_model) and attn.shape == (B, T, H, N, S)
    assert jnp.allclose(out, out_ref, atol=1e-4, rtol=1e-4)
    assert jnp.allclose(attn, attn_ref, atol=1e-4, rtol=1e-4)

    print("KERNEL_OK")
</pallas_src>

<mosaic_0001>
module attributes {stable_mosaic.version = 11 : i64} {
  func.func @_attn_kernel(%arg0: i32, %arg1: i32, %arg2: memref<128x32xf32, #tpu.memory_space<vmem>>, %arg3: memref<128x32xf32, #tpu.memory_space<vmem>>, %arg4: memref<128x32xf32, #tpu.memory_space<vmem>>, %arg5: memref<1x32x8xf32, #tpu.memory_space<vmem>>, %arg6: memref<1x1x8xf32, #tpu.memory_space<vmem>>, %arg7: memref<1x32x8xf32, #tpu.memory_space<vmem>>, %arg8: memref<1x1x8xf32, #tpu.memory_space<vmem>>, %arg9: memref<1x32x8xf32, #tpu.memory_space<vmem>>, %arg10: memref<1x1x8xf32, #tpu.memory_space<vmem>>, %arg11: memref<1x8x32xf32, #tpu.memory_space<vmem>>, %arg12: memref<1x32xf32, #tpu.memory_space<vmem>>, %arg13: memref<128x32xf32, #tpu.memory_space<vmem>>, %arg14: memref<16x1x8x8xf32, #tpu.memory_space<vmem>>) attributes {dimension_semantics = [#tpu.dimension_semantics<parallel>, #tpu.dimension_semantics<arbitrary>], iteration_bounds = array<i64: 1, 4>, scalar_prefetch = 0 : i64, scratch_operands = 0 : i64, tpu.core_type = #tpu.core_type<tc>, window_params = [{transform_indices = @transform_0, window_bounds = array<i64: 128, 32>}, {transform_indices = @transform_1, window_bounds = array<i64: 128, 32>}, {transform_indices = @transform_2, window_bounds = array<i64: 128, 32>}, {transform_indices = @transform_3, window_bounds = array<i64: 1, 32, 8>}, {transform_indices = @transform_4, window_bounds = array<i64: 1, 1, 8>}, {transform_indices = @transform_5, window_bounds = array<i64: 1, 32, 8>}, {transform_indices = @transform_6, window_bounds = array<i64: 1, 1, 8>}, {transform_indices = @transform_7, window_bounds = array<i64: 1, 32, 8>}, {transform_indices = @transform_8, window_bounds = array<i64: 1, 1, 8>}, {transform_indices = @transform_9, window_bounds = array<i64: 1, 8, 32>}, {pipeline_mode = #tpu.pipeline_mode<synchronous>, transform_indices = @transform_10, window_bounds = array<i64: 1, 32>}, {transform_indices = @transform_11, window_bounds = array<i64: 128, 32>}, {transform_indices = @transform_12, window_bounds = array<i64: 16, 1, 8, 8>}]} {
    %c0 = arith.constant 0 : index
    %c0_0 = arith.constant 0 : index
    %0 = vector.load %arg2[%c0, %c0_0] : memref<128x32xf32, #tpu.memory_space<vmem>>, vector<128x32xf32>
    %c0_1 = arith.constant 0 : index
    %c0_2 = arith.constant 0 : index
    %1 = vector.load %arg3[%c0_1, %c0_2] : memref<128x32xf32, #tpu.memory_space<vmem>>, vector<128x32xf32>
    %c0_3 = arith.constant 0 : index
    %c0_4 = arith.constant 0 : index
    %2 = vector.load %arg4[%c0_3, %c0_4] : memref<128x32xf32, #tpu.memory_space<vmem>>, vector<128x32xf32>
    %c0_5 = arith.constant 0 : index
    %c0_6 = arith.constant 0 : index
    %c0_7 = arith.constant 0 : index
    %3 = vector.load %arg5[%c0_5, %c0_6, %c0_7] : memref<1x32x8xf32, #tpu.memory_space<vmem>>, vector<1x32x8xf32>
    %4 = vector.shape_cast %3 : vector<1x32x8xf32> to vector<32x8xf32>
    %c0_8 = arith.constant 0 : index
    %c0_9 = arith.constant 0 : index
    %c0_10 = arith.constant 0 : index
    %5 = vector.load %arg7[%c0_8, %c0_9, %c0_10] : memref<1x32x8xf32, #tpu.memory_space<vmem>>, vector<1x32x8xf32>
    %6 = vector.shape_cast %5 : vector<1x32x8xf32> to vector<32x8xf32>
    %c0_11 = arith.constant 0 : index
    %c0_12 = arith.constant 0 : index
    %c0_13 = arith.constant 0 : index
    %7 = vector.load %arg9[%c0_11, %c0_12, %c0_13] : memref<1x32x8xf32, #tpu.memory_space<vmem>>, vector<1x32x8xf32>
    %8 = vector.shape_cast %7 : vector<1x32x8xf32> to vector<32x8xf32>
    %c0_14 = arith.constant 0 : index
    %c0_15 = arith.constant 0 : index
    %c0_16 = arith.constant 0 : index
    %9 = vector.load %arg11[%c0_14, %c0_15, %c0_16] : memref<1x8x32xf32, #tpu.memory_space<vmem>>, vector<1x8x32xf32>
    %10 = vector.shape_cast %9 : vector<1x8x32xf32> to vector<8x32xf32>
    %cst = arith.constant dense<0.000000e+00> : vector<128x8xf32>
    %11 = tpu.matmul %0, %4, %cst {dimension_numbers = #tpu.dot_dimension_numbers<[1], [0], [0], [1], [0, 0, 1, 1], [], []>} : vector<128x32xf32>, vector<32x8xf32>, vector<128x8xf32> -> vector<128x8xf32>
    %c0_17 = arith.constant 0 : index
    %c0_18 = arith.constant 0 : index
    %c0_19 = arith.constant 0 : index
    %12 = vector.load %arg6[%c0_17, %c0_18, %c0_19] : memref<1x1x8xf32, #tpu.memory_space<vmem>>, vector<1x1x8xf32>
    %13 = vector.shape_cast %12 : vector<1x1x8xf32> to vector<1x8xf32>
    %14 = vector.broadcast %13 : vector<1x8xf32> to vector<128x8xf32>
    %15 = arith.addf %11, %14 : vector<128x8xf32>
    %cst_20 = arith.constant 0.353553385 : f32
    %16 = vector.broadcast %cst_20 : f32 to vector<128x8xf32>
    %17 = arith.mulf %15, %16 : vector<128x8xf32>
    %cst_21 = arith.constant dense<0.000000e+00> : vector<128x8xf32>
    %18 = tpu.matmul %1, %6, %cst_21 {dimension_numbers = #tpu.dot_dimension_numbers<[1], [0], [0], [1], [0, 0, 1, 1], [], []>} : vector<128x32xf32>, vector<32x8xf32>, vector<128x8xf32> -> vector<128x8xf32>
    %c0_22 = arith.constant 0 : index
    %c0_23 = arith.constant 0 : index
    %c0_24 = arith.constant 0 : index
    %19 = vector.load %arg8[%c0_22, %c0_23, %c0_24] : memref<1x1x8xf32, #tpu.memory_space<vmem>>, vector<1x1x8xf32>
    %20 = vector.shape_cast %19 : vector<1x1x8xf32> to vector<1x8xf32>
    %21 = vector.broadcast %20 : vector<1x8xf32> to vector<128x8xf32>
    %22 = arith.addf %18, %21 : vector<128x8xf32>
    %cst_25 = arith.constant dense<0.000000e+00> : vector<128x8xf32>
    %23 = tpu.matmul %2, %8, %cst_25 {dimension_numbers = #tpu.dot_dimension_numbers<[1], [0], [0], [1], [0, 0, 1, 1], [], []>} : vector<128x32xf32>, vector<32x8xf32>, vector<128x8xf32> -> vector<128x8xf32>
    %c0_26 = arith.constant 0 : index
    %c0_27 = arith.constant 0 : index
    %c0_28 = arith.constant 0 : index
    %24 = vector.load %arg10[%c0_26, %c0_27, %c0_28] : memref<1x1x8xf32, #tpu.memory_space<vmem>>, vector<1x1x8xf32>
    %25 = vector.shape_cast %24 : vector<1x1x8xf32> to vector<1x8xf32>
    %26 = vector.broadcast %25 : vector<1x8xf32> to vector<128x8xf32>
    %27 = arith.addf %23, %26 : vector<128x8xf32>
    %28 = vector.shape_cast %17 : vector<128x8xf32> to vector<16x8x8xf32>
    %29 = vector.shape_cast %22 : vector<128x8xf32> to vector<16x8x8xf32>
    %30 = vector.shape_cast %27 : vector<128x8xf32> to vector<16x8x8xf32>
    "tpu.trace_start"() <{level = 10 : i32, message = "bne,bse->bns"}> : () -> ()
    %cst_29 = arith.constant dense<0.000000e+00> : vector<16x8x8xf32>
    %31 = tpu.matmul %28, %29, %cst_29 {dimension_numbers = #tpu.dot_dimension_numbers<[2], [2], [1], [1], [0, 0, 0, 1, 1, 1], [0], [0]>} : vector<16x8x8xf32>, vector<16x8x8xf32>, vector<16x8x8xf32> -> vector<16x8x8xf32>
    "tpu.trace_stop"() : () -> ()
    %cst_30 = arith.constant dense<0xFF800000> : vector<16x8xf32>
    %32 = vector.multi_reduction <maximumf>, %31, %cst_30 [2] : vector<16x8x8xf32> to vector<16x8xf32>
    %33 = vector.shape_cast %32 : vector<16x8xf32> to vector<16x8x1xf32>
    %34 = vector.broadcast %33 : vector<16x8x1xf32> to vector<16x8x8xf32>
    %35 = arith.subf %31, %34 : vector<16x8x8xf32>
    %36 = math.exp %35 : vector<16x8x8xf32>
    %cst_31 = arith.constant dense<0.000000e+00> : vector<16x8xf32>
    %37 = vector.multi_reduction <add>, %36, %cst_31 [2] : vector<16x8x8xf32> to vector<16x8xf32>
    %38 = vector.shape_cast %37 : vector<16x8xf32> to vector<16x8x1xf32>
    %39 = tpu.reciprocal %38 : vector<16x8x1xf32> -> vector<16x8x1xf32>
    %40 = vector.broadcast %39 : vector<16x8x1xf32> to vector<16x8x8xf32>
    %41 = arith.mulf %36, %40 : vector<16x8x8xf32>
    %42 = vector.shape_cast %41 : vector<16x8x8xf32> to vector<16x1x8x8xf32>
    %c0_32 = arith.constant 0 : index
    %c0_33 = arith.constant 0 : index
    %c0_34 = arith.constant 0 : index
    %c0_35 = arith.constant 0 : index
    %43 = vector.load %arg14[%c0_32, %c0_33, %c0_34, %c0_35] : memref<16x1x8x8xf32, #tpu.memory_space<vmem>>, vector<16x1x8x8xf32>
    tpu.vector_store %arg14[%c0_32, %c0_33, %c0_34, %c0_35], %42 {strides = array<i32>} : memref<16x1x8x8xf32, #tpu.memory_space<vmem>>, vector<16x1x8x8xf32>,
    "tpu.trace_start"() <{level = 10 : i32, message = "bns,bsd->bnd"}> : () -> ()
    %cst_36 = arith.constant dense<0.000000e+00> : vector<16x8x8xf32>
    %44 = tpu.matmul %41, %30, %cst_36 {dimension_numbers = #tpu.dot_dimension_numbers<[2], [1], [1], [2], [0, 0, 0, 1, 1, 2], [0], [0]>} : vector<16x8x8xf32>, vector<16x8x8xf32>, vector<16x8x8xf32> -> vector<16x8x8xf32>
    "tpu.trace_stop"() : () -> ()
    %45 = vector.shape_cast %44 : vector<16x8x8xf32> to vector<128x8xf32>
    %cst_37 = arith.constant dense<0.000000e+00> : vector<128x32xf32>
    %46 = tpu.matmul %45, %10, %cst_37 {dimension_numbers = #tpu.dot_dimension_numbers<[1], [0], [0], [1], [0, 0, 1, 1], [], []>} : vector<128x8xf32>, vector<8x32xf32>, vector<128x32xf32> -> vector<128x32xf32>
    %c0_i32 = arith.constant 0 : i32
    %47 = arith.cmpi eq, %arg1, %c0_i32 : i32
    %48 = arith.extui %47 : i1 to i32
    %c0_i32_38 = arith.constant 0 : i32
    %49 = arith.cmpi ne, %48, %c0_i32_38 : i32
    scf.if %49 {
      %c0_41 = arith.constant 0 : index
      %c0_42 = arith.constant 0 : index
      %53 = vector.load %arg12[%c0_41, %c0_42] : memref<1x32xf32, #tpu.memory_space<vmem>>, vector<1x32xf32>
      %54 = vector.broadcast %53 : vector<1x32xf32> to vector<128x32xf32>
      %55 = arith.addf %46, %54 : vector<128x32xf32>
      %c0_43 = arith.constant 0 : index
      %c0_44 = arith.constant 0 : index
      %56 = vector.load %arg13[%c0_43, %c0_44] : memref<128x32xf32, #tpu.memory_space<vmem>>, vector<128x32xf32>
      tpu.vector_store %arg13[%c0_43, %c0_44], %55 {strides = array<i32>} : memref<128x32xf32, #tpu.memory_space<vmem>>, vector<128x32xf32>,
    } else {
    }
    %c0_i32_39 = arith.constant 0 : i32
    %50 = arith.cmpi ne, %arg1, %c0_i32_39 : i32
    %51 = arith.extui %50 : i1 to i32
    %c0_i32_40 = arith.constant 0 : i32
    %52 = arith.cmpi ne, %51, %c0_i32_40 : i32
    scf.if %52 {
      %c0_41 = arith.constant 0 : index
      %c0_42 = arith.constant 0 : index
      %53 = vector.load %arg13[%c0_41, %c0_42] : memref<128x32xf32, #tpu.memory_space<vmem>>, vector<128x32xf32>
      %54 = arith.addf %53, %46 : vector<128x32xf32>
      %c0_43 = arith.constant 0 : index
      %c0_44 = arith.constant 0 : index
      %55 = vector.load %arg13[%c0_43, %c0_44] : memref<128x32xf32, #tpu.memory_space<vmem>>, vector<128x32xf32>
      tpu.vector_store %arg13[%c0_43, %c0_44], %54 {strides = array<i32>} : memref<128x32xf32, #tpu.memory_space<vmem>>, vector<128x32xf32>,
    } else {
    }
    return
  }
  func.func @transform_0(%arg0: i32, %arg1: i32) -> (i32, i32) {
    %c0_i32 = arith.constant 0 : i32
    %c0_i32_0 = arith.constant 0 : i32
    return %arg0, %c0_i32 : i32, i32
  }
  func.func @transform_1(%arg0: i32, %arg1: i32) -> (i32, i32) {
    %c0_i32 = arith.constant 0 : i32
    %c0_i32_0 = arith.constant 0 : i32
    return %arg0, %c0_i32 : i32, i32
  }
  func.func @transform_2(%arg0: i32, %arg1: i32) -> (i32, i32) {
    %c0_i32 = arith.constant 0 : i32
    %c0_i32_0 = arith.constant 0 : i32
    return %arg0, %c0_i32 : i32, i32
  }
  func.func @transform_3(%arg0: i32, %arg1: i32) -> (i32, i32, i32) {
    %c0_i32 = arith.constant 0 : i32
    %c0_i32_0 = arith.constant 0 : i32
    %c0_i32_1 = arith.constant 0 : i32
    return %arg1, %c0_i32, %c0_i32_0 : i32, i32, i32
  }
  func.func @transform_4(%arg0: i32, %arg1: i32) -> (i32, i32, i32) {
    %c0_i32 = arith.constant 0 : i32
    %c0_i32_0 = arith.constant 0 : i32
    %c0_i32_1 = arith.constant 0 : i32
    return %arg1, %c0_i32, %c0_i32_0 : i32, i32, i32
  }
  func.func @transform_5(%arg0: i32, %arg1: i32) -> (i32, i32, i32) {
    %c0_i32 = arith.constant 0 : i32
    %c0_i32_0 = arith.constant 0 : i32
    %c0_i32_1 = arith.constant 0 : i32
    return %arg1, %c0_i32, %c0_i32_0 : i32, i32, i32
  }
  func.func @transform_6(%arg0: i32, %arg1: i32) -> (i32, i32, i32) {
    %c0_i32 = arith.constant 0 : i32
    %c0_i32_0 = arith.constant 0 : i32
    %c0_i32_1 = arith.constant 0 : i32
    return %arg1, %c0_i32, %c0_i32_0 : i32, i32, i32
  }
  func.func @transform_7(%arg0: i32, %arg1: i32) -> (i32, i32, i32) {
    %c0_i32 = arith.constant 0 : i32
    %c0_i32_0 = arith.constant 0 : i32
    %c0_i32_1 = arith.constant 0 : i32
    return %arg1, %c0_i32, %c0_i32_0 : i32, i32, i32
  }
  func.func @transform_8(%arg0: i32, %arg1: i32) -> (i32, i32, i32) {
    %c0_i32 = arith.constant 0 : i32
    %c0_i32_0 = arith.constant 0 : i32
    %c0_i32_1 = arith.constant 0 : i32
    return %arg1, %c0_i32, %c0_i32_0 : i32, i32, i32
  }
  func.func @transform_9(%arg0: i32, %arg1: i32) -> (i32, i32, i32) {
    %c0_i32 = arith.constant 0 : i32
    %c0_i32_0 = arith.constant 0 : i32
    %c0_i32_1 = arith.constant 0 : i32
    return %arg1, %c0_i32, %c0_i32_0 : i32, i32, i32
  }
  func.func @transform_10(%arg0: i32, %arg1: i32) -> (i32, i32) {
    %c0_i32 = arith.constant 0 : i32
    %c0_i32_0 = arith.constant 0 : i32
    %c0_i32_1 = arith.constant 0 : i32
    return %c0_i32, %c0_i32_0 : i32, i32
  }
  func.func @transform_11(%arg0: i32, %arg1: i32) -> (i32, i32) {
    %c0_i32 = arith.constant 0 : i32
    %c0_i32_0 = arith.constant 0 : i32
    return %arg0, %c0_i32 : i32, i32
  }
  func.func @transform_12(%arg0: i32, %arg1: i32) -> (i32, i32, i32, i32) {
    %c0_i32 = arith.constant 0 : i32
    %c0_i32_0 = arith.constant 0 : i32
    %c0_i32_1 = arith.constant 0 : i32
    return %arg0, %arg1, %c0_i32, %c0_i32_0 : i32, i32, i32, i32
  }
}

</mosaic_0001>

<llo_original>
// kernel: tpu_custom_call.1
$region0: #{tpu_custom_call.1}
  #allocation0 [shape = 'u32[]', space=smem, size = 0x4, offset = 0x4, fixed_abs, tag = 'smem constant byte address 0x4 - core index']
  #allocation1 [shape = 'u32[144,128]{1,0:T(1,128)}', space=vmem, size = 0x12000, scoped, tag = 'internal scratch']
  %s0 = inlined_call_operand.vmem [shape: f32[128,32], index: 0, kind: input, shape index: {}]
  %s1 = inlined_call_operand.vmem [shape: f32[128,32], index: 1, kind: input, shape index: {}]
  %s2 = inlined_call_operand.vmem [shape: f32[128,32], index: 2, kind: input, shape index: {}]
  %s3 = inlined_call_operand.vmem [shape: f32[4,32,8], index: 3, kind: input, shape index: {}]
  %s4 = inlined_call_operand.vmem [shape: f32[4,1,8], index: 4, kind: input, shape index: {}]
  %s5 = inlined_call_operand.vmem [shape: f32[4,32,8], index: 5, kind: input, shape index: {}]
  %s6 = inlined_call_operand.vmem [shape: f32[4,1,8], index: 6, kind: input, shape index: {}]
  %s7 = inlined_call_operand.vmem [shape: f32[4,32,8], index: 7, kind: input, shape index: {}]
  %s8 = inlined_call_operand.vmem [shape: f32[4,1,8], index: 8, kind: input, shape index: {}]
  %s9 = inlined_call_operand.vmem [shape: f32[4,8,32], index: 9, kind: input, shape index: {}]
  %s10 = inlined_call_operand.vmem [shape: f32[1,32], index: 10, kind: input, shape index: {}]
  %s11 = inlined_call_operand.vmem [shape: f32[128,32], index: 11, kind: output, shape index: {0}]
  %s12 = inlined_call_operand.vmem [shape: f32[16,4,8,8], index: 12, kind: output, shape index: {1}]
  %13 = xla_tuple %s11, %s12
  %s14 = sld [smem:[#allocation0]]
  $region127: #{tpu_custom_call.1} parent=0
    _
  %s16 = ssub.s32 1, %s14
  %s17 = scalar_select 0, %s16, %s14
  $region1: #{tpu_custom_call.1} parent=0
    #allocation2 [shape = 'u8[131072]{0}', space=vmem, size = 0x20000, scoped, tag = 'output window, operand 1']
    loop: start=0, step=1, limit=6
    $region2: #{tpu_custom_call.1} parent=1 // loop_pre_header
      _
    $region3: #{tpu_custom_call.1} parent=1 // loop_header
      %s19 = sphi 0, %s23
      %p20 = scmp.ge.s32.totalorder %s19, 6
      %s26 = sphi 0, %s38
      %s27 = sphi 0, %s34
      %s28 = sphi 0, %s26
      %s29 = sphi 0, %s27
      %s30 = sphi 0, %s28
      %s31 = sphi 0, %s29
      %s41 = sphi 0, %s43
      %s44 = sphi 0, %s41
      %s45 = sphi 0, %s44
      %s61 = sphi 0, %s45
      %s67 = sphi 0, %s69
      %s70 = sphi 0, %s67
      %s71 = sphi 0, %s70
      %s87 = sphi 0, %s71
      %s93 = sphi 0, %s95
      %s96 = sphi 0, %s93
      %s97 = sphi 0, %s96
      %s113 = sphi 0, %s97
      %s119 = sphi 0, %s121
      %s122 = sphi 0, %s119
      %s123 = sphi 0, %s122
      %s139 = sphi 0, %s123
      %s145 = sphi 0, %s147
      %s148 = sphi 0, %s145
      %s149 = sphi 0, %s148
      %s165 = sphi 0, %s149
      %s171 = sphi 0, %s173
      %s174 = sphi 0, %s171
      %s175 = sphi 0, %s174
      %s191 = sphi 0, %s175
      %s197 = sphi 0, %s199
      %s200 = sphi 0, %s197
      %s201 = sphi 0, %s200
      %s217 = sphi 0, %s201
      %s223 = sphi 0, %s225
      %s226 = sphi 0, %s223
      %s227 = sphi 0, %s226
      %s243 = sphi 0, %s227
      %s249 = sphi 0, %s251
      %s252 = sphi 0, %s249
      %s253 = sphi 0, %s252
      %s269 = sphi 0, %s253
      %s275 = sphi 0, %s277
      %s278 = sphi 0, %s275
      %s279 = sphi 0, %s278
      %s295 = sphi 0, %s279
      %s299 = sphi 0, %s299
      %s301 = sphi 0, %s299
      %s302 = sphi 0, %s301
      %s316 = sphi 0, %s302
      %s322 = sphi 0, %s324
      %s325 = sphi 0, %s322
      %s326 = sphi 0, %s325
      %s342 = sphi 0, %s326
      %s350 = sphi 0, %s352
      %s353 = sphi 0, %s350
      %s354 = sphi 0, %s353
      %s370 = sphi 0, %s354
    $region4: #{tpu_custom_call.1} parent=1 // loop_header_branch
      %22 = sbr.rel (%p20) target = $region8
    $region5: #{tpu_custom_call.1} parent=1 // loop_body
      %s24 = ssub.s32 %s19, 1
      %s25 = ssub.s32 %s19, 2
      %s32 = sadd.s32 1, %s27
      %p33 = scmp.ge.s32.totalorder %s32, 4
      %s34 = scalar_select %p33, 0, %s32
      %s35 = sadd.s32 1, %s26
      %s36 = scalar_select %p33, %s35, %s26
      %p37 = scmp.ge.s32.totalorder %s36, 1
      %s38 = scalar_select %p37, 0, %s36
      %s39 = ssub.s32 %s26, %s38
      %p40 = scmp.eq.s32.totalorder %s39, 0
      %s42 = sadd.s32 %s41, 1
      %s43 = scalar_select %p40, %s41, %s42
      %p46 = pneg %p40
      %p47 = scmp.eq.s32.totalorder %s19, 3
      %p48 = por %p46, %p47
      %p49 = scmp.ne.s32.totalorder %s41, %s44
      %p50 = scmp.eq.s32.totalorder %s19, 0
      %p51 = por %p49, %p50
      %p52 = scmp.ne.s32.totalorder %s41, %s44
      %p53 = scmp.eq.s32.totalorder %s24, 3
      %p54 = por %p52, %p53
      %p55 = scmp.ne.s32.totalorder %s44, %s45
      %p56 = scmp.eq.s32.totalorder %s24, 0
      %p57 = por %p55, %p56
      %p58 = scmp.ne.s32.totalorder %s44, %s45
      %p59 = scmp.eq.s32.totalorder %s25, 3
      %p60 = por %p58, %p59
      %p62 = scmp.ne.s32.totalorder %s45, %s61
      %p63 = scmp.eq.s32.totalorder %s25, 0
      %p64 = por %p62, %p63
      %s65 = ssub.s32 %s26, %s38
      %p66 = scmp.eq.s32.totalorder %s65, 0
      %s68 = sadd.s32 %s67, 1
      %s69 = scalar_select %p66, %s67, %s68
      %p72 = pneg %p66
      %p73 = scmp.eq.s32.totalorder %s19, 3
      %p74 = por %p72, %p73
      %p75 = scmp.ne.s32.totalorder %s67, %s70
      %p76 = scmp.eq.s32.totalorder %s19, 0
      %p77 = por %p75, %p76
      %p78 = scmp.ne.s32.totalorder %s67, %s70
      %p79 = scmp.eq.s32.totalorder %s24, 3
      %p80 = por %p78, %p79
      %p81 = scmp.ne.s32.totalorder %s70, %s71
      %p82 = scmp.eq.s32.totalorder %s24, 0
      %p83 = por %p81, %p82
      %p84 = scmp.ne.s32.totalorder %s70, %s71
      %p85 = scmp.eq.s32.totalorder %s25, 3
      %p86 = por %p84, %p85
      %p88 = scmp.ne.s32.totalorder %s71, %s87
      %p89 = scmp.eq.s32.totalorder %s25, 0
      %p90 = por %p88, %p89
      %s91 = ssub.s32 %s26, %s38
      %p92 = scmp.eq.s32.totalorder %s91, 0
      %s94 = sadd.s32 %s93, 1
      %s95 = scalar_select %p92, %s93, %s94
      %p98 = pneg %p92
      %p99 = scmp.eq.s32.totalorder %s19, 3
      %p100 = por %p98, %p99
      %p101 = scmp.ne.s32.totalorder %s93, %s96
      %p102 = scmp.eq.s32.totalorder %s19, 0
      %p103 = por %p101, %p102
      %p104 = scmp.ne.s32.totalorder %s93, %s96
      %p105 = scmp.eq.s32.totalorder %s24, 3
      %p106 = por %p104, %p105
      %p107 = scmp.ne.s32.totalorder %s96, %s97
      %p108 = scmp.eq.s32.totalorder %s24, 0
      %p109 = por %p107, %p108
      %p110 = scmp.ne.s32.totalorder %s96, %s97
      %p111 = scmp.eq.s32.totalorder %s25, 3
      %p112 = por %p110, %p111
      %p114 = scmp.ne.s32.totalorder %s97, %s113
      %p115 = scmp.eq.s32.totalorder %s25, 0
      %p116 = por %p114, %p115
      %s117 = ssub.s32 %s27, %s34
      %p118 = scmp.eq.s32.totalorder %s117, 0
      %s120 = sadd.s32 %s119, 1
      %s121 = scalar_select %p118, %s119, %s120
      %p124 = pneg %p118
      %p125 = scmp.eq.s32.totalorder %s19, 3
      %p126 = por %p124, %p125
      %p127 = scmp.ne.s32.totalorder %s119, %s122
      %p128 = scmp.eq.s32.totalorder %s19, 0
      %p129 = por %p127, %p128
      %p130 = scmp.ne.s32.totalorder %s119, %s122
      %p131 = scmp.eq.s32.totalorder %s24, 3
      %p132 = por %p130, %p131
      %p133 = scmp.ne.s32.totalorder %s122, %s123
      %p134 = scmp.eq.s32.totalorder %s24, 0
      %p135 = por %p133, %p134
      %p136 = scmp.ne.s32.totalorder %s122, %s123
      %p137 = scmp.eq.s32.totalorder %s25, 3
      %p138 = por %p136, %p137
      %p140 = scmp.ne.s32.totalorder %s123, %s139
      %p141 = scmp.eq.s32.totalorder %s25, 0
      %p142 = por %p140, %p141
      %s143 = ssub.s32 %s27, %s34
      %p144 = scmp.eq.s32.totalorder %s143, 0
      %s146 = sadd.s32 %s145, 1
      %s147 = scalar_select %p144, %s145, %s146
      %p150 = pneg %p144
      %p151 = scmp.eq.s32.totalorder %s19, 3
      %p152 = por %p150, %p151
      %p153 = scmp.ne.s32.totalorder %s145, %s148
      %p154 = scmp.eq.s32.totalorder %s19, 0
      %p155 = por %p153, %p154
      %p156 = scmp.ne.s32.totalorder %s145, %s148
      %p157 = scmp.eq.s32.totalorder %s24, 3
      %p158 = por %p156, %p157
      %p159 = scmp.ne.s32.totalorder %s148, %s149
      %p160 = scmp.eq.s32.totalorder %s24, 0
      %p161 = por %p159, %p160
      %p162 = scmp.ne.s32.totalorder %s148, %s149
      %p163 = scmp.eq.s32.totalorder %s25, 3
      %p164 = por %p162, %p163
      %p166 = scmp.ne.s32.totalorder %s149, %s165
      %p167 = scmp.eq.s32.totalorder %s25, 0
      %p168 = por %p166, %p167
      %s169 = ssub.s32 %s27, %s34
      %p170 = scmp.eq.s32.totalorder %s169, 0
      %s172 = sadd.s32 %s171, 1
      %s173 = scalar_select %p170, %s171, %s172
      %p176 = pneg %p170
      %p177 = scmp.eq.s32.totalorder %s19, 3
      %p178 = por %p176, %p177
      %p179 = scmp.ne.s32.totalorder %s171, %s174
      %p180 = scmp.eq.s32.totalorder %s19, 0
      %p181 = por %p179, %p180
      %p182 = scmp.ne.s32.totalorder %s171, %s174
      %p183 = scmp.eq.s32.totalorder %s24, 3
      %p184 = por %p182, %p183
      %p185 = scmp.ne.s32.totalorder %s174, %s175
      %p186 = scmp.eq.s32.totalorder %s24, 0
      %p187 = por %p185, %p186
      %p188 = scmp.ne.s32.totalorder %s174, %s175
      %p189 = scmp.eq.s32.totalorder %s25, 3
      %p190 = por %p188, %p189
      %p192 = scmp.ne.s32.totalorder %s175, %s191
      %p193 = scmp.eq.s32.totalorder %s25, 0
      %p194 = por %p192, %p193
      %s195 = ssub.s32 %s27, %s34
      %p196 = scmp.eq.s32.totalorder %s195, 0
      %s198 = sadd.s32 %s197, 1
      %s199 = scalar_select %p196, %s197, %s198
      %p202 = pneg %p196
      %p203 = scmp.eq.s32.totalorder %s19, 3
      %p204 = por %p202, %p203
      %p205 = scmp.ne.s32.totalorder %s197, %s200
      %p206 = scmp.eq.s32.totalorder %s19, 0
      %p207 = por %p205, %p206
      %p208 = scmp.ne.s32.totalorder %s197, %s200
      %p209 = scmp.eq.s32.totalorder %s24, 3
      %p210 = por %p208, %p209
      %p211 = scmp.ne.s32.totalorder %s200, %s201
      %p212 = scmp.eq.s32.totalorder %s24, 0
      %p213 = por %p211, %p212
      %p214 = scmp.ne.s32.totalorder %s200, %s201
      %p215 = scmp.eq.s32.totalorder %s25, 3
      %p216 = por %p214, %p215
      %p218 = scmp.ne.s32.totalorder %s201, %s217
      %p219 = scmp.eq.s32.totalorder %s25, 0
      %p220 = por %p218, %p219
      %s221 = ssub.s32 %s27, %s34
      %p222 = scmp.eq.s32.totalorder %s221, 0
      %s224 = sadd.s32 %s223, 1
      %s225 = scalar_select %p222, %s223, %s224
      %p228 = pneg %p222
      %p229 = scmp.eq.s32.totalorder %s19, 3
      %p230 = por %p228, %p229
      %p231 = scmp.ne.s32.totalorder %s223, %s226
      %p232 = scmp.eq.s32.totalorder %s19, 0
      %p233 = por %p231, %p232
      %p234 = scmp.ne.s32.totalorder %s223, %s226
      %p235 = scmp.eq.s32.totalorder %s24, 3
      %p236 = por %p234, %p235
      %p237 = scmp.ne.s32.totalorder %s226, %s227
      %p238 = scmp.eq.s32.totalorder %s24, 0
      %p239 = por %p237, %p238
      %p240 = scmp.ne.s32.totalorder %s226, %s227
      %p241 = scmp.eq.s32.totalorder %s25, 3
      %p242 = por %p240, %p241
      %p244 = scmp.ne.s32.totalorder %s227, %s243
      %p245 = scmp.eq.s32.totalorder %s25, 0
      %p246 = por %p244, %p245
      %s247 = ssub.s32 %s27, %s34
      %p248 = scmp.eq.s32.totalorder %s247, 0
      %s250 = sadd.s32 %s249, 1
      %s251 = scalar_select %p248, %s249, %s250
      %p254 = pneg %p248
      %p255 = scmp.eq.s32.totalorder %s19, 3
      %p256 = por %p254, %p255
      %p257 = scmp.ne.s32.totalorder %s249, %s252
      %p258 = scmp.eq.s32.totalorder %s19, 0
      %p259 = por %p257, %p258
      %p260 = scmp.ne.s32.totalorder %s249, %s252
      %p261 = scmp.eq.s32.totalorder %s24, 3
      %p262 = por %p260, %p261
      %p263 = scmp.ne.s32.totalorder %s252, %s253
      %p264 = scmp.eq.s32.totalorder %s24, 0
      %p265 = por %p263, %p264
      %p266 = scmp.ne.s32.totalorder %s252, %s253
      %p267 = scmp.eq.s32.totalorder %s25, 3
      %p268 = por %p266, %p267
      %p270 = scmp.ne.s32.totalorder %s253, %s269
      %p271 = scmp.eq.s32.totalorder %s25, 0
      %p272 = por %p270, %p271
      %s273 = ssub.s32 %s27, %s34
      %p274 = scmp.eq.s32.totalorder %s273, 0
      %s276 = sadd.s32 %s275, 1
      %s277 = scalar_select %p274, %s275, %s276
      %p280 = pneg %p274
      %p281 = scmp.eq.s32.totalorder %s19, 3
      %p282 = por %p280, %p281
      %p283 = scmp.ne.s32.totalorder %s275, %s278
      %p284 = scmp.eq.s32.totalorder %s19, 0
      %p285 = por %p283, %p284
      %p286 = scmp.ne.s32.totalorder %s275, %s278
      %p287 = scmp.eq.s32.totalorder %s24, 3
      %p288 = por %p286, %p287
      %p289 = scmp.ne.s32.totalorder %s278, %s279
      %p290 = scmp.eq.s32.totalorder %s24, 0
      %p291 = por %p289, %p290
      %p292 = scmp.ne.s32.totalorder %s278, %s279
      %p293 = scmp.eq.s32.totalorder %s25, 3
      %p294 = por %p292, %p293
      %p296 = scmp.ne.s32.totalorder %s279, %s295
      %p297 = scmp.eq.s32.totalorder %s25, 0
      %p298 = por %p296, %p297
      %s300 = sadd.s32 %s299, 1
      %p303 = scmp.eq.s32.totalorder %s19, 3
      %p304 = scmp.ne.s32.totalorder %s299, %s301
      %p305 = scmp.eq.s32.totalorder %s19, 0
      %p306 = por %p304, %p305
      %p307 = scmp.ne.s32.totalorder %s299, %s301
      %p308 = scmp.eq.s32.totalorder %s24, 3
      %p309 = por %p307, %p308
      %p310 = scmp.ne.s32.totalorder %s301, %s302
      %p311 = scmp.eq.s32.totalorder %s24, 0
      %p312 = por %p310, %p311
      %p313 = scmp.ne.s32.totalorder %s301, %s302
      %p314 = scmp.eq.s32.totalorder %s25, 3
      %p315 = por %p313, %p314
      %p317 = scmp.ne.s32.totalorder %s302, %s316
      %p318 = scmp.eq.s32.totalorder %s25, 0
      %p319 = por %p317, %p318
      %s320 = ssub.s32 %s26, %s38
      %p321 = scmp.eq.s32.totalorder %s320, 0
      %s323 = sadd.s32 %s322, 1
      %s324 = scalar_select %p321, %s322, %s323
      %p327 = pneg %p321
      %p328 = scmp.eq.s32.totalorder %s19, 3
      %p329 = por %p327, %p328
      %p330 = scmp.ne.s32.totalorder %s322, %s325
      %p331 = scmp.eq.s32.totalorder %s19, 0
      %p332 = por %p330, %p331
      %p333 = scmp.ne.s32.totalorder %s322, %s325
      %p334 = scmp.eq.s32.totalorder %s24, 3
      %p335 = por %p333, %p334
      %p336 = scmp.ne.s32.totalorder %s325, %s326
      %p337 = scmp.eq.s32.totalorder %s24, 0
      %p338 = por %p336, %p337
      %p339 = scmp.ne.s32.totalorder %s325, %s326
      %p340 = scmp.eq.s32.totalorder %s25, 3
      %p341 = por %p339, %p340
      %p343 = scmp.ne.s32.totalorder %s326, %s342
      %p344 = scmp.eq.s32.totalorder %s25, 0
      %p345 = por %p343, %p344
      %s346 = ssub.s32 %s26, %s38
      %s347 = ssub.s32 %s27, %s34
      %s348 = sor.u32 %s346, %s347
      %p349 = scmp.eq.s32.totalorder %s348, 0
      %s351 = sadd.s32 %s350, 1
      %s352 = scalar_select %p349, %s350, %s351
      %p355 = pneg %p349
      %p356 = scmp.eq.s32.totalorder %s19, 3
      %p357 = por %p355, %p356
      %p358 = scmp.ne.s32.totalorder %s350, %s353
      %p359 = scmp.eq.s32.totalorder %s19, 0
      %p360 = por %p358, %p359
      %p361 = scmp.ne.s32.totalorder %s350, %s353
      %p362 = scmp.eq.s32.totalorder %s24, 3
      %p363 = por %p361, %p362
      %p364 = scmp.ne.s32.totalorder %s353, %s354
      %p365 = scmp.eq.s32.totalorder %s24, 0
      %p366 = por %p364, %p365
      %p367 = scmp.ne.s32.totalorder %s353, %s354
      %p368 = scmp.eq.s32.totalorder %s25, 3
      %p369 = por %p367, %p368
      %p371 = scmp.ne.s32.totalorder %s354, %s370
      %p372 = scmp.eq.s32.totalorder %s25, 0
      %p373 = por %p371, %p372
      %p374 = scmp.le.s32.totalorder 1, %s19
      %p375 = scmp.lt.s32.totalorder %s19, 5
      %p376 = pnand %p374, %p375
      %p377 = pneg %p376
      // Predicated region
      $region9: #{tpu_custom_call.1} parent=5 // pred_check
        _
      $region10: #{tpu_custom_call.1} parent=5 // pred_check_branch
        %379 = sbr.rel (%p376) target = $region12
      $region11: #{tpu_custom_call.1} parent=5 // pred_region
        %s380 = ssub.s32 %s19, 1
        // Predicated region
        $region13: #{tpu_custom_call.1} parent=11 // pred_check
          %p381 = pneg %p57
        $region14: #{tpu_custom_call.1} parent=11 // pred_check_branch
          %383 = sbr.rel (%p381) target = $region16
        $region15: #{tpu_custom_call.1} parent=11 // pred_region
          %s384 = smul.u32 16, %s28
          %p385 = scmp.lt.s32.totalorder %s384, 15
          %s386 = scalar_select %p385, %s384, 15
          %s387 = smul.addr %s386, 8
          %s388 = scalar_lea.vmem %s0, %s387
          %s389 = smul.u32 16, %s28
        $region16: #{tpu_custom_call.1} parent=11 // pred_fallthru
          _
        // Predicated region
        $region17: #{tpu_custom_call.1} parent=11 // pred_check
          %p390 = pneg %p83
        $region18: #{tpu_custom_call.1} parent=11 // pred_check_branch
          %392 = sbr.rel (%p390) target = $region20
        $region19: #{tpu_custom_call.1} parent=11 // pred_region
          %s393 = smul.u32 16, %s28
          %p394 = scmp.lt.s32.totalorder %s393, 15
          %s395 = scalar_select %p394, %s393, 15
          %s396 = smul.addr %s395, 8
          %s397 = scalar_lea.vmem %s1, %s396
          %s398 = smul.u32 16, %s28
        $region20: #{tpu_custom_call.1} parent=11 // pred_fallthru
          _
        // Predicated region
        $region21: #{tpu_custom_call.1} parent=11 // pred_check
          %p399 = pneg %p109
        $region22: #{tpu_custom_call.1} parent=11 // pred_check_branch
          %401 = sbr.rel (%p399) target = $region24
        $region23: #{tpu_custom_call.1} parent=11 // pred_region
          %s402 = smul.u32 16, %s28
          %p403 = scmp.lt.s32.totalorder %s402, 15
          %s404 = scalar_select %p403, %s402, 15
          %s405 = smul.addr %s404, 8
          %s406 = scalar_lea.vmem %s2, %s405
          %s407 = smul.u32 16, %s28
        $region24: #{tpu_custom_call.1} parent=11 // pred_fallthru
          _
        // Predicated region
        $region25: #{tpu_custom_call.1} parent=11 // pred_check
          %p408 = pneg %p312
        $region26: #{tpu_custom_call.1} parent=11 // pred_check_branch
          %410 = sbr.rel (%p408) target = $region28
        $region27: #{tpu_custom_call.1} parent=11 // pred_region
          _
        $region28: #{tpu_custom_call.1} parent=11 // pred_fallthru
          _
      $region12: #{tpu_custom_call.1} parent=5 // pred_fallthru
        _
      %p411 = scmp.lt.s32.totalorder %s19, 4
      // Predicated region
      $region29: #{tpu_custom_call.1} parent=5 // pred_check
        %p412 = pneg %p411
      $region30: #{tpu_custom_call.1} parent=5 // pred_check_branch
        %414 = sbr.rel (%p412) target = $region32
      $region31: #{tpu_custom_call.1} parent=5 // pred_region
        // Predicated region
        $region33: #{tpu_custom_call.1} parent=31 // pred_check
          %p415 = pneg %p129
        $region34: #{tpu_custom_call.1} parent=31 // pred_check_branch
          %417 = sbr.rel (%p415) target = $region36
        $region35: #{tpu_custom_call.1} parent=31 // pred_region
          %p418 = scmp.lt.s32.totalorder %s27, 3
          %s419 = scalar_select %p418, %s27, 3
          %s420 = smul.addr %s419, 4
          %s421 = smul.addr %s420, 8
          %s422 = scalar_lea.vmem %s3, %s421
        $region36: #{tpu_custom_call.1} parent=31 // pred_fallthru
          _
        // Predicated region
        $region37: #{tpu_custom_call.1} parent=31 // pred_check
          %p423 = pneg %p155
        $region38: #{tpu_custom_call.1} parent=31 // pred_check_branch
          %425 = sbr.rel (%p423) target = $region40
        $region39: #{tpu_custom_call.1} parent=31 // pred_region
          %p426 = scmp.lt.s32.totalorder %s27, 3
          %s427 = scalar_select %p426, %s27, 3
          %s428 = scalar_lea.vmem %s4, %s427
        $region40: #{tpu_custom_call.1} parent=31 // pred_fallthru
          _
        // Predicated region
        $region41: #{tpu_custom_call.1} parent=31 // pred_check
          %p429 = pneg %p181
        $region42: #{tpu_custom_call.1} parent=31 // pred_check_branch
          %431 = sbr.rel (%p429) target = $region44
        $region43: #{tpu_custom_call.1} parent=31 // pred_region
          %p432 = scmp.lt.s32.totalorder %s27, 3
          %s433 = scalar_select %p432, %s27, 3
          %s434 = smul.addr %s433, 4
          %s435 = smul.addr %s434, 8
          %s436 = scalar_lea.vmem %s5, %s435
        $region44: #{tpu_custom_call.1} parent=31 // pred_fallthru
          _
        // Predicated region
        $region45: #{tpu_custom_call.1} parent=31 // pred_check
          %p437 = pneg %p207
        $region46: #{tpu_custom_call.1} parent=31 // pred_check_branch
          %439 = sbr.rel (%p437) target = $region48
        $region47: #{tpu_custom_call.1} parent=31 // pred_region
          %p440 = scmp.lt.s32.totalorder %s27, 3
          %s441 = scalar_select %p440, %s27, 3
          %s442 = scalar_lea.vmem %s6, %s441
        $region48: #{tpu_custom_call.1} parent=31 // pred_fallthru
          _
        // Predicated region
        $region49: #{tpu_custom_call.1} parent=31 // pred_check
          %p443 = pneg %p233
        $region50: #{tpu_custom_call.1} parent=31 // pred_check_branch
          %445 = sbr.rel (%p443) target = $region52
        $region51: #{tpu_custom_call.1} parent=31 // pred_region
          %p446 = scmp.lt.s32.totalorder %s27, 3
          %s447 = scalar_select %p446, %s27, 3
          %s448 = smul.addr %s447, 4
          %s449 = smul.addr %s448, 8
          %s450 = scalar_lea.vmem %s7, %s449
        $region52: #{tpu_custom_call.1} parent=31 // pred_fallthru
          _
        // Predicated region
        $region53: #{tpu_custom_call.1} parent=31 // pred_check
          %p451 = pneg %p259
        $region54: #{tpu_custom_call.1} parent=31 // pred_check_branch
          %453 = sbr.rel (%p451) target = $region56
        $region55: #{tpu_custom_call.1} parent=31 // pred_region
          %p454 = scmp.lt.s32.totalorder %s27, 3
          %s455 = scalar_select %p454, %s27, 3
          %s456 = scalar_lea.vmem %s8, %s455
        $region56: #{tpu_custom_call.1} parent=31 // pred_fallthru
          _
        // Predicated region
        $region57: #{tpu_custom_call.1} parent=31 // pred_check
          %p457 = pneg %p285
        $region58: #{tpu_custom_call.1} parent=31 // pred_check_branch
          %459 = sbr.rel (%p457) target = $region60
        $region59: #{tpu_custom_call.1} parent=31 // pred_region
          %p460 = scmp.lt.s32.totalorder %s27, 3
          %s461 = scalar_select %p460, %s27, 3
          %s462 = smul.addr %s461, 8
          %s463 = scalar_lea.vmem %s9, %s462
        $region60: #{tpu_custom_call.1} parent=31 // pred_fallthru
          _
      $region32: #{tpu_custom_call.1} parent=5 // pred_fallthru
        _
      %p464 = scmp.le.s32.totalorder 1, %s19
      %p465 = scmp.lt.s32.totalorder %s19, 5
      %p466 = pnand %p464, %p465
      %p467 = pneg %p466
      // Predicated region
      $region61: #{tpu_custom_call.1} parent=5 // pred_check
        _
      $region62: #{tpu_custom_call.1} parent=5 // pred_check_branch
        %469 = sbr.rel (%p466) target = $region64
      $region63: #{tpu_custom_call.1} parent=5 // pred_region
        %s470 = ssub.s32 %s19, 1
        %s471 = smul.u32 16, %s28
        %p472 = scmp.lt.s32.totalorder %s471, 15
        %s473 = scalar_select %p472, %s471, 15
        %s474 = smul.addr %s473, 8
        %s475 = scalar_lea.vmem %s0, %s474
        %p476 = pneg %p57
        %p477 = pneg %p54
        %s478 = smul.u32 16, %s28
        %p479 = scmp.lt.s32.totalorder %s478, 15
        %s480 = scalar_select %p479, %s478, 15
        %s481 = smul.addr %s480, 8
        %s482 = scalar_lea.vmem %s1, %s481
        %p483 = pneg %p83
        %p484 = pneg %p80
        %s485 = smul.u32 16, %s28
        %p486 = scmp.lt.s32.totalorder %s485, 15
        %s487 = scalar_select %p486, %s485, 15
        %s488 = smul.addr %s487, 8
        %s489 = scalar_lea.vmem %s2, %s488
        %p490 = pneg %p109
        %p491 = pneg %p106
        %p492 = scmp.lt.s32.totalorder %s29, 3
        %s493 = scalar_select %p492, %s29, 3
        %s494 = smul.addr %s493, 4
        %s495 = smul.addr %s494, 8
        %s496 = scalar_lea.vmem %s3, %s495
        %p497 = pneg %p135
        %p498 = pneg %p132
        %p499 = scmp.lt.s32.totalorder %s29, 3
        %s500 = scalar_select %p499, %s29, 3
        %s501 = scalar_lea.vmem %s4, %s500
        %p502 = pneg %p161
        %p503 = pneg %p158
        %p504 = scmp.lt.s32.totalorder %s29, 3
        %s505 = scalar_select %p504, %s29, 3
        %s506 = smul.addr %s505, 4
        %s507 = smul.addr %s506, 8
        %s508 = scalar_lea.vmem %s5, %s507
        %p509 = pneg %p187
        %p510 = pneg %p184
        %p511 = scmp.lt.s32.totalorder %s29, 3
        %s512 = scalar_select %p511, %s29, 3
        %s513 = scalar_lea.vmem %s6, %s512
        %p514 = pneg %p213
        %p515 = pneg %p210
        %p516 = scmp.lt.s32.totalorder %s29, 3
        %s517 = scalar_select %p516, %s29, 3
        %s518 = smul.addr %s517, 4
        %s519 = smul.addr %s518, 8
        %s520 = scalar_lea.vmem %s7, %s519
        %p521 = pneg %p239
        %p522 = pneg %p236
        %p523 = scmp.lt.s32.totalorder %s29, 3
        %s524 = scalar_select %p523, %s29, 3
        %s525 = scalar_lea.vmem %s8, %s524
        %p526 = pneg %p265
        %p527 = pneg %p262
        %p528 = scmp.lt.s32.totalorder %s29, 3
        %s529 = scalar_select %p528, %s29, 3
        %s530 = smul.addr %s529, 8
        %s531 = scalar_lea.vmem %s9, %s530
        %p532 = pneg %p291
        %p533 = pneg %p288
        %p534 = pneg %p312
        %p535 = pneg %p309
        %p536 = pneg %p338
        %p537 = pneg %p335
        %s538 = smul.u32 16, %s28
        %p539 = scmp.lt.s32.totalorder %s538, 15
        %s540 = scalar_select %p539, %s538, 15
        %s541 = smul.addr %s540, 8
        %s542 = scalar_lea.vmem %s11, %s541
        %p543 = pneg %p366
        %p544 = pneg %p363
        %s545 = sand.u32 %s353, 1
        %s546 = sand.u32 %s353, 1
        %s547 = smul.addr %s546, 128
        %s548 = scalar_lea.vmem [#allocation2], %s547
        %s549 = smul.u32 16, %s28
        %p550 = scmp.lt.s32.totalorder %s549, 15
        %s551 = scalar_select %p550, %s549, 15
        %s552 = smul.addr %s551, 8
        %s553 = scalar_lea.vmem %s0, %s552
        %s554 = smul.u32 16, %s28
        %s555 = smul.u32 16, %s28
        %p556 = scmp.lt.s32.totalorder %s555, 15
        %s557 = scalar_select %p556, %s555, 15
        %s558 = smul.addr %s557, 8
        %s559 = scalar_lea.vmem %s1, %s558
        %s560 = smul.u32 16, %s28
        %s561 = smul.u32 16, %s28
        %p562 = scmp.lt.s32.totalorder %s561, 15
        %s563 = scalar_select %p562, %s561, 15
        %s564 = smul.addr %s563, 8
        %s565 = scalar_lea.vmem %s2, %s564
        %s566 = smul.u32 16, %s28
        %p567 = scmp.lt.s32.totalorder %s29, 3
        %s568 = scalar_select %p567, %s29, 3
        %s569 = smul.addr %s568, 4
        %s570 = smul.addr %s569, 8
        %s571 = scalar_lea.vmem %s3, %s570
        %p572 = scmp.lt.s32.totalorder %s29, 3
        %s573 = scalar_select %p572, %s29, 3
        %s574 = scalar_lea.vmem %s4, %s573
        %p575 = scmp.lt.s32.totalorder %s29, 3
        %s576 = scalar_select %p575, %s29, 3
        %s577 = smul.addr %s576, 4
        %s578 = smul.addr %s577, 8
        %s579 = scalar_lea.vmem %s5, %s578
        %p580 = scmp.lt.s32.totalorder %s29, 3
        %s581 = scalar_select %p580, %s29, 3
        %s582 = scalar_lea.vmem %s6, %s581
        %p583 = scmp.lt.s32.totalorder %s29, 3
        %s584 = scalar_select %p583, %s29, 3
        %s585 = smul.addr %s584, 4
        %s586 = smul.addr %s585, 8
        %s587 = scalar_lea.vmem %s7, %s586
        %p588 = scmp.lt.s32.totalorder %s29, 3
        %s589 = scalar_select %p588, %s29, 3
        %s590 = scalar_lea.vmem %s8, %s589
        %p591 = scmp.lt.s32.totalorder %s29, 3
        %s592 = scalar_select %p591, %s29, 3
        %s593 = smul.addr %s592, 8
        %s594 = scalar_lea.vmem %s9, %s593
        %s595 = smul.u32 16, %s28
        %p596 = scmp.lt.s32.totalorder %s595, 15
        %s597 = scalar_select %p596, %s595, 15
        %s598 = smul.addr %s597, 8
        %s599 = scalar_lea.vmem %s11, %s598
        %s600 = smul.u32 16, %s28
        %s601 = smul.u32 16, %s28
        %v602 = vld [vmem:[%s553] sm:$0xff]
        %v603 = vld [vmem:[%s553 + $0x8] sm:$0xff]
        %v604 = vld [vmem:[%s553 + $0x10] sm:$0xff]
        %v605 = vld [vmem:[%s553 + $0x18] sm:$0xff]
        %v606 = vld [vmem:[%s553 + $0x20] sm:$0xff]
        %v607 = vld [vmem:[%s553 + $0x28] sm:$0xff]
        %v608 = vld [vmem:[%s553 + $0x30] sm:$0xff]
        %v609 = vld [vmem:[%s553 + $0x38] sm:$0xff]
        %v610 = vld [vmem:[%s553 + $0x40] sm:$0xff]
        %v611 = vld [vmem:[%s553 + $0x48] sm:$0xff]
        %v612 = vld [vmem:[%s553 + $0x50] sm:$0xff]
        %v613 = vld [vmem:[%s553 + $0x58] sm:$0xff]
        %v614 = vld [vmem:[%s553 + $0x60] sm:$0xff]
        %v615 = vld [vmem:[%s553 + $0x68] sm:$0xff]
        %v616 = vld [vmem:[%s553 + $0x70] sm:$0xff]
        %v617 = vld [vmem:[%s553 + $0x78] sm:$0xff]
        %v618 = vld [vmem:[%s559] sm:$0xff]
        %v619 = vld [vmem:[%s559 + $0x8] sm:$0xff]
        %v620 = vld [vmem:[%s559 + $0x10] sm:$0xff]
        %v621 = vld [vmem:[%s559 + $0x18] sm:$0xff]
        %v622 = vld [vmem:[%s559 + $0x20] sm:$0xff]
        %v623 = vld [vmem:[%s559 + $0x28] sm:$0xff]
        %v624 = vld [vmem:[%s559 + $0x30] sm:$0xff]
        %v625 = vld [vmem:[%s559 + $0x38] sm:$0xff]
        %v626 = vld [vmem:[%s559 + $0x40] sm:$0xff]
        %v627 = vld [vmem:[%s559 + $0x48] sm:$0xff]
        %v628 = vld [vmem:[%s559 + $0x50] sm:$0xff]
        %v629 = vld [vmem:[%s559 + $0x58] sm:$0xff]
        %v630 = vld [vmem:[%s559 + $0x60] sm:$0xff]
        %v631 = vld [vmem:[%s559 + $0x68] sm:$0xff]
        %v632 = vld [vmem:[%s559 + $0x70] sm:$0xff]
        %v633 = vld [vmem:[%s559 + $0x78] sm:$0xff]
        %v634 = vld [vmem:[%s565] sm:$0xff]
        %v635 = vld [vmem:[%s565 + $0x8] sm:$0xff]
        %v636 = vld [vmem:[%s565 + $0x10] sm:$0xff]
        %v637 = vld [vmem:[%s565 + $0x18] sm:$0xff]
        %v638 = vld [vmem:[%s565 + $0x20] sm:$0xff]
        %v639 = vld [vmem:[%s565 + $0x28] sm:$0xff]
        %v640 = vld [vmem:[%s565 + $0x30] sm:$0xff]
        %v641 = vld [vmem:[%s565 + $0x38] sm:$0xff]
        %v642 = vld [vmem:[%s565 + $0x40] sm:$0xff]
        %v643 = vld [vmem:[%s565 + $0x48] sm:$0xff]
        %v644 = vld [vmem:[%s565 + $0x50] sm:$0xff]
        %v645 = vld [vmem:[%s565 + $0x58] sm:$0xff]
        %v646 = vld [vmem:[%s565 + $0x60] sm:$0xff]
        %v647 = vld [vmem:[%s565 + $0x68] sm:$0xff]
        %v648 = vld [vmem:[%s565 + $0x70] sm:$0xff]
        %v649 = vld [vmem:[%s565 + $0x78] sm:$0xff]
        %v650 = vld [vmem:[%s571] sm:$0xff]
        %v651 = vld [vmem:[%s571 + $0x8] sm:$0xff]
        %v652 = vld [vmem:[%s571 + $0x10] sm:$0xff]
        %v653 = vld [vmem:[%s571 + $0x18] sm:$0xff]
        %v654 = vld [vmem:[%s579] sm:$0xff]
        %v655 = vld [vmem:[%s579 + $0x8] sm:$0xff]
        %v656 = vld [vmem:[%s579 + $0x10] sm:$0xff]
        %v657 = vld [vmem:[%s579 + $0x18] sm:$0xff]
        %v658 = vld [vmem:[%s587] sm:$0xff]
        %v659 = vld [vmem:[%s587 + $0x8] sm:$0xff]
        %v660 = vld [vmem:[%s587 + $0x10] sm:$0xff]
        %v661 = vld [vmem:[%s587 + $0x18] sm:$0xff]
        %v662 = vld [vmem:[%s594] sm:$0xff]
        %v663 = vld [vmem:[%s574] sm:$0x1]
        %v665 = vlaneseq
        %v666 = vshrl.u32 %v665, 7
        %v667 = vsub.s32 0, %v666
        %v668 = vrot.slane %v663, %v667
        %vm670 = vcmask 261120
        %v672 = vsel %vm670, %v602, 0
        %v675 = vsel %vm670, %v603, 0
        %v678 = vsel %vm670, %v604, 0
        %v681 = vsel %vm670, %v605, 0
        %v684 = vsel %vm670, %v606, 0
        %v687 = vsel %vm670, %v607, 0
        %v690 = vsel %vm670, %v608, 0
        %v693 = vsel %vm670, %v609, 0
        %v696 = vsel %vm670, %v610, 0
        %v699 = vsel %vm670, %v611, 0
        %v702 = vsel %vm670, %v612, 0
        %v705 = vsel %vm670, %v613, 0
        %v708 = vsel %vm670, %v614, 0
        %v711 = vsel %vm670, %v615, 0
        %v714 = vsel %vm670, %v616, 0
        %v717 = vsel %vm670, %v617, 0
        %719 = vmatprep.subr.mxu0 0.0
        %720 = vmatpush1.msra.mxu0 %v650
        %721 = vmatprep.subr.mxu0 0.0
        %722 = vmatpush1.msra.mxu0 %v651
        %723 = vmatprep.subr.mxu0 0.0
        %724 = vmatpush1.msra.mxu0 %v652
        %725 = vmatprep.subr.mxu0 0.0
        %726 = vmatpush1.msra.mxu0 %v653
        %727 = vmatprep.subr.mxu0 0.0
        %728 = vmatpush1.msra.mxu0 0.0
        %729 = vmatprep.subr.mxu0 0.0
        %730 = vmatpush1.msra.mxu0 0.0
        %731 = vmatprep.subr.mxu0 0.0
        %732 = vmatpush1.msra.mxu0 0.0
        %733 = vmatprep.subr.mxu0 0.0
        %734 = vmatpush1.msra.mxu0 0.0
        %735 = vmatprep.subr.mxu0 0.0
        %736 = vmatpush1.msra.mxu0 0.0
        %737 = vmatprep.subr.mxu0 0.0
        %738 = vmatpush1.msra.mxu0 0.0
        %739 = vmatprep.subr.mxu0 0.0
        %740 = vmatpush1.msra.mxu0 0.0
        %741 = vmatprep.subr.mxu0 0.0
        %742 = vmatpush1.msra.mxu0 0.0
        %743 = vmatprep.subr.mxu0 0.0
        %744 = vmatpush1.msra.mxu0 0.0
        %745 = vmatprep.subr.mxu0 0.0
        %746 = vmatpush1.msra.mxu0 0.0
        %747 = vmatprep.subr.mxu0 0.0
        %748 = vmatpush1.msra.mxu0 0.0
        %749 = vmatprep.subr.mxu0 0.0
        %750 = vmatpush1.msra.mxu0 0.0
        %751 = vmatprep.subr.mxu0 0.0
        %752 = vmatpush1.msra.mxu0 0.0
        %753 = vmatprep.subr.mxu0 0.0
        %754 = vmatpush1.msra.mxu0 0.0
        %755 = vmatprep.subr.mxu0 0.0
        %756 = vmatpush1.msra.mxu0 0.0
        %757 = vmatprep.subr.mxu0 0.0
        %758 = vmatpush1.msra.mxu0 0.0
        %759 = vmatprep.subr.mxu0 0.0
        %760 = vmatpush1.msra.mxu0 0.0
        %761 = vmatprep.subr.mxu0 0.0
        %762 = vmatpush1.msra.mxu0 0.0
        %763 = vmatprep.subr.mxu0 0.0
        %764 = vmatpush1.msra.mxu0 0.0
        %765 = vmatprep.subr.mxu0 0.0
        %766 = vmatpush1.msra.mxu0 0.0
        %767 = vmatprep.subr.mxu0 0.0
        %768 = vmatpush1.msra.mxu0 0.0
        %769 = vmatprep.subr.mxu0 0.0
        %770 = vmatpush1.msra.mxu0 0.0
        %771 = vmatprep.subr.mxu0 0.0
        %772 = vmatpush1.msra.mxu0 0.0
        %773 = vmatprep.subr.mxu0 0.0
        %774 = vmatpush1.msra.mxu0 0.0
        %775 = vmatprep.subr.mxu0 0.0
        %776 = vmatpush1.msra.mxu0 0.0
        %777 = vmatprep.subr.mxu0 0.0
        %778 = vmatpush1.msra.mxu0 0.0
        %779 = vmatprep.subr.mxu0 0.0
        %780 = vmatpush1.msra.mxu0 0.0
        %781 = vmatprep.subr.mxu0 0.0
        %782 = vmatpush1.msra.mxu0 0.0
        %783 = vmatprep.mubr.f32.mxu0 0.0
        %784 = vmatmul.mubr.f32.gmra.mrb[0].mxu0 %v672
        %v785 = vpop.f32.mrb[0].mxu0
        %v786 = vadd.f32 %v668, %v785
        %v787 = vpop.f32.mrb[0].mxu0
        %788 = vmatprep.mubr.f32.mxu0 0.0
        %789 = vmatmul.mubr.f32.gmra.mrb[0].mxu0 %v675
        %v790 = vpop.f32.mrb[0].mxu0
        %v791 = vadd.f32 %v668, %v790
        %v792 = vpop.f32.mrb[0].mxu0
        %793 = vmatprep.mubr.f32.mxu0 0.0
        %794 = vmatmul.mubr.f32.gmra.mrb[0].mxu0 %v678
        %v795 = vpop.f32.mrb[0].mxu0
        %v796 = vadd.f32 %v668, %v795
        %v797 = vpop.f32.mrb[0].mxu0
        %798 = vmatprep.mubr.f32.mxu0 0.0
        %799 = vmatmul.mubr.f32.gmra.mrb[0].mxu0 %v681
        %v800 = vpop.f32.mrb[0].mxu0
        %v801 = vadd.f32 %v668, %v800
        %v802 = vpop.f32.mrb[0].mxu0
        %803 = vmatprep.mubr.f32.mxu0 0.0
        %804 = vmatmul.mubr.f32.gmra.mrb[0].mxu0 %v684
        %v805 = vpop.f32.mrb[0].mxu0
        %v806 = vadd.f32 %v668, %v805
        %v807 = vpop.f32.mrb[0].mxu0
        %808 = vmatprep.mubr.f32.mxu0 0.0
        %809 = vmatmul.mubr.f32.gmra.mrb[0].mxu0 %v687
        %v810 = vpop.f32.mrb[0].mxu0
        %v811 = vadd.f32 %v668, %v810
        %v812 = vpop.f32.mrb[0].mxu0
        %813 = vmatprep.mubr.f32.mxu0 0.0
        %814 = vmatmul.mubr.f32.gmra.mrb[0].mxu0 %v690
        %v815 = vpop.f32.mrb[0].mxu0
        %v816 = vadd.f32 %v668, %v815
        %v817 = vpop.f32.mrb[0].mxu0
        %818 = vmatprep.mubr.f32.mxu0 0.0
        %819 = vmatmul.mubr.f32.gmra.mrb[0].mxu0 %v693
        %v820 = vpop.f32.mrb[0].mxu0
        %v821 = vadd.f32 %v668, %v820
        %v822 = vpop.f32.mrb[0].mxu0
        %823 = vmatprep.mubr.f32.mxu0 0.0
        %824 = vmatmul.mubr.f32.gmra.mrb[0].mxu0 %v696
        %v825 = vpop.f32.mrb[0].mxu0
        %v826 = vadd.f32 %v668, %v825
        %v827 = vpop.f32.mrb[0].mxu0
        %828 = vmatprep.mubr.f32.mxu0 0.0
        %829 = vmatmul.mubr.f32.gmra.mrb[0].mxu0 %v699
        %v830 = vpop.f32.mrb[0].mxu0
        %v831 = vadd.f32 %v668, %v830
        %v832 = vpop.f32.mrb[0].mxu0
        %833 = vmatprep.mubr.f32.mxu0 0.0
        %834 = vmatmul.mubr.f32.gmra.mrb[0].mxu0 %v702
        %v835 = vpop.f32.mrb[0].mxu0
        %v836 = vadd.f32 %v668, %v835
        %v837 = vpop.f32.mrb[0].mxu0
        %838 = vmatprep.mubr.f32.mxu0 0.0
        %839 = vmatmul.mubr.f32.gmra.mrb[0].mxu0 %v705
        %v840 = vpop.f32.mrb[0].mxu0
        %v841 = vadd.f32 %v668, %v840
        %v842 = vpop.f32.mrb[0].mxu0
        %843 = vmatprep.mubr.f32.mxu0 0.0
        %844 = vmatmul.mubr.f32.gmra.mrb[0].mxu0 %v708
        %v845 = vpop.f32.mrb[0].mxu0
        %v846 = vadd.f32 %v668, %v845
        %v847 = vpop.f32.mrb[0].mxu0
        %848 = vmatprep.mubr.f32.mxu0 0.0
        %849 = vmatmul.mubr.f32.gmra.mrb[0].mxu0 %v711
        %v850 = vpop.f32.mrb[0].mxu0
        %v851 = vadd.f32 %v668, %v850
        %v852 = vpop.f32.mrb[0].mxu0
        %853 = vmatprep.mubr.f32.mxu0 0.0
        %854 = vmatmul.mubr.f32.gmra.mrb[0].mxu0 %v714
        %v855 = vpop.f32.mrb[0].mxu0
        %v856 = vadd.f32 %v668, %v855
        %v857 = vpop.f32.mrb[0].mxu0
        %858 = vmatprep.mubr.f32.mxu0 0.0
        %859 = vmatmul.mubr.f32.gmra.mrb[0].mxu0 %v717
        %v860 = vpop.f32.mrb[0].mxu0
        %v861 = vadd.f32 %v668, %v860
        %v862 = vpop.f32.mrb[0].mxu0
        %863 = vdwg.mxu0
        %v864 = vmul.f32 %v786, 0.35355338
        %v865 = vmul.f32 %v791, 0.35355338
        %v866 = vmul.f32 %v796, 0.35355338
        %v867 = vmul.f32 %v801, 0.35355338
        %v868 = vmul.f32 %v806, 0.35355338
        %v869 = vmul.f32 %v811, 0.35355338
        %v870 = vmul.f32 %v816, 0.35355338
        %v871 = vmul.f32 %v821, 0.35355338
        %v872 = vmul.f32 %v826, 0.35355338
        %v873 = vmul.f32 %v831, 0.35355338
        %v874 = vmul.f32 %v836, 0.35355338
        %v875 = vmul.f32 %v841, 0.35355338
        %v876 = vmul.f32 %v846, 0.35355338
        %v877 = vmul.f32 %v851, 0.35355338
        %v878 = vmul.f32 %v856, 0.35355338
        %v879 = vmul.f32 %v861, 0.35355338
        %v880 = vld [vmem:[%s582] sm:$0x1]
        %v882 = vlaneseq
        %v883 = vshrl.u32 %v882, 7
        %v884 = vsub.s32 0, %v883
        %v885 = vrot.slane %v880, %v884
        %v888 = vsel %vm670, %v618, 0
        %v891 = vsel %vm670, %v619, 0
        %v894 = vsel %vm670, %v620, 0
        %v897 = vsel %vm670, %v621, 0
        %v900 = vsel %vm670, %v622, 0
        %v903 = vsel %vm670, %v623, 0
        %v906 = vsel %vm670, %v624, 0
        %v909 = vsel %vm670, %v625, 0
        %v912 = vsel %vm670, %v626, 0
        %v915 = vsel %vm670, %v627, 0
        %v918 = vsel %vm670, %v628, 0
        %v921 = vsel %vm670, %v629, 0
        %v924 = vsel %vm670, %v630, 0
        %v927 = vsel %vm670, %v631, 0
        %v930 = vsel %vm670, %v632, 0
        %v933 = vsel %vm670, %v633, 0
        %935 = vmatprep.subr.mxu0 0.0
        %936 = vmatpush1.msra.mxu0 %v654
        %937 = vmatprep.subr.mxu0 0.0
        %938 = vmatpush1.msra.mxu0 %v655
        %939 = vmatprep.subr.mxu0 0.0
        %940 = vmatpush1.msra.mxu0 %v656
        %941 = vmatprep.subr.mxu0 0.0
        %942 = vmatpush1.msra.mxu0 %v657
        %943 = vmatprep.subr.mxu0 0.0
        %944 = vmatpush1.msra.mxu0 0.0
        %945 = vmatprep.subr.mxu0 0.0
        %946 = vmatpush1.msra.mxu0 0.0
        %947 = vmatprep.subr.mxu0 0.0
        %948 = vmatpush1.msra.mxu0 0.0
        %949 = vmatprep.subr.mxu0 0.0
        %950 = vmatpush1.msra.mxu0 0.0
        %951 = vmatprep.subr.mxu0 0.0
        %952 = vmatpush1.msra.mxu0 0.0
        %953 = vmatprep.subr.mxu0 0.0
        %954 = vmatpush1.msra.mxu0 0.0
        %955 = vmatprep.subr.mxu0 0.0
        %956 = vmatpush1.msra.mxu0 0.0
        %957 = vmatprep.subr.mxu0 0.0
        %958 = vmatpush1.msra.mxu0 0.0
        %959 = vmatprep.subr.mxu0 0.0
        %960 = vmatpush1.msra.mxu0 0.0
        %961 = vmatprep.subr.mxu0 0.0
        %962 = vmatpush1.msra.mxu0 0.0
        %963 = vmatprep.subr.mxu0 0.0
        %964 = vmatpush1.msra.mxu0 0.0
        %965 = vmatprep.subr.mxu0 0.0
        %966 = vmatpush1.msra.mxu0 0.0
        %967 = vmatprep.subr.mxu0 0.0
        %968 = vmatpush1.msra.mxu0 0.0
        %969 = vmatprep.subr.mxu0 0.0
        %970 = vmatpush1.msra.mxu0 0.0
        %971 = vmatprep.subr.mxu0 0.0
        %972 = vmatpush1.msra.mxu0 0.0
        %973 = vmatprep.subr.mxu0 0.0
        %974 = vmatpush1.msra.mxu0 0.0
        %975 = vmatprep.subr.mxu0 0.0
        %976 = vmatpush1.msra.mxu0 0.0
        %977 = vmatprep.subr.mxu0 0.0
        %978 = vmatpush1.msra.mxu0 0.0
        %979 = vmatprep.subr.mxu0 0.0
        %980 = vmatpush1.msra.mxu0 0.0
        %981 = vmatprep.subr.mxu0 0.0
        %982 = vmatpush1.msra.mxu0 0.0
        %983 = vmatprep.subr.mxu0 0.0
        %984 = vmatpush1.msra.mxu0 0.0
        %985 = vmatprep.subr.mxu0 0.0
        %986 = vmatpush1.msra.mxu0 0.0
        %987 = vmatprep.subr.mxu0 0.0
        %988 = vmatpush1.msra.mxu0 0.0
        %989 = vmatprep.subr.mxu0 0.0
        %990 = vmatpush1.msra.mxu0 0.0
        %991 = vmatprep.subr.mxu0 0.0
        %992 = vmatpush1.msra.mxu0 0.0
        %993 = vmatprep.subr.mxu0 0.0
        %994 = vmatpush1.msra.mxu0 0.0
        %995 = vmatprep.subr.mxu0 0.0
        %996 = vmatpush1.msra.mxu0 0.0
        %997 = vmatprep.subr.mxu0 0.0
        %998 = vmatpush1.msra.mxu0 0.0
        %999 = vmatprep.mubr.f32.mxu0 0.0
        %1000 = vmatmul.mubr.f32.gmra.mrb[0].mxu0 %v888
        %v1001 = vpop.f32.mrb[0].mxu0
        %v1002 = vadd.f32 %v885, %v1001
        %v1003 = vpop.f32.mrb[0].mxu0
        %1004 = vmatprep.mubr.f32.mxu0 0.0
        %1005 = vmatmul.mubr.f32.gmra.mrb[0].mxu0 %v891
        %v1006 = vpop.f32.mrb[0].mxu0
        %v1007 = vadd.f32 %v885, %v1006
        %v1008 = vpop.f32.mrb[0].mxu0
        %1009 = vmatprep.mubr.f32.mxu0 0.0
        %1010 = vmatmul.mubr.f32.gmra.mrb[0].mxu0 %v894
        %v1011 = vpop.f32.mrb[0].mxu0
        %v1012 = vadd.f32 %v885, %v1011
        %v1013 = vpop.f32.mrb[0].mxu0
        %1014 = vmatprep.mubr.f32.mxu0 0.0
        %1015 = vmatmul.mubr.f32.gmra.mrb[0].mxu0 %v897
        %v1016 = vpop.f32.mrb[0].mxu0
        %v1017 = vadd.f32 %v885, %v1016
        %v1018 = vpop.f32.mrb[0].mxu0
        %1019 = vmatprep.mubr.f32.mxu0 0.0
        %1020 = vmatmul.mubr.f32.gmra.mrb[0].mxu0 %v900
        %v1021 = vpop.f32.mrb[0].mxu0
        %v1022 = vadd.f32 %v885, %v1021
        %v1023 = vpop.f32.mrb[0].mxu0
        %1024 = vmatprep.mubr.f32.mxu0 0.0
        %1025 = vmatmul.mubr.f32.gmra.mrb[0].mxu0 %v903
        %v1026 = vpop.f32.mrb[0].mxu0
        %v1027 = vadd.f32 %v885, %v1026
        %v1028 = vpop.f32.mrb[0].mxu0
        %1029 = vmatprep.mubr.f32.mxu0 0.0
        %1030 = vmatmul.mubr.f32.gmra.mrb[0].mxu0 %v906
        %v1031 = vpop.f32.mrb[0].mxu0
        %v1032 = vadd.f32 %v885, %v1031
        %v1033 = vpop.f32.mrb[0].mxu0
        %1034 = vmatprep.mubr.f32.mxu0 0.0
        %1035 = vmatmul.mubr.f32.gmra.mrb[0].mxu0 %v909
        %v1036 = vpop.f32.mrb[0].mxu0
        %v1037 = vadd.f32 %v885, %v1036
        %v1038 = vpop.f32.mrb[0].mxu0
        %1039 = vmatprep.mubr.f32.mxu0 0.0
        %1040 = vmatmul.mubr.f32.gmra.mrb[0].mxu0 %v912
        %v1041 = vpop.f32.mrb[0].mxu0
        %v1042 = vadd.f32 %v885, %v1041
        %v1043 = vpop.f32.mrb[0].mxu0
        %1044 = vmatprep.mubr.f32.mxu0 0.0
        %1045 = vmatmul.mubr.f32.gmra.mrb[0].mxu0 %v915
        %v1046 = vpop.f32.mrb[0].mxu0
        %v1047 = vadd.f32 %v885, %v1046
        %v1048 = vpop.f32.mrb[0].mxu0
        %1049 = vmatprep.mubr.f32.mxu0 0.0
        %1050 = vmatmul.mubr.f32.gmra.mrb[0].mxu0 %v918
        %v1051 = vpop.f32.mrb[0].mxu0
        %v1052 = vadd.f32 %v885, %v1051
        %v1053 = vpop.f32.mrb[0].mxu0
        %1054 = vmatprep.mubr.f32.mxu0 0.0
        %1055 = vmatmul.mubr.f32.gmra.mrb[0].mxu0 %v921
        %v1056 = vpop.f32.mrb[0].mxu0
        %v1057 = vadd.f32 %v885, %v1056
        %v1058 = vpop.f32.mrb[0].mxu0
        %1059 = vmatprep.mubr.f32.mxu0 0.0
        %1060 = vmatmul.mubr.f32.gmra.mrb[0].mxu0 %v924
        %v1061 = vpop.f32.mrb[0].mxu0
        %v1062 = vadd.f32 %v885, %v1061
        %v1063 = vpop.f32.mrb[0].mxu0
        %1064 = vmatprep.mubr.f32.mxu0 0.0
        %1065 = vmatmul.mubr.f32.gmra.mrb[0].mxu0 %v927
        %v1066 = vpop.f32.mrb[0].mxu0
        %v1067 = vadd.f32 %v885, %v1066
        %v1068 = vpop.f32.mrb[0].mxu0
        %1069 = vmatprep.mubr.f32.mxu0 0.0
        %1070 = vmatmul.mubr.f32.gmra.mrb[0].mxu0 %v930
        %v1071 = vpop.f32.mrb[0].mxu0
        %v1072 = vadd.f32 %v885, %v1071
        %v1073 = vpop.f32.mrb[0].mxu0
        %1074 = vmatprep.mubr.f32.mxu0 0.0
        %1075 = vmatmul.mubr.f32.gmra.mrb[0].mxu0 %v933
        %v1076 = vpop.f32.mrb[0].mxu0
        %v1077 = vadd.f32 %v885, %v1076
        %v1078 = vpop.f32.mrb[0].mxu0
        %1079 = vdwg.mxu0
        %v1080 = vld [vmem:[%s590] sm:$0x1]
        %v1082 = vlaneseq
        %v1083 = vshrl.u32 %v1082, 7
        %v1084 = vsub.s32 0, %v1083
        %v1085 = vrot.slane %v1080, %v1084
        %v1088 = vsel %vm670, %v634, 0
        %v1091 = vsel %vm670, %v635, 0
        %v1094 = vsel %vm670, %v636, 0
        %v1097 = vsel %vm670, %v637, 0
        %v1100 = vsel %vm670, %v638, 0
        %v1103 = vsel %vm670, %v639, 0
        %v1106 = vsel %vm670, %v640, 0
        %v1109 = vsel %vm670, %v641, 0
        %v1112 = vsel %vm670, %v642, 0
        %v1115 = vsel %vm670, %v643, 0
        %v1118 = vsel %vm670, %v644, 0
        %v1121 = vsel %vm670, %v645, 0
        %v1124 = vsel %vm670, %v646, 0
        %v1127 = vsel %vm670, %v647, 0
        %v1130 = vsel %vm670, %v648, 0
        %v1133 = vsel %vm670, %v649, 0
        %1135 = vmatprep.subr.mxu0 0.0
        %1136 = vmatpush1.msra.mxu0 %v658
        %1137 = vmatprep.subr.mxu0 0.0
        %1138 = vmatpush1.msra.mxu0 %v659
        %1139 = vmatprep.subr.mxu0 0.0
        %1140 = vmatpush1.msra.mxu0 %v660
        %1141 = vmatprep.subr.mxu0 0.0
        %1142 = vmatpush1.msra.mxu0 %v661
        %1143 = vmatprep.subr.mxu0 0.0
        %1144 = vmatpush1.msra.mxu0 0.0
        %1145 = vmatprep.subr.mxu0 0.0
        %1146 = vmatpush1.msra.mxu0 0.0
        %1147 = vmatprep.subr.mxu0 0.0
        %1148 = vmatpush1.msra.mxu0 0.0
        %1149 = vmatprep.subr.mxu0 0.0
        %1150 = vmatpush1.msra.mxu0 0.0
        %1151 = vmatprep.subr.mxu0 0.0
        %1152 = vmatpush1.msra.mxu0 0.0
        %1153 = vmatprep.subr.mxu0 0.0
        %1154 = vmatpush1.msra.mxu0 0.0
        %1155 = vmatprep.subr.mxu0 0.0
        %1156 = vmatpush1.msra.mxu0 0.0
        %1157 = vmatprep.subr.mxu0 0.0
        %1158 = vmatpush1.msra.mxu0 0.0
        %1159 = vmatprep.subr.mxu0 0.0
        %1160 = vmatpush1.msra.mxu0 0.0
        %1161 = vmatprep.subr.mxu0 0.0
        %1162 = vmatpush1.msra.mxu0 0.0
        %1163 = vmatprep.subr.mxu0 0.0
        %1164 = vmatpush1.msra.mxu0 0.0
        %1165 = vmatprep.subr.mxu0 0.0
        %1166 = vmatpush1.msra.mxu0 0.0
        %1167 = vmatprep.subr.mxu0 0.0
        %1168 = vmatpush1.msra.mxu0 0.0
        %1169 = vmatprep.subr.mxu0 0.0
        %1170 = vmatpush1.msra.mxu0 0.0
        %1171 = vmatprep.subr.mxu0 0.0
        %1172 = vmatpush1.msra.mxu0 0.0
        %1173 = vmatprep.subr.mxu0 0.0
        %1174 = vmatpush1.msra.mxu0 0.0
        %1175 = vmatprep.subr.mxu0 0.0
        %1176 = vmatpush1.msra.mxu0 0.0
        %1177 = vmatprep.subr.mxu0 0.0
        %1178 = vmatpush1.msra.mxu0 0.0
        %1179 = vmatprep.subr.mxu0 0.0
        %1180 = vmatpush1.msra.mxu0 0.0
        %1181 = vmatprep.subr.mxu0 0.0
        %1182 = vmatpush1.msra.mxu0 0.0
        %1183 = vmatprep.subr.mxu0 0.0
        %1184 = vmatpush1.msra.mxu0 0.0
        %1185 = vmatprep.subr.mxu0 0.0
        %1186 = vmatpush1.msra.mxu0 0.0
        %1187 = vmatprep.subr.mxu0 0.0
        %1188 = vmatpush1.msra.mxu0 0.0
        %1189 = vmatprep.subr.mxu0 0.0
        %1190 = vmatpush1.msra.mxu0 0.0
        %1191 = vmatprep.subr.mxu0 0.0
        %1192 = vmatpush1.msra.mxu0 0.0
        %1193 = vmatprep.subr.mxu0 0.0
        %1194 = vmatpush1.msra.mxu0 0.0
        %1195 = vmatprep.subr.mxu0 0.0
        %1196 = vmatpush1.msra.mxu0 0.0
        %1197 = vmatprep.subr.mxu0 0.0
        %1198 = vmatpush1.msra.mxu0 0.0
        %1199 = vmatprep.mubr.f32.mxu0 0.0
        %1200 = vmatmul.mubr.f32.gmra.mrb[0].mxu0 %v1088
        %v1201 = vpop.f32.mrb[0].mxu0
        %v1202 = vadd.f32 %v1085, %v1201
        %v1203 = vpop.f32.mrb[0].mxu0
        %1204 = vmatprep.mubr.f32.mxu0 0.0
        %1205 = vmatmul.mubr.f32.gmra.mrb[0].mxu0 %v1091
        %v1206 = vpop.f32.mrb[0].mxu0
        %v1207 = vadd.f32 %v1085, %v1206
        %v1208 = vpop.f32.mrb[0].mxu0
        %1209 = vmatprep.mubr.f32.mxu0 0.0
        %1210 = vmatmul.mubr.f32.gmra.mrb[0].mxu0 %v1094
        %v1211 = vpop.f32.mrb[0].mxu0
        %v1212 = vadd.f32 %v1085, %v1211
        %v1213 = vpop.f32.mrb[0].mxu0
        %1214 = vmatprep.mubr.f32.mxu0 0.0
        %1215 = vmatmul.mubr.f32.gmra.mrb[0].mxu0 %v1097
        %v1216 = vpop.f32.mrb[0].mxu0
        %v1217 = vadd.f32 %v1085, %v1216
        %v1218 = vpop.f32.mrb[0].mxu0
        %1219 = vmatprep.mubr.f32.mxu0 0.0
        %1220 = vmatmul.mubr.f32.gmra.mrb[0].mxu0 %v1100
        %v1221 = vpop.f32.mrb[0].mxu0
        %v1222 = vadd.f32 %v1085, %v1221
        %v1223 = vpop.f32.mrb[0].mxu0
        %1224 = vmatprep.mubr.f32.mxu0 0.0
        %1225 = vmatmul.mubr.f32.gmra.mrb[0].mxu0 %v1103
        %v1226 = vpop.f32.mrb[0].mxu0
        %v1227 = vadd.f32 %v1085, %v1226
        %v1228 = vpop.f32.mrb[0].mxu0
        %1229 = vmatprep.mubr.f32.mxu0 0.0
        %1230 = vmatmul.mubr.f32.gmra.mrb[0].mxu0 %v1106
        %v1231 = vpop.f32.mrb[0].mxu0
        %v1232 = vadd.f32 %v1085, %v1231
        %v1233 = vpop.f32.mrb[0].mxu0
        %1234 = vmatprep.mubr.f32.mxu0 0.0
        %1235 = vmatmul.mubr.f32.gmra.mrb[0].mxu0 %v1109
        %v1236 = vpop.f32.mrb[0].mxu0
        %v1237 = vadd.f32 %v1085, %v1236
        %v1238 = vpop.f32.mrb[0].mxu0
        %1239 = vmatprep.mubr.f32.mxu0 0.0
        %1240 = vmatmul.mubr.f32.gmra.mrb[0].mxu0 %v1112
        %v1241 = vpop.f32.mrb[0].mxu0
        %v1242 = vadd.f32 %v1085, %v1241
        %v1243 = vpop.f32.mrb[0].mxu0
        %1244 = vmatprep.mubr.f32.mxu0 0.0
        %1245 = vmatmul.mubr.f32.gmra.mrb[0].mxu0 %v1115
        %v1246 = vpop.f32.mrb[0].mxu0
        %v1247 = vadd.f32 %v1085, %v1246
        %v1248 = vpop.f32.mrb[0].mxu0
        %1249 = vmatprep.mubr.f32.mxu0 0.0
        %1250 = vmatmul.mubr.f32.gmra.mrb[0].mxu0 %v1118
        %v1251 = vpop.f32.mrb[0].mxu0
        %v1252 = vadd.f32 %v1085, %v1251
        %v1253 = vpop.f32.mrb[0].mxu0
        %1254 = vmatprep.mubr.f32.mxu0 0.0
        %1255 = vmatmul.mubr.f32.gmra.mrb[0].mxu0 %v1121
        %v1256 = vpop.f32.mrb[0].mxu0
        %v1257 = vadd.f32 %v1085, %v1256
        %v1258 = vpop.f32.mrb[0].mxu0
        %1259 = vmatprep.mubr.f32.mxu0 0.0
        %1260 = vmatmul.mubr.f32.gmra.mrb[0].mxu0 %v1124
        %v1261 = vpop.f32.mrb[0].mxu0
        %v1262 = vadd.f32 %v1085, %v1261
        %v1263 = vpop.f32.mrb[0].mxu0
        %1264 = vmatprep.mubr.f32.mxu0 0.0
        %1265 = vmatmul.mubr.f32.gmra.mrb[0].mxu0 %v1127
        %v1266 = vpop.f32.mrb[0].mxu0
        %v1267 = vadd.f32 %v1085, %v1266
        %v1268 = vpop.f32.mrb[0].mxu0
        %1269 = vmatprep.mubr.f32.mxu0 0.0
        %1270 = vmatmul.mubr.f32.gmra.mrb[0].mxu0 %v1130
        %v1271 = vpop.f32.mrb[0].mxu0
        %v1272 = vadd.f32 %v1085, %v1271
        %v1273 = vpop.f32.mrb[0].mxu0
        %1274 = vmatprep.mubr.f32.mxu0 0.0
        %1275 = vmatmul.mubr.f32.gmra.mrb[0].mxu0 %v1133
        %v1276 = vpop.f32.mrb[0].mxu0
        %v1277 = vadd.f32 %v1085, %v1276
        %v1278 = vpop.f32.mrb[0].mxu0
        %1279 = vdwg.mxu0
        %vm1280 = vcmask 64512
        %v1282 = vsel %vm1280, %v864, 0
        %v1285 = vsel %vm1280, %v1002, 0
        %1287 = vmatprep.subr.mxu0 0.0
        %1288 = vmatpush1.xpose.msra.mxu0 %v1285
        %1289 = vmatprep.subr.mxu0 0.0
        %1290 = vmatpush1.xpose.msra.mxu0 0.0
        %1291 = vmatprep.subr.mxu0 0.0
        %1292 = vmatpush1.xpose.msra.mxu0 0.0
        %1293 = vmatprep.subr.mxu0 0.0
        %1294 = vmatpush1.xpose.msra.mxu0 0.0
        %1295 = vmatprep.subr.mxu0 0.0
        %1296 = vmatpush1.xpose.msra.mxu0 0.0
        %1297 = vmatprep.subr.mxu0 0.0
        %1298 = vmatpush1.xpose.msra.mxu0 0.0
        %1299 = vmatprep.subr.mxu0 0.0
        %1300 = vmatpush1.xpose.msra.mxu0 0.0
        %1301 = vmatprep.subr.mxu0 0.0
        %1302 = vmatpush1.xpose.msra.mxu0 0.0
        %1303 = vmatprep.subr.mxu0 0.0
        %1304 = vmatpush1.xpose.msra.mxu0 0.0
        %1305 = vmatprep.subr.mxu0 0.0
        %1306 = vmatpush1.xpose.msra.mxu0 0.0
        %1307 = vmatprep.subr.mxu0 0.0
        %1308 = vmatpush1.xpose.msra.mxu0 0.0
        %1309 = vmatprep.subr.mxu0 0.0
        %1310 = vmatpush1.xpose.msra.mxu0 0.0
        %1311 = vmatprep.subr.mxu0 0.0
        %1312 = vmatpush1.xpose.msra.mxu0 0.0
        %1313 = vmatprep.subr.mxu0 0.0
        %1314 = vmatpush1.xpose.msra.mxu0 0.0
        %1315 = vmatprep.subr.mxu0 0.0
        %1316 = vmatpush1.xpose.msra.mxu0 0.0
        %1317 = vmatprep.subr.mxu0 0.0
        %1318 = vmatpush1.xpose.msra.mxu0 0.0
        %1319 = vmatprep.subr.mxu0 0.0
        %1320 = vmatpush1.xpose.msra.mxu0 0.0
        %1321 = vmatprep.subr.mxu0 0.0
        %1322 = vmatpush1.xpose.msra.mxu0 0.0
        %1323 = vmatprep.subr.mxu0 0.0
        %1324 = vmatpush1.xpose.msra.mxu0 0.0
        %1325 = vmatprep.subr.mxu0 0.0
        %1326 = vmatpush1.xpose.msra.mxu0 0.0
        %1327 = vmatprep.subr.mxu0 0.0
        %1328 = vmatpush1.xpose.msra.mxu0 0.0
        %1329 = vmatprep.subr.mxu0 0.0
        %1330 = vmatpush1.xpose.msra.mxu0 0.0
        %1331 = vmatprep.subr.mxu0 0.0
        %1332 = vmatpush1.xpose.msra.mxu0 0.0
        %1333 = vmatprep.subr.mxu0 0.0
        %1334 = vmatpush1.xpose.msra.mxu0 0.0
        %1335 = vmatprep.subr.mxu0 0.0
        %1336 = vmatpush1.xpose.msra.mxu0 0.0
        %1337 = vmatprep.subr.mxu0 0.0
        %1338 = vmatpush1.xpose.msra.mxu0 0.0
        %1339 = vmatprep.subr.mxu0 0.0
        %1340 = vmatpush1.xpose.msra.mxu0 0.0
        %1341 = vmatprep.subr.mxu0 0.0
        %1342 = vmatpush1.xpose.msra.mxu0 0.0
        %1343 = vmatprep.subr.mxu0 0.0
        %1344 = vmatpush1.xpose.msra.mxu0 0.0
        %1345 = vmatprep.subr.mxu0 0.0
        %1346 = vmatpush1.xpose.msra.mxu0 0.0
        %1347 = vmatprep.subr.mxu0 0.0
        %1348 = vmatpush1.xpose.msra.mxu0 0.0
        %1349 = vmatprep.subr.mxu0 0.0
        %1350 = vmatpush1.xpose.msra.mxu0 0.0
        %1351 = vmatprep.mubr.f32.mxu0 0.0
        %1352 = vmatmul.mubr.f32.gmra.mrb[0].mxu0 %v1282
        %v1353 = vpop.f32.mrb[0].mxu0
        %v1354 = vadd.f32 0.0, %v1353
        %v1355 = vpop.f32.mrb[0].mxu0
        %1356 = vdwg.mxu0
        %v1358 = vsel %vm1280, %v865, 0
        %v1361 = vsel %vm1280, %v1007, 0
        %1363 = vmatprep.subr.mxu0 0.0
        %1364 = vmatpush1.xpose.msra.mxu0 %v1361
        %1365 = vmatprep.subr.mxu0 0.0
        %1366 = vmatpush1.xpose.msra.mxu0 0.0
        %1367 = vmatprep.subr.mxu0 0.0
        %1368 = vmatpush1.xpose.msra.mxu0 0.0
        %1369 = vmatprep.subr.mxu0 0.0
        %1370 = vmatpush1.xpose.msra.mxu0 0.0
        %1371 = vmatprep.subr.mxu0 0.0
        %1372 = vmatpush1.xpose.msra.mxu0 0.0
        %1373 = vmatprep.subr.mxu0 0.0
        %1374 = vmatpush1.xpose.msra.mxu0 0.0
        %1375 = vmatprep.subr.mxu0 0.0
        %1376 = vmatpush1.xpose.msra.mxu0 0.0
        %1377 = vmatprep.subr.mxu0 0.0
        %1378 = vmatpush1.xpose.msra.mxu0 0.0
        %1379 = vmatprep.subr.mxu0 0.0
        %1380 = vmatpush1.xpose.msra.mxu0 0.0
        %1381 = vmatprep.subr.mxu0 0.0
        %1382 = vmatpush1.xpose.msra.mxu0 0.0
        %1383 = vmatprep.subr.mxu0 0.0
        %1384 = vmatpush1.xpose.msra.mxu0 0.0
        %1385 = vmatprep.subr.mxu0 0.0
        %1386 = vmatpush1.xpose.msra.mxu0 0.0
        %1387 = vmatprep.subr.mxu0 0.0
        %1388 = vmatpush1.xpose.msra.mxu0 0.0
        %1389 = vmatprep.subr.mxu0 0.0
        %1390 = vmatpush1.xpose.msra.mxu0 0.0
        %1391 = vmatprep.subr.mxu0 0.0
        %1392 = vmatpush1.xpose.msra.mxu0 0.0
        %1393 = vmatprep.subr.mxu0 0.0
        %1394 = vmatpush1.xpose.msra.mxu0 0.0
        %1395 = vmatprep.subr.mxu0 0.0
        %1396 = vmatpush1.xpose.msra.mxu0 0.0
        %1397 = vmatprep.subr.mxu0 0.0
        %1398 = vmatpush1.xpose.msra.mxu0 0.0
        %1399 = vmatprep.subr.mxu0 0.0
        %1400 = vmatpush1.xpose.msra.mxu0 0.0
        %1401 = vmatprep.subr.mxu0 0.0
        %1402 = vmatpush1.xpose.msra.mxu0 0.0
        %1403 = vmatprep.subr.mxu0 0.0
        %1404 = vmatpush1.xpose.msra.mxu0 0.0
        %1405 = vmatprep.subr.mxu0 0.0
        %1406 = vmatpush1.xpose.msra.mxu0 0.0
        %1407 = vmatprep.subr.mxu0 0.0
        %1408 = vmatpush1.xpose.msra.mxu0 0.0
        %1409 = vmatprep.subr.mxu0 0.0
        %1410 = vmatpush1.xpose.msra.mxu0 0.0
        %1411 = vmatprep.subr.mxu0 0.0
        %1412 = vmatpush1.xpose.msra.mxu0 0.0
        %1413 = vmatprep.subr.mxu0 0.0
        %1414 = vmatpush1.xpose.msra.mxu0 0.0
        %1415 = vmatprep.subr.mxu0 0.0
        %1416 = vmatpush1.xpose.msra.mxu0 0.0
        %1417 = vmatprep.subr.mxu0 0.0
        %1418 = vmatpush1.xpose.msra.mxu0 0.0
        %1419 = vmatprep.subr.mxu0 0.0
        %1420 = vmatpush1.xpose.msra.mxu0 0.0
        %1421 = vmatprep.subr.mxu0 0.0
        %1422 = vmatpush1.xpose.msra.mxu0 0.0
        %1423 = vmatprep.subr.mxu0 0.0
        %1424 = vmatpush1.xpose.msra.mxu0 0.0
        %1425 = vmatprep.subr.mxu0 0.0
        %1426 = vmatpush1.xpose.msra.mxu0 0.0
        %1427 = vmatprep.mubr.f32.mxu0 0.0
        %1428 = vmatmul.mubr.f32.gmra.mrb[0].mxu0 %v1358
        %v1429 = vpop.f32.mrb[0].mxu0
        %v1430 = vadd.f32 0.0, %v1429
        %v1431 = vpop.f32.mrb[0].mxu0
        %1432 = vdwg.mxu0
        %v1434 = vsel %vm1280, %v866, 0
        %v1437 = vsel %vm1280, %v1012, 0
        %1439 = vmatprep.subr.mxu0 0.0
        %1440 = vmatpush1.xpose.msra.mxu0 %v1437
        %1441 = vmatprep.subr.mxu0 0.0
        %1442 = vmatpush1.xpose.msra.mxu0 0.0
        %1443 = vmatprep.subr.mxu0 0.0
        %1444 = vmatpush1.xpose.msra.mxu0 0.0
        %1445 = vmatprep.subr.mxu0 0.0
        %1446 = vmatpush1.xpose.msra.mxu0 0.0
        %1447 = vmatprep.subr.mxu0 0.0
        %1448 = vmatpush1.xpose.msra.mxu0 0.0
        %1449 = vmatprep.subr.mxu0 0.0
        %1450 = vmatpush1.xpose.msra.mxu0 0.0
        %1451 = vmatprep.subr.mxu0 0.0
        %1452 = vmatpush1.xpose.msra.mxu0 0.0
        %1453 = vmatprep.subr.mxu0 0.0
        %1454 = vmatpush1.xpose.msra.mxu0 0.0
        %1455 = vmatprep.subr.mxu0 0.0
        %1456 = vmatpush1.xpose.msra.mxu0 0.0
        %1457 = vmatprep.subr.mxu0 0.0
        %1458 = vmatpush1.xpose.msra.mxu0 0.0
        %1459 = vmatprep.subr.mxu0 0.0
        %1460 = vmatpush1.xpose.msra.mxu0 0.0
        %1461 = vmatprep.subr.mxu0 0.0
        %1462 = vmatpush1.xpose.msra.mxu0 0.0
        %1463 = vmatprep.subr.mxu0 0.0
        %1464 = vmatpush1.xpose.msra.mxu0 0.0
        %1465 = vmatprep.subr.mxu0 0.0
        %1466 = vmatpush1.xpose.msra.mxu0 0.0
        %1467 = vmatprep.subr.mxu0 0.0
        %1468 = vmatpush1.xpose.msra.mxu0 0.0
        %1469 = vmatprep.subr.mxu0 0.0
        %1470 = vmatpush1.xpose.msra.mxu0 0.0
        %1471 = vmatprep.subr.mxu0 0.0
        %1472 = vmatpush1.xpose.msra.mxu0 0.0
        %1473 = vmatprep.subr.mxu0 0.0
        %1474 = vmatpush1.xpose.msra.mxu0 0.0
        %1475 = vmatprep.subr.mxu0 0.0
        %1476 = vmatpush1.xpose.msra.mxu0 0.0
        %1477 = vmatprep.subr.mxu0 0.0
        %1478 = vmatpush1.xpose.msra.mxu0 0.0
        %1479 = vmatprep.subr.mxu0 0.0
        %1480 = vmatpush1.xpose.msra.mxu0 0.0
        %1481 = vmatprep.subr.mxu0 0.0
        %1482 = vmatpush1.xpose.msra.mxu0 0.0
        %1483 = vmatprep.subr.mxu0 0.0
        %1484 = vmatpush1.xpose.msra.mxu0 0.0
        %1485 = vmatprep.subr.mxu0 0.0
        %1486 = vmatpush1.xpose.msra.mxu0 0.0
        %1487 = vmatprep.subr.mxu0 0.0
        %1488 = vmatpush1.xpose.msra.mxu0 0.0
        %1489 = vmatprep.subr.mxu0 0.0
        %1490 = vmatpush1.xpose.msra.mxu0 0.0
        %1491 = vmatprep.subr.mxu0 0.0
        %1492 = vmatpush1.xpose.msra.mxu0 0.0
        %1493 = vmatprep.subr.mxu0 0.0
        %1494 = vmatpush1.xpose.msra.mxu0 0.0
        %1495 = vmatprep.subr.mxu0 0.0
        %1496 = vmatpush1.xpose.msra.mxu0 0.0
        %1497 = vmatprep.subr.mxu0 0.0
        %1498 = vmatpush1.xpose.msra.mxu0 0.0
        %1499 = vmatprep.subr.mxu0 0.0
        %1500 = vmatpush1.xpose.msra.mxu0 0.0
        %1501 = vmatprep.subr.mxu0 0.0
        %1502 = vmatpush1.xpose.msra.mxu0 0.0
        %1503 = vmatprep.mubr.f32.mxu0 0.0
        %1504 = vmatmul.mubr.f32.gmra.mrb[0].mxu0 %v1434
        %v1505 = vpop.f32.mrb[0].mxu0
        %v1506 = vadd.f32 0.0, %v1505
        %v1507 = vpop.f32.mrb[0].mxu0
        %1508 = vdwg.mxu0
        %v1510 = vsel %vm1280, %v867, 0
        %v1513 = vsel %vm1280, %v1017, 0
        %1515 = vmatprep.subr.mxu0 0.0
        %1516 = vmatpush1.xpose.msra.mxu0 %v1513
        %1517 = vmatprep.subr.mxu0 0.0
        %1518 = vmatpush1.xpose.msra.mxu0 0.0
        %1519 = vmatprep.subr.mxu0 0.0
        %1520 = vmatpush1.xpose.msra.mxu0 0.0
        %1521 = vmatprep.subr.mxu0 0.0
        %1522 = vmatpush1.xpose.msra.mxu0 0.0
        %1523 = vmatprep.subr.mxu0 0.0
        %1524 = vmatpush1.xpose.msra.mxu0 0.0
        %1525 = vmatprep.subr.mxu0 0.0
        %1526 = vmatpush1.xpose.msra.mxu0 0.0
        %1527 = vmatprep.subr.mxu0 0.0
        %1528 = vmatpush1.xpose.msra.mxu0 0.0
        %1529 = vmatprep.subr.mxu0 0.0
        %1530 = vmatpush1.xpose.msra.mxu0 0.0
        %1531 = vmatprep.subr.mxu0 0.0
        %1532 = vmatpush1.xpose.msra.mxu0 0.0
        %1533 = vmatprep.subr.mxu0 0.0
        %1534 = vmatpush1.xpose.msra.mxu0 0.0
        %1535 = vmatprep.subr.mxu0 0.0
        %1536 = vmatpush1.xpose.msra.mxu0 0.0
        %1537 = vmatprep.subr.mxu0 0.0
        %1538 = vmatpush1.xpose.msra.mxu0 0.0
        %1539 = vmatprep.subr.mxu0 0.0
        %1540 = vmatpush1.xpose.msra.mxu0 0.0
        %1541 = vmatprep.subr.mxu0 0.0
        %1542 = vmatpush1.xpose.msra.mxu0 0.0
        %1543 = vmatprep.subr.mxu0 0.0
        %1544 = vmatpush1.xpose.msra.mxu0 0.0
        %1545 = vmatprep.subr.mxu0 0.0
        %1546 = vmatpush1.xpose.msra.mxu0 0.0
        %1547 = vmatprep.subr.mxu0 0.0
        %1548 = vmatpush1.xpose.msra.mxu0 0.0
        %1549 = vmatprep.subr.mxu0 0.0
        %1550 = vmatpush1.xpose.msra.mxu0 0.0
        %1551 = vmatprep.subr.mxu0 0.0
        %1552 = vmatpush1.xpose.msra.mxu0 0.0
        %1553 = vmatprep.subr.mxu0 0.0
        %1554 = vmatpush1.xpose.msra.mxu0 0.0
        %1555 = vmatprep.subr.mxu0 0.0
        %1556 = vmatpush1.xpose.msra.mxu0 0.0
        %1557 = vmatprep.subr.mxu0 0.0
        %1558 = vmatpush1.xpose.msra.mxu0 0.0
        %1559 = vmatprep.subr.mxu0 0.0
        %1560 = vmatpush1.xpose.msra.mxu0 0.0
        %1561 = vmatprep.subr.mxu0 0.0
        %1562 = vmatpush1.xpose.msra.mxu0 0.0
        %1563 = vmatprep.subr.mxu0 0.0
        %1564 = vmatpush1.xpose.msra.mxu0 0.0
        %1565 = vmatprep.subr.mxu0 0.0
        %1566 = vmatpush1.xpose.msra.mxu0 0.0
        %1567 = vmatprep.subr.mxu0 0.0
        %1568 = vmatpush1.xpose.msra.mxu0 0.0
        %1569 = vmatprep.subr.mxu0 0.0
        %1570 = vmatpush1.xpose.msra.mxu0 0.0
        %1571 = vmatprep.subr.mxu0 0.0
        %1572 = vmatpush1.xpose.msra.mxu0 0.0
        %1573 = vmatprep.subr.mxu0 0.0
        %1574 = vmatpush1.xpose.msra.mxu0 0.0
        %1575 = vmatprep.subr.mxu0 0.0
        %1576 = vmatpush1.xpose.msra.mxu0 0.0
        %1577 = vmatprep.subr.mxu0 0.0
        %1578 = vmatpush1.xpose.msra.mxu0 0.0
        %1579 = vmatprep.mubr.f32.mxu0 0.0
        %1580 = vmatmul.mubr.f32.gmra.mrb[0].mxu0 %v1510
        %v1581 = vpop.f32.mrb[0].mxu0
        %v1582 = vadd.f32 0.0, %v1581
        %v1583 = vpop.f32.mrb[0].mxu0
        %1584 = vdwg.mxu0
        %v1586 = vsel %vm1280, %v868, 0
        %v1589 = vsel %vm1280, %v1022, 0
        %1591 = vmatprep.subr.mxu0 0.0
        %1592 = vmatpush1.xpose.msra.mxu0 %v1589
        %1593 = vmatprep.subr.mxu0 0.0
        %1594 = vmatpush1.xpose.msra.mxu0 0.0
        %1595 = vmatprep.subr.mxu0 0.0
        %1596 = vmatpush1.xpose.msra.mxu0 0.0
        %1597 = vmatprep.subr.mxu0 0.0
        %1598 = vmatpush1.xpose.msra.mxu0 0.0
        %1599 = vmatprep.subr.mxu0 0.0
        %1600 = vmatpush1.xpose.msra.mxu0 0.0
        %1601 = vmatprep.subr.mxu0 0.0
        %1602 = vmatpush1.xpose.msra.mxu0 0.0
        %1603 = vmatprep.subr.mxu0 0.0
        %1604 = vmatpush1.xpose.msra.mxu0 0.0
        %1605 = vmatprep.subr.mxu0 0.0
        %1606 = vmatpush1.xpose.msra.mxu0 0.0
        %1607 = vmatprep.subr.mxu0 0.0
        %1608 = vmatpush1.xpose.msra.mxu0 0.0
        %1609 = vmatprep.subr.mxu0 0.0
        %1610 = vmatpush1.xpose.msra.mxu0 0.0
        %1611 = vmatprep.subr.mxu0 0.0
        %1612 = vmatpush1.xpose.msra.mxu0 0.0
        %1613 = vmatprep.subr.mxu0 0.0
        %1614 = vmatpush1.xpose.msra.mxu0 0.0
        %1615 = vmatprep.subr.mxu0 0.0
        %1616 = vmatpush1.xpose.msra.mxu0 0.0
        %1617 = vmatprep.subr.mxu0 0.0
        %1618 = vmatpush1.xpose.msra.mxu0 0.0
        %1619 = vmatprep.subr.mxu0 0.0
        %1620 = vmatpush1.xpose.msra.mxu0 0.0
        %1621 = vmatprep.subr.mxu0 0.0
        %1622 = vmatpush1.xpose.msra.mxu0 0.0
        %1623 = vmatprep.subr.mxu0 0.0
        %1624 = vmatpush1.xpose.msra.mxu0 0.0
        %1625 = vmatprep.subr.mxu0 0.0
        %1626 = vmatpush1.xpose.msra.mxu0 0.0
        %1627 = vmatprep.subr.mxu0 0.0
        %1628 = vmatpush1.xpose.msra.mxu0 0.0
        %1629 = vmatprep.subr.mxu0 0.0
        %1630 = vmatpush1.xpose.msra.mxu0 0.0
        %1631 = vmatprep.subr.mxu0 0.0
        %1632 = vmatpush1.xpose.msra.mxu0 0.0
        %1633 = vmatprep.subr.mxu0 0.0
        %1634 = vmatpush1.xpose.msra.mxu0 0.0
        %1635 = vmatprep.subr.mxu0 0.0
        %1636 = vmatpush1.xpose.msra.mxu0 0.0
        %1637 = vmatprep.subr.mxu0 0.0
        %1638 = vmatpush1.xpose.msra.mxu0 0.0
        %1639 = vmatprep.subr.mxu0 0.0
        %1640 = vmatpush1.xpose.msra.mxu0 0.0
        %1641 = vmatprep.subr.mxu0 0.0
        %1642 = vmatpush1.xpose.msra.mxu0 0.0
        %1643 = vmatprep.subr.mxu0 0.0
        %1644 = vmatpush1.xpose.msra.mxu0 0.0
        %1645 = vmatprep.subr.mxu0 0.0
        %1646 = vmatpush1.xpose.msra.mxu0 0.0
        %1647 = vmatprep.subr.mxu0 0.0
        %1648 = vmatpush1.xpose.msra.mxu0 0.0
        %1649 = vmatprep.subr.mxu0 0.0
        %1650 = vmatpush1.xpose.msra.mxu0 0.0
        %1651 = vmatprep.subr.mxu0 0.0
        %1652 = vmatpush1.xpose.msra.mxu0 0.0
        %1653 = vmatprep.subr.mxu0 0.0
        %1654 = vmatpush1.xpose.msra.mxu0 0.0
        %1655 = vmatprep.mubr.f32.mxu0 0.0
        %1656 = vmatmul.mubr.f32.gmra.mrb[0].mxu0 %v1586
        %v1657 = vpop.f32.mrb[0].mxu0
        %v1658 = vadd.f32 0.0, %v1657
        %v1659 = vpop.f32.mrb[0].mxu0
        %1660 = vdwg.mxu0
        %v1662 = vsel %vm1280, %v869, 0
        %v1665 = vsel %vm1280, %v1027, 0
        %1667 = vmatprep.subr.mxu0 0.0
        %1668 = vmatpush1.xpose.msra.mxu0 %v1665
        %1669 = vmatprep.subr.mxu0 0.0
        %1670 = vmatpush1.xpose.msra.mxu0 0.0
        %1671 = vmatprep.subr.mxu0 0.0
        %1672 = vmatpush1.xpose.msra.mxu0 0.0
        %1673 = vmatprep.subr.mxu0 0.0
        %1674 = vmatpush1.xpose.msra.mxu0 0.0
        %1675 = vmatprep.subr.mxu0 0.0
        %1676 = vmatpush1.xpose.msra.mxu0 0.0
        %1677 = vmatprep.subr.mxu0 0.0
        %1678 = vmatpush1.xpose.msra.mxu0 0.0
        %1679 = vmatprep.subr.mxu0 0.0
        %1680 = vmatpush1.xpose.msra.mxu0 0.0
        %1681 = vmatprep.subr.mxu0 0.0
        %1682 = vmatpush1.xpose.msra.mxu0 0.0
        %1683 = vmatprep.subr.mxu0 0.0
        %1684 = vmatpush1.xpose.msra.mxu0 0.0
        %1685 = vmatprep.subr.mxu0 0.0
        %1686 = vmatpush1.xpose.msra.mxu0 0.0
        %1687 = vmatprep.subr.mxu0 0.0
        %1688 = vmatpush1.xpose.msra.mxu0 0.0
        %1689 = vmatprep.subr.mxu0 0.0
        %1690 = vmatpush1.xpose.msra.mxu0 0.0
        %1691 = vmatprep.subr.mxu0 0.0
        %1692 = vmatpush1.xpose.msra.mxu0 0.0
        %1693 = vmatprep.subr.mxu0 0.0
        %1694 = vmatpush1.xpose.msra.mxu0 0.0
        %1695 = vmatprep.subr.mxu0 0.0
        %1696 = vmatpush1.xpose.msra.mxu0 0.0
        %1697 = vmatprep.subr.mxu0 0.0
        %1698 = vmatpush1.xpose.msra.mxu0 0.0
        %1699 = vmatprep.subr.mxu0 0.0
        %1700 = vmatpush1.xpose.msra.mxu0 0.0
        %1701 = vmatprep.subr.mxu0 0.0
        %1702 = vmatpush1.xpose.msra.mxu0 0.0
        %1703 = vmatprep.subr.mxu0 0.0
        %1704 = vmatpush1.xpose.msra.mxu0 0.0
        %1705 = vmatprep.subr.mxu0 0.0
        %1706 = vmatpush1.xpose.msra.mxu0 0.0
        %1707 = vmatprep.subr.mxu0 0.0
        %1708 = vmatpush1.xpose.msra.mxu0 0.0
        %1709 = vmatprep.subr.mxu0 0.0
        %1710 = vmatpush1.xpose.msra.mxu0 0.0
        %1711 = vmatprep.subr.mxu0 0.0
        %1712 = vmatpush1.xpose.msra.mxu0 0.0
        %1713 = vmatprep.subr.mxu0 0.0
        %1714 = vmatpush1.xpose.msra.mxu0 0.0
        %1715 = vmatprep.subr.mxu0 0.0
        %1716 = vmatpush1.xpose.msra.mxu0 0.0
        %1717 = vmatprep.subr.mxu0 0.0
        %1718 = vmatpush1.xpose.msra.mxu0 0.0
        %1719 = vmatprep.subr.mxu0 0.0
        %1720 = vmatpush1.xpose.msra.mxu0 0.0
        %1721 = vmatprep.subr.mxu0 0.0
        %1722 = vmatpush1.xpose.msra.mxu0 0.0
        %1723 = vmatprep.subr.mxu0 0.0
        %1724 = vmatpush1.xpose.msra.mxu0 0.0
        %1725 = vmatprep.subr.mxu0 0.0
        %1726 = vmatpush1.xpose.msra.mxu0 0.0
        %1727 = vmatprep.subr.mxu0 0.0
        %1728 = vmatpush1.xpose.msra.mxu0 0.0
        %1729 = vmatprep.subr.mxu0 0.0
        %1730 = vmatpush1.xpose.msra.mxu0 0.0
        %1731 = vmatprep.mubr.f32.mxu0 0.0
        %1732 = vmatmul.mubr.f32.gmra.mrb[0].mxu0 %v1662
        %v1733 = vpop.f32.mrb[0].mxu0
        %v1734 = vadd.f32 0.0, %v1733
        %v1735 = vpop.f32.mrb[0].mxu0
        %1736 = vdwg.mxu0
        %v1738 = vsel %vm1280, %v870, 0
        %v1741 = vsel %vm1280, %v1032, 0
        %1743 = vmatprep.subr.mxu0 0.0
        %1744 = vmatpush1.xpose.msra.mxu0 %v1741
        %1745 = vmatprep.subr.mxu0 0.0
        %1746 = vmatpush1.xpose.msra.mxu0 0.0
        %1747 = vmatprep.subr.mxu0 0.0
        %1748 = vmatpush1.xpose.msra.mxu0 0.0
        %1749 = vmatprep.subr.mxu0 0.0
        %1750 = vmatpush1.xpose.msra.mxu0 0.0
        %1751 = vmatprep.subr.mxu0 0.0
        %1752 = vmatpush1.xpose.msra.mxu0 0.0
        %1753 = vmatprep.subr.mxu0 0.0
        %1754 = vmatpush1.xpose.msra.mxu0 0.0
        %1755 = vmatprep.subr.mxu0 0.0
        %1756 = vmatpush1.xpose.msra.mxu0 0.0
        %1757 = vmatprep.subr.mxu0 0.0
        %1758 = vmatpush1.xpose.msra.mxu0 0.0
        %1759 = vmatprep.subr.mxu0 0.0
        %1760 = vmatpush1.xpose.msra.mxu0 0.0
        %1761 = vmatprep.subr.mxu0 0.0
        %1762 = vmatpush1.xpose.msra.mxu0 0.0
        %1763 = vmatprep.subr.mxu0 0.0
        %1764 = vmatpush1.xpose.msra.mxu0 0.0
        %1765 = vmatprep.subr.mxu0 0.0
        %1766 = vmatpush1.xpose.msra.mxu0 0.0
        %1767 = vmatprep.subr.mxu0 0.0
        %1768 = vmatpush1.xpose.msra.mxu0 0.0
        %1769 = vmatprep.subr.mxu0 0.0
        %1770 = vmatpush1.xpose.msra.mxu0 0.0
        %1771 = vmatprep.subr.mxu0 0.0
        %1772 = vmatpush1.xpose.msra.mxu0 0.0
        %1773 = vmatprep.subr.mxu0 0.0
        %1774 = vmatpush1.xpose.msra.mxu0 0.0
        %1775 = vmatprep.subr.mxu0 0.0
        %1776 = vmatpush1.xpose.msra.mxu0 0.0
        %1777 = vmatprep.subr.mxu0 0.0
        %1778 = vmatpush1.xpose.msra.mxu0 0.0
        %1779 = vmatprep.subr.mxu0 0.0
        %1780 = vmatpush1.xpose.msra.mxu0 0.0
        %1781 = vmatprep.subr.mxu0 0.0
        %1782 = vmatpush1.xpose.msra.mxu0 0.0
        %1783 = vmatprep.subr.mxu0 0.0
        %1784 = vmatpush1.xpose.msra.mxu0 0.0
        %1785 = vmatprep.subr.mxu0 0.0
        %1786 = vmatpush1.xpose.msra.mxu0 0.0
        %1787 = vmatprep.subr.mxu0 0.0
        %1788 = vmatpush1.xpose.msra.mxu0 0.0
        %1789 = vmatprep.subr.mxu0 0.0
        %1790 = vmatpush1.xpose.msra.mxu0 0.0
        %1791 = vmatprep.subr.mxu0 0.0
        %1792 = vmatpush1.xpose.msra.mxu0 0.0
        %1793 = vmatprep.subr.mxu0 0.0
        %1794 = vmatpush1.xpose.msra.mxu0 0.0
        %1795 = vmatprep.subr.mxu0 0.0
        %1796 = vmatpush1.xpose.msra.mxu0 0.0
        %1797 = vmatprep.subr.mxu0 0.0
        %1798 = vmatpush1.xpose.msra.mxu0 0.0
        %1799 = vmatprep.subr.mxu0 0.0
        %1800 = vmatpush1.xpose.msra.mxu0 0.0
        %1801 = vmatprep.subr.mxu0 0.0
        %1802 = vmatpush1.xpose.msra.mxu0 0.0
        %1803 = vmatprep.subr.mxu0 0.0
        %1804 = vmatpush1.xpose.msra.mxu0 0.0
        %1805 = vmatprep.subr.mxu0 0.0
        %1806 = vmatpush1.xpose.msra.mxu0 0.0
        %1807 = vmatprep.mubr.f32.mxu0 0.0
        %1808 = vmatmul.mubr.f32.gmra.mrb[0].mxu0 %v1738
        %v1809 = vpop.f32.mrb[0].mxu0
        %v1810 = vadd.f32 0.0, %v1809
        %v1811 = vpop.f32.mrb[0].mxu0
        %1812 = vdwg.mxu0
        %v1814 = vsel %vm1280, %v871, 0
        %v1817 = vsel %vm1280, %v1037, 0
        %1819 = vmatprep.subr.mxu0 0.0
        %1820 = vmatpush1.xpose.msra.mxu0 %v1817
        %1821 = vmatprep.subr.mxu0 0.0
        %1822 = vmatpush1.xpose.msra.mxu0 0.0
        %1823 = vmatprep.subr.mxu0 0.0
        %1824 = vmatpush1.xpose.msra.mxu0 0.0
        %1825 = vmatprep.subr.mxu0 0.0
        %1826 = vmatpush1.xpose.msra.mxu0 0.0
        %1827 = vmatprep.subr.mxu0 0.0
        %1828 = vmatpush1.xpose.msra.mxu0 0.0
        %1829 = vmatprep.subr.mxu0 0.0
        %1830 = vmatpush1.xpose.msra.mxu0 0.0
        %1831 = vmatprep.subr.mxu0 0.0
        %1832 = vmatpush1.xpose.msra.mxu0 0.0
        %1833 = vmatprep.subr.mxu0 0.0
        %1834 = vmatpush1.xpose.msra.mxu0 0.0
        %1835 = vmatprep.subr.mxu0 0.0
        %1836 = vmatpush1.xpose.msra.mxu0 0.0
        %1837 = vmatprep.subr.mxu0 0.0
        %1838 = vmatpush1.xpose.msra.mxu0 0.0
        %1839 = vmatprep.subr.mxu0 0.0
        %1840 = vmatpush1.xpose.msra.mxu0 0.0
        %1841 = vmatprep.subr.mxu0 0.0
        %1842 = vmatpush1.xpose.msra.mxu0 0.0
        %1843 = vmatprep.subr.mxu0 0.0
        %1844 = vmatpush1.xpose.msra.mxu0 0.0
        %1845 = vmatprep.subr.mxu0 0.0
        %1846 = vmatpush1.xpose.msra.mxu0 0.0
        %1847 = vmatprep.subr.mxu0 0.0
        %1848 = vmatpush1.xpose.msra.mxu0 0.0
        %1849 = vmatprep.subr.mxu0 0.0
        %1850 = vmatpush1.xpose.msra.mxu0 0.0
        %1851 = vmatprep.subr.mxu0 0.0
        %1852 = vmatpush1.xpose.msra.mxu0 0.0
        %1853 = vmatprep.subr.mxu0 0.0
        %1854 = vmatpush1.xpose.msra.mxu0 0.0
        %1855 = vmatprep.subr.mxu0 0.0
        %1856 = vmatpush1.xpose.msra.mxu0 0.0
        %1857 = vmatprep.subr.mxu0 0.0
        %1858 = vmatpush1.xpose.msra.mxu0 0.0
        %1859 = vmatprep.subr.mxu0 0.0
        %1860 = vmatpush1.xpose.msra.mxu0 0.0
        %1861 = vmatprep.subr.mxu0 0.0
        %1862 = vmatpush1.xpose.msra.mxu0 0.0
        %1863 = vmatprep.subr.mxu0 0.0
        %1864 = vmatpush1.xpose.msra.mxu0 0.0
        %1865 = vmatprep.subr.mxu0 0.0
        %1866 = vmatpush1.xpose.msra.mxu0 0.0
        %1867 = vmatprep.subr.mxu0 0.0
        %1868 = vmatpush1.xpose.msra.mxu0 0.0
        %1869 = vmatprep.subr.mxu0 0.0
        %1870 = vmatpush1.xpose.msra.mxu0 0.0
        %1871 = vmatprep.subr.mxu0 0.0
        %1872 = vmatpush1.xpose.msra.mxu0 0.0
        %1873 = vmatprep.subr.mxu0 0.0
        %1874 = vmatpush1.xpose.msra.mxu0 0.0
        %1875 = vmatprep.subr.mxu0 0.0
        %1876 = vmatpush1.xpose.msra.mxu0 0.0
        %1877 = vmatprep.subr.mxu0 0.0
        %1878 = vmatpush1.xpose.msra.mxu0 0.0
        %1879 = vmatprep.subr.mxu0 0.0
        %1880 = vmatpush1.xpose.msra.mxu0 0.0
        %1881 = vmatprep.subr.mxu0 0.0
        %1882 = vmatpush1.xpose.msra.mxu0 0.0
        %1883 = vmatprep.mubr.f32.mxu0 0.0
        %1884 = vmatmul.mubr.f32.gmra.mrb[0].mxu0 %v1814
        %v1885 = vpop.f32.mrb[0].mxu0
        %v1886 = vadd.f32 0.0, %v1885
        %v1887 = vpop.f32.mrb[0].mxu0
        %1888 = vdwg.mxu0
        %v1890 = vsel %vm1280, %v872, 0
        %v1893 = vsel %vm1280, %v1042, 0
        %1895 = vmatprep.subr.mxu0 0.0
        %1896 = vmatpush1.xpose.msra.mxu0 %v1893
        %1897 = vmatprep.subr.mxu0 0.0
        %1898 = vmatpush1.xpose.msra.mxu0 0.0
        %1899 = vmatprep.subr.mxu0 0.0
        %1900 = vmatpush1.xpose.msra.mxu0 0.0
        %1901 = vmatprep.subr.mxu0 0.0
        %1902 = vmatpush1.xpose.msra.mxu0 0.0
        %1903 = vmatprep.subr.mxu0 0.0
        %1904 = vmatpush1.xpose.msra.mxu0 0.0
        %1905 = vmatprep.subr.mxu0 0.0
        %1906 = vmatpush1.xpose.msra.mxu0 0.0
        %1907 = vmatprep.subr.mxu0 0.0
        %1908 = vmatpush1.xpose.msra.mxu0 0.0
        %1909 = vmatprep.subr.mxu0 0.0
        %1910 = vmatpush1.xpose.msra.mxu0 0.0
        %1911 = vmatprep.subr.mxu0 0.0
        %1912 = vmatpush1.xpose.msra.mxu0 0.0
        %1913 = vmatprep.subr.mxu0 0.0
        %1914 = vmatpush1.xpose.msra.mxu0 0.0
        %1915 = vmatprep.subr.mxu0 0.0
        %1916 = vmatpush1.xpose.msra.mxu0 0.0
        %1917 = vmatprep.subr.mxu0 0.0
        %1918 = vmatpush1.xpose.msra.mxu0 0.0
        %1919 = vmatprep.subr.mxu0 0.0
        %1920 = vmatpush1.xpose.msra.mxu0 0.0
        %1921 = vmatprep.subr.mxu0 0.0
        %1922 = vmatpush1.xpose.msra.mxu0 0.0
        %1923 = vmatprep.subr.mxu0 0.0
        %1924 = vmatpush1.xpose.msra.mxu0 0.0
        %1925 = vmatprep.subr.mxu0 0.0
        %1926 = vmatpush1.xpose.msra.mxu0 0.0
        %1927 = vmatprep.subr.mxu0 0.0
        %1928 = vmatpush1.xpose.msra.mxu0 0.0
        %1929 = vmatprep.subr.mxu0 0.0
        %1930 = vmatpush1.xpose.msra.mxu0 0.0
        %1931 = vmatprep.subr.mxu0 0.0
        %1932 = vmatpush1.xpose.msra.mxu0 0.0
        %1933 = vmatprep.subr.mxu0 0.0
        %1934 = vmatpush1.xpose.msra.mxu0 0.0
        %1935 = vmatprep.subr.mxu0 0.0
        %1936 = vmatpush1.xpose.msra.mxu0 0.0
        %1937 = vmatprep.subr.mxu0 0.0
        %1938 = vmatpush1.xpose.msra.mxu0 0.0
        %1939 = vmatprep.subr.mxu0 0.0
        %1940 = vmatpush1.xpose.msra.mxu0 0.0
        %1941 = vmatprep.subr.mxu0 0.0
        %1942 = vmatpush1.xpose.msra.mxu0 0.0
        %1943 = vmatprep.subr.mxu0 0.0
        %1944 = vmatpush1.xpose.msra.mxu0 0.0
        %1945 = vmatprep.subr.mxu0 0.0
        %1946 = vmatpush1.xpose.msra.mxu0 0.0
        %1947 = vmatprep.subr.mxu0 0.0
        %1948 = vmatpush1.xpose.msra.mxu0 0.0
        %1949 = vmatprep.subr.mxu0 0.0
        %1950 = vmatpush1.xpose.msra.mxu0 0.0
        %1951 = vmatprep.subr.mxu0 0.0
        %1952 = vmatpush1.xpose.msra.mxu0 0.0
        %1953 = vmatprep.subr.mxu0 0.0
        %1954 = vmatpush1.xpose.msra.mxu0 0.0
        %1955 = vmatprep.subr.mxu0 0.0
        %1956 = vmatpush1.xpose.msra.mxu0 0.0
        %1957 = vmatprep.subr.mxu0 0.0
        %1958 = vmatpush1.xpose.msra.mxu0 0.0
        %1959 = vmatprep.mubr.f32.mxu0 0.0
        %1960 = vmatmul.mubr.f32.gmra.mrb[0].mxu0 %v1890
        %v1961 = vpop.f32.mrb[0].mxu0
        %v1962 = vadd.f32 0.0, %v1961
        %v1963 = vpop.f32.mrb[0].mxu0
        %1964 = vdwg.mxu0
        %v1966 = vsel %vm1280, %v873, 0
        %v1969 = vsel %vm1280, %v1047, 0
        %1971 = vmatprep.subr.mxu0 0.0
        %1972 = vmatpush1.xpose.msra.mxu0 %v1969
        %1973 = vmatprep.subr.mxu0 0.0
        %1974 = vmatpush1.xpose.msra.mxu0 0.0
        %1975 = vmatprep.subr.mxu0 0.0
        %1976 = vmatpush1.xpose.msra.mxu0 0.0
        %1977 = vmatprep.subr.mxu0 0.0
        %1978 = vmatpush1.xpose.msra.mxu0 0.0
        %1979 = vmatprep.subr.mxu0 0.0
        %1980 = vmatpush1.xpose.msra.mxu0 0.0
        %1981 = vmatprep.subr.mxu0 0.0
        %1982 = vmatpush1.xpose.msra.mxu0 0.0
        %1983 = vmatprep.subr.mxu0 0.0
        %1984 = vmatpush1.xpose.msra.mxu0 0.0
        %1985 = vmatprep.subr.mxu0 0.0
        %1986 = vmatpush1.xpose.msra.mxu0 0.0
        %1987 = vmatprep.subr.mxu0 0.0
        %1988 = vmatpush1.xpose.msra.mxu0 0.0
        %1989 = vmatprep.subr.mxu0 0.0
        %1990 = vmatpush1.xpose.msra.mxu0 0.0
        %1991 = vmatprep.subr.mxu0 0.0
        %1992 = vmatpush1.xpose.msra.mxu0 0.0
        %1993 = vmatprep.subr.mxu0 0.0
        %1994 = vmatpush1.xpose.msra.mxu0 0.0
        %1995 = vmatprep.subr.mxu0 0.0
        %1996 = vmatpush1.xpose.msra.mxu0 0.0
        %1997 = vmatprep.subr.mxu0 0.0
        %1998 = vmatpush1.xpose.msra.mxu0 0.0
        %1999 = vmatprep.subr.mxu0 0.0
        %2000 = vmatpush1.xpose.msra.mxu0 0.0
        %2001 = vmatprep.subr.mxu0 0.0
        %2002 = vmatpush1.xpose.msra.mxu0 0.0
        %2003 = vmatprep.subr.mxu0 0.0
        %2004 = vmatpush1.xpose.msra.mxu0 0.0
        %2005 = vmatprep.subr.mxu0 0.0
        %2006 = vmatpush1.xpose.msra.mxu0 0.0
        %2007 = vmatprep.subr.mxu0 0.0
        %2008 = vmatpush1.xpose.msra.mxu0 0.0
        %2009 = vmatprep.subr.mxu0 0.0
        %2010 = vmatpush1.xpose.msra.mxu0 0.0
        %2011 = vmatprep.subr.mxu0 0.0
        %2012 = vmatpush1.xpose.msra.mxu0 0.0
        %2013 = vmatprep.subr.mxu0 0.0
        %2014 = vmatpush1.xpose.msra.mxu0 0.0
        %2015 = vmatprep.subr.mxu0 0.0
        %2016 = vmatpush1.xpose.msra.mxu0 0.0
        %2017 = vmatprep.subr.mxu0 0.0
        %2018 = vmatpush1.xpose.msra.mxu0 0.0
        %2019 = vmatprep.subr.mxu0 0.0
        %2020 = vmatpush1.xpose.msra.mxu0 0.0
        %2021 = vmatprep.subr.mxu0 0.0
        %2022 = vmatpush1.xpose.msra.mxu0 0.0
        %2023 = vmatprep.subr.mxu0 0.0
        %2024 = vmatpush1.xpose.msra.mxu0 0.0
        %2025 = vmatprep.subr.mxu0 0.0
        %2026 = vmatpush1.xpose.msra.mxu0 0.0
        %2027 = vmatprep.subr.mxu0 0.0
        %2028 = vmatpush1.xpose.msra.mxu0 0.0
        %2029 = vmatprep.subr.mxu0 0.0
        %2030 = vmatpush1.xpose.msra.mxu0 0.0
        %2031 = vmatprep.subr.mxu0 0.0
        %2032 = vmatpush1.xpose.msra.mxu0 0.0
        %2033 = vmatprep.subr.mxu0 0.0
        %2034 = vmatpush1.xpose.msra.mxu0 0.0
        %2035 = vmatprep.mubr.f32.mxu0 0.0
        %2036 = vmatmul.mubr.f32.gmra.mrb[0].mxu0 %v1966
        %v2037 = vpop.f32.mrb[0].mxu0
        %v2038 = vadd.f32 0.0, %v2037
        %v2039 = vpop.f32.mrb[0].mxu0
        %2040 = vdwg.mxu0
        %v2042 = vsel %vm1280, %v874, 0
        %v2045 = vsel %vm1280, %v1052, 0
        %2047 = vmatprep.subr.mxu0 0.0
        %2048 = vmatpush1.xpose.msra.mxu0 %v2045
        %2049 = vmatprep.subr.mxu0 0.0
        %2050 = vmatpush1.xpose.msra.mxu0 0.0
        %2051 = vmatprep.subr.mxu0 0.0
        %2052 = vmatpush1.xpose.msra.mxu0 0.0
        %2053 = vmatprep.subr.mxu0 0.0
        %2054 = vmatpush1.xpose.msra.mxu0 0.0
        %2055 = vmatprep.subr.mxu0 0.0
        %2056 = vmatpush1.xpose.msra.mxu0 0.0
        %2057 = vmatprep.subr.mxu0 0.0
        %2058 = vmatpush1.xpose.msra.mxu0 0.0
        %2059 = vmatprep.subr.mxu0 0.0
        %2060 = vmatpush1.xpose.msra.mxu0 0.0
        %2061 = vmatprep.subr.mxu0 0.0
        %2062 = vmatpush1.xpose.msra.mxu0 0.0
        %2063 = vmatprep.subr.mxu0 0.0
        %2064 = vmatpush1.xpose.msra.mxu0 0.0
        %2065 = vmatprep.subr.mxu0 0.0
        %2066 = vmatpush1.xpose.msra.mxu0 0.0
        %2067 = vmatprep.subr.mxu0 0.0
        %2068 = vmatpush1.xpose.msra.mxu0 0.0
        %2069 = vmatprep.subr.mxu0 0.0
        %2070 = vmatpush1.xpose.msra.mxu0 0.0
        %2071 = vmatprep.subr.mxu0 0.0
        %2072 = vmatpush1.xpose.msra.mxu0 0.0
        %2073 = vmatprep.subr.mxu0 0.0
        %2074 = vmatpush1.xpose.msra.mxu0 0.0
        %2075 = vmatprep.subr.mxu0 0.0
        %2076 = vmatpush1.xpose.msra.mxu0 0.0
        %2077 = vmatprep.subr.mxu0 0.0
        %2078 = vmatpush1.xpose.msra.mxu0 0.0
        %2079 = vmatprep.subr.mxu0 0.0
        %2080 = vmatpush1.xpose.msra.mxu0 0.0
        %2081 = vmatprep.subr.mxu0 0.0
        %2082 = vmatpush1.xpose.msra.mxu0 0.0
        %2083 = vmatprep.subr.mxu0 0.0
        %2084 = vmatpush1.xpose.msra.mxu0 0.0
        %2085 = vmatprep.subr.mxu0 0.0
        %2086 = vmatpush1.xpose.msra.mxu0 0.0
        %2087 = vmatprep.subr.mxu0 0.0
        %2088 = vmatpush1.xpose.msra.mxu0 0.0
        %2089 = vmatprep.subr.mxu0 0.0
        %2090 = vmatpush1.xpose.msra.mxu0 0.0
        %2091 = vmatprep.subr.mxu0 0.0
        %2092 = vmatpush1.xpose.msra.mxu0 0.0
        %2093 = vmatprep.subr.mxu0 0.0
        %2094 = vmatpush1.xpose.msra.mxu0 0.0
        %2095 = vmatprep.subr.mxu0 0.0
        %2096 = vmatpush1.xpose.msra.mxu0 0.0
        %2097 = vmatprep.subr.mxu0 0.0
        %2098 = vmatpush1.xpose.msra.mxu0 0.0
        %2099 = vmatprep.subr.mxu0 0.0
        %2100 = vmatpush1.xpose.msra.mxu0 0.0
        %2101 = vmatprep.subr.mxu0 0.0
        %2102 = vmatpush1.xpose.msra.mxu0 0.0
        %2103 = vmatprep.subr.mxu0 0.0
        %2104 = vmatpush1.xpose.msra.mxu0 0.0
        %2105 = vmatprep.subr.mxu0 0.0
        %2106 = vmatpush1.xpose.msra.mxu0 0.0
        %2107 = vmatprep.subr.mxu0 0.0
        %2108 = vmatpush1.xpose.msra.mxu0 0.0
        %2109 = vmatprep.subr.mxu0 0.0
        %2110 = vmatpush1.xpose.msra.mxu0 0.0
        %2111 = vmatprep.mubr.f32.mxu0 0.0
        %2112 = vmatmul.mubr.f32.gmra.mrb[0].mxu0 %v2042
        %v2113 = vpop.f32.mrb[0].mxu0
        %v2114 = vadd.f32 0.0, %v2113
        %v2115 = vpop.f32.mrb[0].mxu0
        %2116 = vdwg.mxu0
        %v2118 = vsel %vm1280, %v875, 0
        %v2121 = vsel %vm1280, %v1057, 0
        %2123 = vmatprep.subr.mxu0 0.0
        %2124 = vmatpush1.xpose.msra.mxu0 %v2121
        %2125 = vmatprep.subr.mxu0 0.0
        %2126 = vmatpush1.xpose.msra.mxu0 0.0
        %2127 = vmatprep.subr.mxu0 0.0
        %2128 = vmatpush1.xpose.msra.mxu0 0.0
        %2129 = vmatprep.subr.mxu0 0.0
        %2130 = vmatpush1.xpose.msra.mxu0 0.0
        %2131 = vmatprep.subr.mxu0 0.0
        %2132 = vmatpush1.xpose.msra.mxu0 0.0
        %2133 = vmatprep.subr.mxu0 0.0
        %2134 = vmatpush1.xpose.msra.mxu0 0.0
        %2135 = vmatprep.subr.mxu0 0.0
        %2136 = vmatpush1.xpose.msra.mxu0 0.0
        %2137 = vmatprep.subr.mxu0 0.0
        %2138 = vmatpush1.xpose.msra.mxu0 0.0
        %2139 = vmatprep.subr.mxu0 0.0
        %2140 = vmatpush1.xpose.msra.mxu0 0.0
        %2141 = vmatprep.subr.mxu0 0.0
        %2142 = vmatpush1.xpose.msra.mxu0 0.0
        %2143 = vmatprep.subr.mxu0 0.0
        %2144 = vmatpush1.xpose.msra.mxu0 0.0
        %2145 = vmatprep.subr.mxu0 0.0
        %2146 = vmatpush1.xpose.msra.mxu0 0.0
        %2147 = vmatprep.subr.mxu0 0.0
        %2148 = vmatpush1.xpose.msra.mxu0 0.0
        %2149 = vmatprep.subr.mxu0 0.0
        %2150 = vmatpush1.xpose.msra.mxu0 0.0
        %2151 = vmatprep.subr.mxu0 0.0
        %2152 = vmatpush1.xpose.msra.mxu0 0.0
        %2153 = vmatprep.subr.mxu0 0.0
        %2154 = vmatpush1.xpose.msra.mxu0 0.0
        %2155 = vmatprep.subr.mxu0 0.0
        %2156 = vmatpush1.xpose.msra.mxu0 0.0
        %2157 = vmatprep.subr.mxu0 0.0
        %2158 = vmatpush1.xpose.msra.mxu0 0.0
        %2159 = vmatprep.subr.mxu0 0.0
        %2160 = vmatpush1.xpose.msra.mxu0 0.0
        %2161 = vmatprep.subr.mxu0 0.0
        %2162 = vmatpush1.xpose.msra.mxu0 0.0
        %2163 = vmatprep.subr.mxu0 0.0
        %2164 = vmatpush1.xpose.msra.mxu0 0.0
        %2165 = vmatprep.subr.mxu0 0.0
        %2166 = vmatpush1.xpose.msra.mxu0 0.0
        %2167 = vmatprep.subr.mxu0 0.0
        %2168 = vmatpush1.xpose.msra.mxu0 0.0
        %2169 = vmatprep.subr.mxu0 0.0
        %2170 = vmatpush1.xpose.msra.mxu0 0.0
        %2171 = vmatprep.subr.mxu0 0.0
        %2172 = vmatpush1.xpose.msra.mxu0 0.0
        %2173 = vmatprep.subr.mxu0 0.0
        %2174 = vmatpush1.xpose.msra.mxu0 0.0
        %2175 = vmatprep.subr.mxu0 0.0
        %2176 = vmatpush1.xpose.msra.mxu0 0.0
        %2177 = vmatprep.subr.mxu0 0.0
        %2178 = vmatpush1.xpose.msra.mxu0 0.0
        %2179 = vmatprep.subr.mxu0 0.0
        %2180 = vmatpush1.xpose.msra.mxu0 0.0
        %2181 = vmatprep.subr.mxu0 0.0
        %2182 = vmatpush1.xpose.msra.mxu0 0.0
        %2183 = vmatprep.subr.mxu0 0.0
        %2184 = vmatpush1.xpose.msra.mxu0 0.0
        %2185 = vmatprep.subr.mxu0 0.0
        %2186 = vmatpush1.xpose.msra.mxu0 0.0
        %2187 = vmatprep.mubr.f32.mxu0 0.0
        %2188 = vmatmul.mubr.f32.gmra.mrb[0].mxu0 %v2118
        %v2189 = vpop.f32.mrb[0].mxu0
        %v2190 = vadd.f32 0.0, %v2189
        %v2191 = vpop.f32.mrb[0].mxu0
        %2192 = vdwg.mxu0
        %v2194 = vsel %vm1280, %v876, 0
        %v2197 = vsel %vm1280, %v1062, 0
        %2199 = vmatprep.subr.mxu0 0.0
        %2200 = vmatpush1.xpose.msra.mxu0 %v2197
        %2201 = vmatprep.subr.mxu0 0.0
        %2202 = vmatpush1.xpose.msra.mxu0 0.0
        %2203 = vmatprep.subr.mxu0 0.0
        %2204 = vmatpush1.xpose.msra.mxu0 0.0
        %2205 = vmatprep.subr.mxu0 0.0
        %2206 = vmatpush1.xpose.msra.mxu0 0.0
        %2207 = vmatprep.subr.mxu0 0.0
        %2208 = vmatpush1.xpose.msra.mxu0 0.0
        %2209 = vmatprep.subr.mxu0 0.0
        %2210 = vmatpush1.xpose.msra.mxu0 0.0
        %2211 = vmatprep.subr.mxu0 0.0
        %2212 = vmatpush1.xpose.msra.mxu0 0.0
        %2213 = vmatprep.subr.mxu0 0.0
        %2214 = vmatpush1.xpose.msra.mxu0 0.0
        %2215 = vmatprep.subr.mxu0 0.0
        %2216 = vmatpush1.xpose.msra.mxu0 0.0
        %2217 = vmatprep.subr.mxu0 0.0
        %2218 = vmatpush1.xpose.msra.mxu0 0.0
        %2219 = vmatprep.subr.mxu0 0.0
        %2220 = vmatpush1.xpose.msra.mxu0 0.0
        %2221 = vmatprep.subr.mxu0 0.0
        %2222 = vmatpush1.xpose.msra.mxu0 0.0
        %2223 = vmatprep.subr.mxu0 0.0
        %2224 = vmatpush1.xpose.msra.mxu0 0.0
        %2225 = vmatprep.subr.mxu0 0.0
        %2226 = vmatpush1.xpose.msra.mxu0 0.0
        %2227 = vmatprep.subr.mxu0 0.0
        %2228 = vmatpush1.xpose.msra.mxu0 0.0
        %2229 = vmatprep.subr.mxu0 0.0
        %2230 = vmatpush1.xpose.msra.mxu0 0.0
        %2231 = vmatprep.subr.mxu0 0.0
        %2232 = vmatpush1.xpose.msra.mxu0 0.0
        %2233 = vmatprep.subr.mxu0 0.0
        %2234 = vmatpush1.xpose.msra.mxu0 0.0
        %2235 = vmatprep.subr.mxu0 0.0
        %2236 = vmatpush1.xpose.msra.mxu0 0.0
        %2237 = vmatprep.subr.mxu0 0.0
        %2238 = vmatpush1.xpose.msra.mxu0 0.0
        %2239 = vmatprep.subr.mxu0 0.0
        %2240 = vmatpush1.xpose.msra.mxu0 0.0
        %2241 = vmatprep.subr.mxu0 0.0
        %2242 = vmatpush1.xpose.msra.mxu0 0.0
        %2243 = vmatprep.subr.mxu0 0.0
        %2244 = vmatpush1.xpose.msra.mxu0 0.0
        %2245 = vmatprep.subr.mxu0 0.0
        %2246 = vmatpush1.xpose.msra.mxu0 0.0
        %2247 = vmatprep.subr.mxu0 0.0
        %2248 = vmatpush1.xpose.msra.mxu0 0.0
        %2249 = vmatprep.subr.mxu0 0.0
        %2250 = vmatpush1.xpose.msra.mxu0 0.0
        %2251 = vmatprep.subr.mxu0 0.0
        %2252 = vmatpush1.xpose.msra.mxu0 0.0
        %2253 = vmatprep.subr.mxu0 0.0
        %2254 = vmatpush1.xpose.msra.mxu0 0.0
        %2255 = vmatprep.subr.mxu0 0.0
        %2256 = vmatpush1.xpose.msra.mxu0 0.0
        %2257 = vmatprep.subr.mxu0 0.0
        %2258 = vmatpush1.xpose.msra.mxu0 0.0
        %2259 = vmatprep.subr.mxu0 0.0
        %2260 = vmatpush1.xpose.msra.mxu0 0.0
        %2261 = vmatprep.subr.mxu0 0.0
        %2262 = vmatpush1.xpose.msra.mxu0 0.0
        %2263 = vmatprep.mubr.f32.mxu0 0.0
        %2264 = vmatmul.mubr.f32.gmra.mrb[0].mxu0 %v2194
        %v2265 = vpop.f32.mrb[0].mxu0
        %v2266 = vadd.f32 0.0, %v2265
        %v2267 = vpop.f32.mrb[0].mxu0
        %2268 = vdwg.mxu0
        %v2270 = vsel %vm1280, %v877, 0
        %v2273 = vsel %vm1280, %v1067, 0
        %2275 = vmatprep.subr.mxu0 0.0
        %2276 = vmatpush1.xpose.msra.mxu0 %v2273
        %2277 = vmatprep.subr.mxu0 0.0
        %2278 = vmatpush1.xpose.msra.mxu0 0.0
        %2279 = vmatprep.subr.mxu0 0.0
        %2280 = vmatpush1.xpose.msra.mxu0 0.0
        %2281 = vmatprep.subr.mxu0 0.0
        %2282 = vmatpush1.xpose.msra.mxu0 0.0
        %2283 = vmatprep.subr.mxu0 0.0
        %2284 = vmatpush1.xpose.msra.mxu0 0.0
        %2285 = vmatprep.subr.mxu0 0.0
        %2286 = vmatpush1.xpose.msra.mxu0 0.0
        %2287 = vmatprep.subr.mxu0 0.0
        %2288 = vmatpush1.xpose.msra.mxu0 0.0
        %2289 = vmatprep.subr.mxu0 0.0
        %2290 = vmatpush1.xpose.msra.mxu0 0.0
        %2291 = vmatprep.subr.mxu0 0.0
        %2292 = vmatpush1.xpose.msra.mxu0 0.0
        %2293 = vmatprep.subr.mxu0 0.0
        %2294 = vmatpush1.xpose.msra.mxu0 0.0
        %2295 = vmatprep.subr.mxu0 0.0
        %2296 = vmatpush1.xpose.msra.mxu0 0.0
        %2297 = vmatprep.subr.mxu0 0.0
        %2298 = vmatpush1.xpose.msra.mxu0 0.0
        %2299 = vmatprep.subr.mxu0 0.0
        %2300 = vmatpush1.xpose.msra.mxu0 0.0
        %2301 = vmatprep.subr.mxu0 0.0
        %2302 = vmatpush1.xpose.msra.mxu0 0.0
        %2303 = vmatprep.subr.mxu0 0.0
        %2304 = vmatpush1.xpose.msra.mxu0 0.0
        %2305 = vmatprep.subr.mxu0 0.0
        %2306 = vmatpush1.xpose.msra.mxu0 0.0
        %2307 = vmatprep.subr.mxu0 0.0
        %2308 = vmatpush1.xpose.msra.mxu0 0.0
        %2309 = vmatprep.subr.mxu0 0.0
        %2310 = vmatpush1.xpose.msra.mxu0 0.0
        %2311 = vmatprep.subr.mxu0 0.0
        %2312 = vmatpush1.xpose.msra.mxu0 0.0
        %2313 = vmatprep.subr.mxu0 0.0
        %2314 = vmatpush1.xpose.msra.mxu0 0.0
        %2315 = vmatprep.subr.mxu0 0.0
        %2316 = vmatpush1.xpose.msra.mxu0 0.0
        %2317 = vmatprep.subr.mxu0 0.0
        %2318 = vmatpush1.xpose.msra.mxu0 0.0
        %2319 = vmatprep.subr.mxu0 0.0
        %2320 = vmatpush1.xpose.msra.mxu0 0.0
        %2321 = vmatprep.subr.mxu0 0.0
        %2322 = vmatpush1.xpose.msra.mxu0 0.0
        %2323 = vmatprep.subr.mxu0 0.0
        %2324 = vmatpush1.xpose.msra.mxu0 0.0
        %2325 = vmatprep.subr.mxu0 0.0
        %2326 = vmatpush1.xpose.msra.mxu0 0.0
        %2327 = vmatprep.subr.mxu0 0.0
        %2328 = vmatpush1.xpose.msra.mxu0 0.0
        %2329 = vmatprep.subr.mxu0 0.0
        %2330 = vmatpush1.xpose.msra.mxu0 0.0
        %2331 = vmatprep.subr.mxu0 0.0
        %2332 = vmatpush1.xpose.msra.mxu0 0.0
        %2333 = vmatprep.subr.mxu0 0.0
        %2334 = vmatpush1.xpose.msra.mxu0 0.0
        %2335 = vmatprep.subr.mxu0 0.0
        %2336 = vmatpush1.xpose.msra.mxu0 0.0
        %2337 = vmatprep.subr.mxu0 0.0
        %2338 = vmatpush1.xpose.msra.mxu0 0.0
        %2339 = vmatprep.mubr.f32.mxu0 0.0
        %2340 = vmatmul.mubr.f32.gmra.mrb[0].mxu0 %v2270
        %v2341 = vpop.f32.mrb[0].mxu0
        %v2342 = vadd.f32 0.0, %v2341
        %v2343 = vpop.f32.mrb[0].mxu0
        %2344 = vdwg.mxu0
        %v2346 = vsel %vm1280, %v878, 0
        %v2349 = vsel %vm1280, %v1072, 0
        %2351 = vmatprep.subr.mxu0 0.0
        %2352 = vmatpush1.xpose.msra.mxu0 %v2349
        %2353 = vmatprep.subr.mxu0 0.0
        %2354 = vmatpush1.xpose.msra.mxu0 0.0
        %2355 = vmatprep.subr.mxu0 0.0
        %2356 = vmatpush1.xpose.msra.mxu0 0.0
        %2357 = vmatprep.subr.mxu0 0.0
        %2358 = vmatpush1.xpose.msra.mxu0 0.0
        %2359 = vmatprep.subr.mxu0 0.0
        %2360 = vmatpush1.xpose.msra.mxu0 0.0
        %2361 = vmatprep.subr.mxu0 0.0
        %2362 = vmatpush1.xpose.msra.mxu0 0.0
        %2363 = vmatprep.subr.mxu0 0.0
        %2364 = vmatpush1.xpose.msra.mxu0 0.0
        %2365 = vmatprep.subr.mxu0 0.0
        %2366 = vmatpush1.xpose.msra.mxu0 0.0
        %2367 = vmatprep.subr.mxu0 0.0
        %2368 = vmatpush1.xpose.msra.mxu0 0.0
        %2369 = vmatprep.subr.mxu0 0.0
        %2370 = vmatpush1.xpose.msra.mxu0 0.0
        %2371 = vmatprep.subr.mxu0 0.0
        %2372 = vmatpush1.xpose.msra.mxu0 0.0
        %2373 = vmatprep.subr.mxu0 0.0
        %2374 = vmatpush1.xpose.msra.mxu0 0.0
        %2375 = vmatprep.subr.mxu0 0.0
        %2376 = vmatpush1.xpose.msra.mxu0 0.0
        %2377 = vmatprep.subr.mxu0 0.0
        %2378 = vmatpush1.xpose.msra.mxu0 0.0
        %2379 = vmatprep.subr.mxu0 0.0
        %2380 = vmatpush1.xpose.msra.mxu0 0.0
        %2381 = vmatprep.subr.mxu0 0.0
        %2382 = vmatpush1.xpose.msra.mxu0 0.0
        %2383 = vmatprep.subr.mxu0 0.0
        %2384 = vmatpush1.xpose.msra.mxu0 0.0
        %2385 = vmatprep.subr.mxu0 0.0
        %2386 = vmatpush1.xpose.msra.mxu0 0.0
        %2387 = vmatprep.subr.mxu0 0.0
        %2388 = vmatpush1.xpose.msra.mxu0 0.0
        %2389 = vmatprep.subr.mxu0 0.0
        %2390 = vmatpush1.xpose.msra.mxu0 0.0
        %2391 = vmatprep.subr.mxu0 0.0
        %2392 = vmatpush1.xpose.msra.mxu0 0.0
        %2393 = vmatprep.subr.mxu0 0.0
        %2394 = vmatpush1.xpose.msra.mxu0 0.0
        %2395 = vmatprep.subr.mxu0 0.0
        %2396 = vmatpush1.xpose.msra.mxu0 0.0
        %2397 = vmatprep.subr.mxu0 0.0
        %2398 = vmatpush1.xpose.msra.mxu0 0.0
        %2399 = vmatprep.subr.mxu0 0.0
        %2400 = vmatpush1.xpose.msra.mxu0 0.0
        %2401 = vmatprep.subr.mxu0 0.0
        %2402 = vmatpush1.xpose.msra.mxu0 0.0
        %2403 = vmatprep.subr.mxu0 0.0
        %2404 = vmatpush1.xpose.msra.mxu0 0.0
        %2405 = vmatprep.subr.mxu0 0.0
        %2406 = vmatpush1.xpose.msra.mxu0 0.0
        %2407 = vmatprep.subr.mxu0 0.0
        %2408 = vmatpush1.xpose.msra.mxu0 0.0
        %2409 = vmatprep.subr.mxu0 0.0
        %2410 = vmatpush1.xpose.msra.mxu0 0.0
        %2411 = vmatprep.subr.mxu0 0.0
        %2412 = vmatpush1.xpose.msra.mxu0 0.0
        %2413 = vmatprep.subr.mxu0 0.0
        %2414 = vmatpush1.xpose.msra.mxu0 0.0
        %2415 = vmatprep.mubr.f32.mxu0 0.0
        %2416 = vmatmul.mubr.f32.gmra.mrb[0].mxu0 %v2346
        %v2417 = vpop.f32.mrb[0].mxu0
        %v2418 = vadd.f32 0.0, %v2417
        %v2419 = vpop.f32.mrb[0].mxu0
        %2420 = vdwg.mxu0
        %v2422 = vsel %vm1280, %v879, 0
        %v2425 = vsel %vm1280, %v1077, 0
        %2427 = vmatprep.subr.mxu0 0.0
        %2428 = vmatpush1.xpose.msra.mxu0 %v2425
        %2429 = vmatprep.subr.mxu0 0.0
        %2430 = vmatpush1.xpose.msra.mxu0 0.0
        %2431 = vmatprep.subr.mxu0 0.0
        %2432 = vmatpush1.xpose.msra.mxu0 0.0
        %2433 = vmatprep.subr.mxu0 0.0
        %2434 = vmatpush1.xpose.msra.mxu0 0.0
        %2435 = vmatprep.subr.mxu0 0.0
        %2436 = vmatpush1.xpose.msra.mxu0 0.0
        %2437 = vmatprep.subr.mxu0 0.0
        %2438 = vmatpush1.xpose.msra.mxu0 0.0
        %2439 = vmatprep.subr.mxu0 0.0
        %2440 = vmatpush1.xpose.msra.mxu0 0.0
        %2441 = vmatprep.subr.mxu0 0.0
        %2442 = vmatpush1.xpose.msra.mxu0 0.0
        %2443 = vmatprep.subr.mxu0 0.0
        %2444 = vmatpush1.xpose.msra.mxu0 0.0
        %2445 = vmatprep.subr.mxu0 0.0
        %2446 = vmatpush1.xpose.msra.mxu0 0.0
        %2447 = vmatprep.subr.mxu0 0.0
        %2448 = vmatpush1.xpose.msra.mxu0 0.0
        %2449 = vmatprep.subr.mxu0 0.0
        %2450 = vmatpush1.xpose.msra.mxu0 0.0
        %2451 = vmatprep.subr.mxu0 0.0
        %2452 = vmatpush1.xpose.msra.mxu0 0.0
        %2453 = vmatprep.subr.mxu0 0.0
        %2454 = vmatpush1.xpose.msra.mxu0 0.0
        %2455 = vmatprep.subr.mxu0 0.0
        %2456 = vmatpush1.xpose.msra.mxu0 0.0
        %2457 = vmatprep.subr.mxu0 0.0
        %2458 = vmatpush1.xpose.msra.mxu0 0.0
        %2459 = vmatprep.subr.mxu0 0.0
        %2460 = vmatpush1.xpose.msra.mxu0 0.0
        %2461 = vmatprep.subr.mxu0 0.0
        %2462 = vmatpush1.xpose.msra.mxu0 0.0
        %2463 = vmatprep.subr.mxu0 0.0
        %2464 = vmatpush1.xpose.msra.mxu0 0.0
        %2465 = vmatprep.subr.mxu0 0.0
        %2466 = vmatpush1.xpose.msra.mxu0 0.0
        %2467 = vmatprep.subr.mxu0 0.0
        %2468 = vmatpush1.xpose.msra.mxu0 0.0
        %2469 = vmatprep.subr.mxu0 0.0
        %2470 = vmatpush1.xpose.msra.mxu0 0.0
        %2471 = vmatprep.subr.mxu0 0.0
        %2472 = vmatpush1.xpose.msra.mxu0 0.0
        %2473 = vmatprep.subr.mxu0 0.0
        %2474 = vmatpush1.xpose.msra.mxu0 0.0
        %2475 = vmatprep.subr.mxu0 0.0
        %2476 = vmatpush1.xpose.msra.mxu0 0.0
        %2477 = vmatprep.subr.mxu0 0.0
        %2478 = vmatpush1.xpose.msra.mxu0 0.0
        %2479 = vmatprep.subr.mxu0 0.0
        %2480 = vmatpush1.xpose.msra.mxu0 0.0
        %2481 = vmatprep.subr.mxu0 0.0
        %2482 = vmatpush1.xpose.msra.mxu0 0.0
        %2483 = vmatprep.subr.mxu0 0.0
        %2484 = vmatpush1.xpose.msra.mxu0 0.0
        %2485 = vmatprep.subr.mxu0 0.0
        %2486 = vmatpush1.xpose.msra.mxu0 0.0
        %2487 = vmatprep.subr.mxu0 0.0
        %2488 = vmatpush1.xpose.msra.mxu0 0.0
        %2489 = vmatprep.subr.mxu0 0.0
        %2490 = vmatpush1.xpose.msra.mxu0 0.0
        %2491 = vmatprep.mubr.f32.mxu0 0.0
        %2492 = vmatmul.mubr.f32.gmra.mrb[0].mxu0 %v2422
        %v2493 = vpop.f32.mrb[0].mxu0
        %v2494 = vadd.f32 0.0, %v2493
        %v2495 = vpop.f32.mrb[0].mxu0
        %2496 = vdwg.mxu0
        %v2497 = vsel %vm1280, %v1354, -inf
        %2498 = vmax.xlane.f32.xlu0 %v2497
        %v2499 = vpop.xlane.xlu0 %2498
        %v2500 = vsel %vm1280, %v1430, -inf
        %2501 = vmax.xlane.f32.xlu0 %v2500
        %v2502 = vpop.xlane.xlu0 %2501
        %v2503 = vsel %vm1280, %v1506, -inf
        %2504 = vmax.xlane.f32.xlu0 %v2503
        %v2505 = vpop.xlane.xlu0 %2504
        %v2506 = vsel %vm1280, %v1582, -inf
        %2507 = vmax.xlane.f32.xlu0 %v2506
        %v2508 = vpop.xlane.xlu0 %2507
        %v2509 = vsel %vm1280, %v1658, -inf
        %2510 = vmax.xlane.f32.xlu0 %v2509
        %v2511 = vpop.xlane.xlu0 %2510
        %v2512 = vsel %vm1280, %v1734, -inf
        %2513 = vmax.xlane.f32.xlu0 %v2512
        %v2514 = vpop.xlane.xlu0 %2513
        %v2515 = vsel %vm1280, %v1810, -inf
        %2516 = vmax.xlane.f32.xlu0 %v2515
        %v2517 = vpop.xlane.xlu0 %2516
        %v2518 = vsel %vm1280, %v1886, -inf
        %2519 = vmax.xlane.f32.xlu0 %v2518
        %v2520 = vpop.xlane.xlu0 %2519
        %v2521 = vsel %vm1280, %v1962, -inf
        %2522 = vmax.xlane.f32.xlu0 %v2521
        %v2523 = vpop.xlane.xlu0 %2522
        %v2524 = vsel %vm1280, %v2038, -inf
        %2525 = vmax.xlane.f32.xlu0 %v2524
        %v2526 = vpop.xlane.xlu0 %2525
        %v2527 = vsel %vm1280, %v2114, -inf
        %2528 = vmax.xlane.f32.xlu0 %v2527
        %v2529 = vpop.xlane.xlu0 %2528
        %v2530 = vsel %vm1280, %v2190, -inf
        %2531 = vmax.xlane.f32.xlu0 %v2530
        %v2532 = vpop.xlane.xlu0 %2531
        %v2533 = vsel %vm1280, %v2266, -inf
        %2534 = vmax.xlane.f32.xlu0 %v2533
        %v2535 = vpop.xlane.xlu0 %2534
        %v2536 = vsel %vm1280, %v2342, -inf
        %2537 = vmax.xlane.f32.xlu0 %v2536
        %v2538 = vpop.xlane.xlu0 %2537
        %v2539 = vsel %vm1280, %v2418, -inf
        %2540 = vmax.xlane.f32.xlu0 %v2539
        %v2541 = vpop.xlane.xlu0 %2540
        %v2542 = vsel %vm1280, %v2494, -inf
        %2543 = vmax.xlane.f32.xlu0 %v2542
        %v2544 = vpop.xlane.xlu0 %2543
        %v2545 = vsub.f32 %v1354, %v2499
        %v2546 = vsub.f32 %v1430, %v2502
        %v2547 = vsub.f32 %v1506, %v2505
        %v2548 = vsub.f32 %v1582, %v2508
        %v2549 = vsub.f32 %v1658, %v2511
        %v2550 = vsub.f32 %v1734, %v2514
        %v2551 = vsub.f32 %v1810, %v2517
        %v2552 = vsub.f32 %v1886, %v2520
        %v2553 = vsub.f32 %v1962, %v2523
        %v2554 = vsub.f32 %v2038, %v2526
        %v2555 = vsub.f32 %v2114, %v2529
        %v2556 = vsub.f32 %v2190, %v2532
        %v2557 = vsub.f32 %v2266, %v2535
        %v2558 = vsub.f32 %v2342, %v2538
        %v2559 = vsub.f32 %v2418, %v2541
        %v2560 = vsub.f32 %v2494, %v2544
        %v2561 = vmul.f32 %v2545, 1.442695
        %v2562 = vpow.pop %v2561
        %v2563 = vmul.f32 %v2546, 1.442695
        %v2564 = vpow.pop %v2563
        %v2565 = vmul.f32 %v2547, 1.442695
        %v2566 = vpow.pop %v2565
        %v2567 = vmul.f32 %v2548, 1.442695
        %v2568 = vpow.pop %v2567
        %v2569 = vmul.f32 %v2549, 1.442695
        %v2570 = vpow.pop %v2569
        %v2571 = vmul.f32 %v2550, 1.442695
        %v2572 = vpow.pop %v2571
        %v2573 = vmul.f32 %v2551, 1.442695
        %v2574 = vpow.pop %v2573
        %v2575 = vmul.f32 %v2552, 1.442695
        %v2576 = vpow.pop %v2575
        %v2577 = vmul.f32 %v2553, 1.442695
        %v2578 = vpow.pop %v2577
        %v2579 = vmul.f32 %v2554, 1.442695
        %v2580 = vpow.pop %v2579
        %v2581 = vmul.f32 %v2555, 1.442695
        %v2582 = vpow.pop %v2581
        %v2583 = vmul.f32 %v2556, 1.442695
        %v2584 = vpow.pop %v2583
        %v2585 = vmul.f32 %v2557, 1.442695
        %v2586 = vpow.pop %v2585
        %v2587 = vmul.f32 %v2558, 1.442695
        %v2588 = vpow.pop %v2587
        %v2589 = vmul.f32 %v2559, 1.442695
        %v2590 = vpow.pop %v2589
        %v2591 = vmul.f32 %v2560, 1.442695
        %v2592 = vpow.pop %v2591
        %v2593 = vsel %vm1280, %v2562, 0.0
        %2594 = vadd.xlane.f32.xlu0 %v2593
        %v2595 = vpop.xlane.xlu0 %2594
        %v2596 = vsel %vm1280, %v2564, 0.0
        %2597 = vadd.xlane.f32.xlu0 %v2596
        %v2598 = vpop.xlane.xlu0 %2597
        %v2599 = vsel %vm1280, %v2566, 0.0
        %2600 = vadd.xlane.f32.xlu0 %v2599
        %v2601 = vpop.xlane.xlu0 %2600
        %v2602 = vsel %vm1280, %v2568, 0.0
        %2603 = vadd.xlane.f32.xlu0 %v2602
        %v2604 = vpop.xlane.xlu0 %2603
        %v2605 = vsel %vm1280, %v2570, 0.0
        %2606 = vadd.xlane.f32.xlu0 %v2605
        %v2607 = vpop.xlane.xlu0 %2606
        %v2608 = vsel %vm1280, %v2572, 0.0
        %2609 = vadd.xlane.f32.xlu0 %v2608
        %v2610 = vpop.xlane.xlu0 %2609
        %v2611 = vsel %vm1280, %v2574, 0.0
        %2612 = vadd.xlane.f32.xlu0 %v2611
        %v2613 = vpop.xlane.xlu0 %2612
        %v2614 = vsel %vm1280, %v2576, 0.0
        %2615 = vadd.xlane.f32.xlu0 %v2614
        %v2616 = vpop.xlane.xlu0 %2615
        %v2617 = vsel %vm1280, %v2578, 0.0
        %2618 = vadd.xlane.f32.xlu0 %v2617
        %v2619 = vpop.xlane.xlu0 %2618
        %v2620 = vsel %vm1280, %v2580, 0.0
        %2621 = vadd.xlane.f32.xlu0 %v2620
        %v2622 = vpop.xlane.xlu0 %2621
        %v2623 = vsel %vm1280, %v2582, 0.0
        %2624 = vadd.xlane.f32.xlu0 %v2623
        %v2625 = vpop.xlane.xlu0 %2624
        %v2626 = vsel %vm1280, %v2584, 0.0
        %2627 = vadd.xlane.f32.xlu0 %v2626
        %v2628 = vpop.xlane.xlu0 %2627
        %v2629 = vsel %vm1280, %v2586, 0.0
        %2630 = vadd.xlane.f32.xlu0 %v2629
        %v2631 = vpop.xlane.xlu0 %2630
        %v2632 = vsel %vm1280, %v2588, 0.0
        %2633 = vadd.xlane.f32.xlu0 %v2632
        %v2634 = vpop.xlane.xlu0 %2633
        %v2635 = vsel %vm1280, %v2590, 0.0
        %2636 = vadd.xlane.f32.xlu0 %v2635
        %v2637 = vpop.xlane.xlu0 %2636
        %v2638 = vsel %vm1280, %v2592, 0.0
        %2639 = vadd.xlane.f32.xlu0 %v2638
        %v2640 = vpop.xlane.xlu0 %2639
        %v2641 = vrcp.pop %v2595
        %v2642 = vrcp.pop %v2598
        %v2643 = vrcp.pop %v2601
        %v2644 = vrcp.pop %v2604
        %v2645 = vrcp.pop %v2607
        %v2646 = vrcp.pop %v2610
        %v2647 = vrcp.pop %v2613
        %v2648 = vrcp.pop %v2616
        %v2649 = vrcp.pop %v2619
        %v2650 = vrcp.pop %v2622
        %v2651 = vrcp.pop %v2625
        %v2652 = vrcp.pop %v2628
        %v2653 = vrcp.pop %v2631
        %v2654 = vrcp.pop %v2634
        %v2655 = vrcp.pop %v2637
        %v2656 = vrcp.pop %v2640
        %v2657 = vmul.f32 %v2562, %v2641
        %v2658 = vmul.f32 %v2564, %v2642
        %v2659 = vmul.f32 %v2566, %v2643
        %v2660 = vmul.f32 %v2568, %v2644
        %v2661 = vmul.f32 %v2570, %v2645
        %v2662 = vmul.f32 %v2572, %v2646
        %v2663 = vmul.f32 %v2574, %v2647
        %v2664 = vmul.f32 %v2576, %v2648
        %v2665 = vmul.f32 %v2578, %v2649
        %v2666 = vmul.f32 %v2580, %v2650
        %v2667 = vmul.f32 %v2582, %v2651
        %v2668 = vmul.f32 %v2584, %v2652
        %v2669 = vmul.f32 %v2586, %v2653
        %v2670 = vmul.f32 %v2588, %v2654
        %v2671 = vmul.f32 %v2590, %v2655
        %v2672 = vmul.f32 %v2592, %v2656
        %2673 = vst.msk [vmem:[%s548] sm:$0xff] %vm1280, %v2657
        %2674 = vst.msk [vmem:[%s548 + $0x8] sm:$0xff] %vm1280, %v2658
        %2675 = vst.msk [vmem:[%s548 + $0x10] sm:$0xff] %vm1280, %v2659
        %2676 = vst.msk [vmem:[%s548 + $0x18] sm:$0xff] %vm1280, %v2660
        %2677 = vst.msk [vmem:[%s548 + $0x20] sm:$0xff] %vm1280, %v2661
        %2678 = vst.msk [vmem:[%s548 + $0x28] sm:$0xff] %vm1280, %v2662
        %2679 = vst.msk [vmem:[%s548 + $0x30] sm:$0xff] %vm1280, %v2663
        %2680 = vst.msk [vmem:[%s548 + $0x38] sm:$0xff] %vm1280, %v2664
        %2681 = vst.msk [vmem:[%s548 + $0x40] sm:$0xff] %vm1280, %v2665
        %2682 = vst.msk [vmem:[%s548 + $0x48] sm:$0xff] %vm1280, %v2666
        %2683 = vst.msk [vmem:[%s548 + $0x50] sm:$0xff] %vm1280, %v2667
        %2684 = vst.msk [vmem:[%s548 + $0x58] sm:$0xff] %vm1280, %v2668
        %2685 = vst.msk [vmem:[%s548 + $0x60] sm:$0xff] %vm1280, %v2669
        %2686 = vst.msk [vmem:[%s548 + $0x68] sm:$0xff] %vm1280, %v2670
        %2687 = vst.msk [vmem:[%s548 + $0x70] sm:$0xff] %vm1280, %v2671
        %2688 = vst.msk [vmem:[%s548 + $0x78] sm:$0xff] %vm1280, %v2672
        %v2690 = vsel %vm1280, %v2657, 0
        %2692 = vmatprep.subr.mxu0 0.0
        %2693 = vmatpush1.msra.mxu0 %v1202
        %2694 = vmatprep.subr.mxu0 0.0
        %2695 = vmatpush1.msra.mxu0 0.0
        %2696 = vmatprep.subr.mxu0 0.0
        %2697 = vmatpush1.msra.mxu0 0.0
        %2698 = vmatprep.subr.mxu0 0.0
        %2699 = vmatpush1.msra.mxu0 0.0
        %2700 = vmatprep.subr.mxu0 0.0
        %2701 = vmatpush1.msra.mxu0 0.0
        %2702 = vmatprep.subr.mxu0 0.0
        %2703 = vmatpush1.msra.mxu0 0.0
        %2704 = vmatprep.subr.mxu0 0.0
        %2705 = vmatpush1.msra.mxu0 0.0
        %2706 = vmatprep.subr.mxu0 0.0
        %2707 = vmatpush1.msra.mxu0 0.0
        %2708 = vmatprep.subr.mxu0 0.0
        %2709 = vmatpush1.msra.mxu0 0.0
        %2710 = vmatprep.subr.mxu0 0.0
        %2711 = vmatpush1.msra.mxu0 0.0
        %2712 = vmatprep.subr.mxu0 0.0
        %2713 = vmatpush1.msra.mxu0 0.0
        %2714 = vmatprep.subr.mxu0 0.0
        %2715 = vmatpush1.msra.mxu0 0.0
        %2716 = vmatprep.subr.mxu0 0.0
        %2717 = vmatpush1.msra.mxu0 0.0
        %2718 = vmatprep.subr.mxu0 0.0
        %2719 = vmatpush1.msra.mxu0 0.0
        %2720 = vmatprep.subr.mxu0 0.0
        %2721 = vmatpush1.msra.mxu0 0.0
        %2722 = vmatprep.subr.mxu0 0.0
        %2723 = vmatpush1.msra.mxu0 0.0
        %2724 = vmatprep.subr.mxu0 0.0
        %2725 = vmatpush1.msra.mxu0 0.0
        %2726 = vmatprep.subr.mxu0 0.0
        %2727 = vmatpush1.msra.mxu0 0.0
        %2728 = vmatprep.subr.mxu0 0.0
        %2729 = vmatpush1.msra.mxu0 0.0
        %2730 = vmatprep.subr.mxu0 0.0
        %2731 = vmatpush1.msra.mxu0 0.0
        %2732 = vmatprep.subr.mxu0 0.0
        %2733 = vmatpush1.msra.mxu0 0.0
        %2734 = vmatprep.subr.mxu0 0.0
        %2735 = vmatpush1.msra.mxu0 0.0
        %2736 = vmatprep.subr.mxu0 0.0
        %2737 = vmatpush1.msra.mxu0 0.0
        %2738 = vmatprep.subr.mxu0 0.0
        %2739 = vmatpush1.msra.mxu0 0.0
        %2740 = vmatprep.subr.mxu0 0.0
        %2741 = vmatpush1.msra.mxu0 0.0
        %2742 = vmatprep.subr.mxu0 0.0
        %2743 = vmatpush1.msra.mxu0 0.0
        %2744 = vmatprep.subr.mxu0 0.0
        %2745 = vmatpush1.msra.mxu0 0.0
        %2746 = vmatprep.subr.mxu0 0.0
        %2747 = vmatpush1.msra.mxu0 0.0
        %2748 = vmatprep.subr.mxu0 0.0
        %2749 = vmatpush1.msra.mxu0 0.0
        %2750 = vmatprep.subr.mxu0 0.0
        %2751 = vmatpush1.msra.mxu0 0.0
        %2752 = vmatprep.subr.mxu0 0.0
        %2753 = vmatpush1.msra.mxu0 0.0
        %2754 = vmatprep.subr.mxu0 0.0
        %2755 = vmatpush1.msra.mxu0 0.0
        %2756 = vmatprep.mubr.f32.mxu0 0.0
        %2757 = vmatmul.mubr.f32.gmra.mrb[0].mxu0 %v2690
        %v2758 = vpop.f32.mrb[0].mxu0
        %v2759 = vadd.f32 0.0, %v2758
        %v2760 = vpop.f32.mrb[0].mxu0
        %2761 = vdwg.mxu0
        %v2763 = vsel %vm1280, %v2658, 0
        %2765 = vmatprep.subr.mxu0 0.0
        %2766 = vmatpush1.msra.mxu0 %v1207
        %2767 = vmatprep.subr.mxu0 0.0
        %2768 = vmatpush1.msra.mxu0 0.0
        %2769 = vmatprep.subr.mxu0 0.0
        %2770 = vmatpush1.msra.mxu0 0.0
        %2771 = vmatprep.subr.mxu0 0.0
        %2772 = vmatpush1.msra.mxu0 0.0
        %2773 = vmatprep.subr.mxu0 0.0
        %2774 = vmatpush1.msra.mxu0 0.0
        %2775 = vmatprep.subr.mxu0 0.0
        %2776 = vmatpush1.msra.mxu0 0.0
        %2777 = vmatprep.subr.mxu0 0.0
        %2778 = vmatpush1.msra.mxu0 0.0
        %2779 = vmatprep.subr.mxu0 0.0
        %2780 = vmatpush1.msra.mxu0 0.0
        %2781 = vmatprep.subr.mxu0 0.0
        %2782 = vmatpush1.msra.mxu0 0.0
        %2783 = vmatprep.subr.mxu0 0.0
        %2784 = vmatpush1.msra.mxu0 0.0
        %2785 = vmatprep.subr.mxu0 0.0
        %2786 = vmatpush1.msra.mxu0 0.0
        %2787 = vmatprep.subr.mxu0 0.0
        %2788 = vmatpush1.msra.mxu0 0.0
        %2789 = vmatprep.subr.mxu0 0.0
        %2790 = vmatpush1.msra.mxu0 0.0
        %2791 = vmatprep.subr.mxu0 0.0
        %2792 = vmatpush1.msra.mxu0 0.0
        %2793 = vmatprep.subr.mxu0 0.0
        %2794 = vmatpush1.msra.mxu0 0.0
        %2795 = vmatprep.subr.mxu0 0.0
        %2796 = vmatpush1.msra.mxu0 0.0
        %2797 = vmatprep.subr.mxu0 0.0
        %2798 = vmatpush1.msra.mxu0 0.0
        %2799 = vmatprep.subr.mxu0 0.0
        %2800 = vmatpush1.msra.mxu0 0.0
        %2801 = vmatprep.subr.mxu0 0.0
        %2802 = vmatpush1.msra.mxu0 0.0
        %2803 = vmatprep.subr.mxu0 0.0
        %2804 = vmatpush1.msra.mxu0 0.0
        %2805 = vmatprep.subr.mxu0 0.0
        %2806 = vmatpush1.msra.mxu0 0.0
        %2807 = vmatprep.subr.mxu0 0.0
        %2808 = vmatpush1.msra.mxu0 0.0
        %2809 = vmatprep.subr.mxu0 0.0
        %2810 = vmatpush1.msra.mxu0 0.0
        %2811 = vmatprep.subr.mxu0 0.0
        %2812 = vmatpush1.msra.mxu0 0.0
        %2813 = vmatprep.subr.mxu0 0.0
        %2814 = vmatpush1.msra.mxu0 0.0
        %2815 = vmatprep.subr.mxu0 0.0
        %2816 = vmatpush1.msra.mxu0 0.0
        %2817 = vmatprep.subr.mxu0 0.0
        %2818 = vmatpush1.msra.mxu0 0.0
        %2819 = vmatprep.subr.mxu0 0.0
        %2820 = vmatpush1.msra.mxu0 0.0
        %2821 = vmatprep.subr.mxu0 0.0
        %2822 = vmatpush1.msra.mxu0 0.0
        %2823 = vmatprep.subr.mxu0 0.0
        %2824 = vmatpush1.msra.mxu0 0.0
        %2825 = vmatprep.subr.mxu0 0.0
        %2826 = vmatpush1.msra.mxu0 0.0
        %2827 = vmatprep.subr.mxu0 0.0
        %2828 = vmatpush1.msra.mxu0 0.0
        %2829 = vmatprep.mubr.f32.mxu0 0.0
        %2830 = vmatmul.mubr.f32.gmra.mrb[0].mxu0 %v2763
        %v2831 = vpop.f32.mrb[0].mxu0
        %v2832 = vadd.f32 0.0, %v2831
        %v2833 = vpop.f32.mrb[0].mxu0
        %2834 = vdwg.mxu0
        %v2836 = vsel %vm1280, %v2659, 0
        %2838 = vmatprep.subr.mxu0 0.0
        %2839 = vmatpush1.msra.mxu0 %v1212
        %2840 = vmatprep.subr.mxu0 0.0
        %2841 = vmatpush1.msra.mxu0 0.0
        %2842 = vmatprep.subr.mxu0 0.0
        %2843 = vmatpush1.msra.mxu0 0.0
        %2844 = vmatprep.subr.mxu0 0.0
        %2845 = vmatpush1.msra.mxu0 0.0
        %2846 = vmatprep.subr.mxu0 0.0
        %2847 = vmatpush1.msra.mxu0 0.0
        %2848 = vmatprep.subr.mxu0 0.0
        %2849 = vmatpush1.msra.mxu0 0.0
        %2850 = vmatprep.subr.mxu0 0.0
        %2851 = vmatpush1.msra.mxu0 0.0
        %2852 = vmatprep.subr.mxu0 0.0
        %2853 = vmatpush1.msra.mxu0 0.0
        %2854 = vmatprep.subr.mxu0 0.0
        %2855 = vmatpush1.msra.mxu0 0.0
        %2856 = vmatprep.subr.mxu0 0.0
        %2857 = vmatpush1.msra.mxu0 0.0
        %2858 = vmatprep.subr.mxu0 0.0
        %2859 = vmatpush1.msra.mxu0 0.0
        %2860 = vmatprep.subr.mxu0 0.0
        %2861 = vmatpush1.msra.mxu0 0.0
        %2862 = vmatprep.subr.mxu0 0.0
        %2863 = vmatpush1.msra.mxu0 0.0
        %2864 = vmatprep.subr.mxu0 0.0
        %2865 = vmatpush1.msra.mxu0 0.0
        %2866 = vmatprep.subr.mxu0 0.0
        %2867 = vmatpush1.msra.mxu0 0.0
        %2868 = vmatprep.subr.mxu0 0.0
        %2869 = vmatpush1.msra.mxu0 0.0
        %2870 = vmatprep.subr.mxu0 0.0
        %2871 = vmatpush1.msra.mxu0 0.0
        %2872 = vmatprep.subr.mxu0 0.0
        %2873 = vmatpush1.msra.mxu0 0.0
        %2874 = vmatprep.subr.mxu0 0.0
        %2875 = vmatpush1.msra.mxu0 0.0
        %2876 = vmatprep.subr.mxu0 0.0
        %2877 = vmatpush1.msra.mxu0 0.0
        %2878 = vmatprep.subr.mxu0 0.0
        %2879 = vmatpush1.msra.mxu0 0.0
        %2880 = vmatprep.subr.mxu0 0.0
        %2881 = vmatpush1.msra.mxu0 0.0
        %2882 = vmatprep.subr.mxu0 0.0
        %2883 = vmatpush1.msra.mxu0 0.0
        %2884 = vmatprep.subr.mxu0 0.0
        %2885 = vmatpush1.msra.mxu0 0.0
        %2886 = vmatprep.subr.mxu0 0.0
        %2887 = vmatpush1.msra.mxu0 0.0
        %2888 = vmatprep.subr.mxu0 0.0
        %2889 = vmatpush1.msra.mxu0 0.0
        %2890 = vmatprep.subr.mxu0 0.0
        %2891 = vmatpush1.msra.mxu0 0.0
        %2892 = vmatprep.subr.mxu0 0.0
        %2893 = vmatpush1.msra.mxu0 0.0
        %2894 = vmatprep.subr.mxu0 0.0
        %2895 = vmatpush1.msra.mxu0 0.0
        %2896 = vmatprep.subr.mxu0 0.0
        %2897 = vmatpush1.msra.mxu0 0.0
        %2898 = vmatprep.subr.mxu0 0.0
        %2899 = vmatpush1.msra.mxu0 0.0
        %2900 = vmatprep.subr.mxu0 0.0
        %2901 = vmatpush1.msra.mxu0 0.0
        %2902 = vmatprep.mubr.f32.mxu0 0.0
        %2903 = vmatmul.mubr.f32.gmra.mrb[0].mxu0 %v2836
        %v2904 = vpop.f32.mrb[0].mxu0
        %v2905 = vadd.f32 0.0, %v2904
        %v2906 = vpop.f32.mrb[0].mxu0
        %2907 = vdwg.mxu0
        %v2909 = vsel %vm1280, %v2660, 0
        %2911 = vmatprep.subr.mxu0 0.0
        %2912 = vmatpush1.msra.mxu0 %v1217
        %2913 = vmatprep.subr.mxu0 0.0
        %2914 = vmatpush1.msra.mxu0 0.0
        %2915 = vmatprep.subr.mxu0 0.0
        %2916 = vmatpush1.msra.mxu0 0.0
        %2917 = vmatprep.subr.mxu0 0.0
        %2918 = vmatpush1.msra.mxu0 0.0
        %2919 = vmatprep.subr.mxu0 0.0
        %2920 = vmatpush1.msra.mxu0 0.0
        %2921 = vmatprep.subr.mxu0 0.0
        %2922 = vmatpush1.msra.mxu0 0.0
        %2923 = vmatprep.subr.mxu0 0.0
        %2924 = vmatpush1.msra.mxu0 0.0
        %2925 = vmatprep.subr.mxu0 0.0
        %2926 = vmatpush1.msra.mxu0 0.0
        %2927 = vmatprep.subr.mxu0 0.0
        %2928 = vmatpush1.msra.mxu0 0.0
        %2929 = vmatprep.subr.mxu0 0.0
        %2930 = vmatpush1.msra.mxu0 0.0
        %2931 = vmatprep.subr.mxu0 0.0
        %2932 = vmatpush1.msra.mxu0 0.0
        %2933 = vmatprep.subr.mxu0 0.0
        %2934 = vmatpush1.msra.mxu0 0.0
        %2935 = vmatprep.subr.mxu0 0.0
        %2936 = vmatpush1.msra.mxu0 0.0
        %2937 = vmatprep.subr.mxu0 0.0
        %2938 = vmatpush1.msra.mxu0 0.0
        %2939 = vmatprep.subr.mxu0 0.0
        %2940 = vmatpush1.msra.mxu0 0.0
        %2941 = vmatprep.subr.mxu0 0.0
        %2942 = vmatpush1.msra.mxu0 0.0
        %2943 = vmatprep.subr.mxu0 0.0
        %2944 = vmatpush1.msra.mxu0 0.0
        %2945 = vmatprep.subr.mxu0 0.0
        %2946 = vmatpush1.msra.mxu0 0.0
        %2947 = vmatprep.subr.mxu0 0.0
        %2948 = vmatpush1.msra.mxu0 0.0
        %2949 = vmatprep.subr.mxu0 0.0
        %2950 = vmatpush1.msra.mxu0 0.0
        %2951 = vmatprep.subr.mxu0 0.0
        %2952 = vmatpush1.msra.mxu0 0.0
        %2953 = vmatprep.subr.mxu0 0.0
        %2954 = vmatpush1.msra.mxu0 0.0
        %2955 = vmatprep.subr.mxu0 0.0
        %2956 = vmatpush1.msra.mxu0 0.0
        %2957 = vmatprep.subr.mxu0 0.0
        %2958 = vmatpush1.msra.mxu0 0.0
        %2959 = vmatprep.subr.mxu0 0.0
        %2960 = vmatpush1.msra.mxu0 0.0
        %2961 = vmatprep.subr.mxu0 0.0
        %2962 = vmatpush1.msra.mxu0 0.0
        %2963 = vmatprep.subr.mxu0 0.0
        %2964 = vmatpush1.msra.mxu0 0.0
        %2965 = vmatprep.subr.mxu0 0.0
        %2966 = vmatpush1.msra.mxu0 0.0
        %2967 = vmatprep.subr.mxu0 0.0
        %2968 = vmatpush1.msra.mxu0 0.0
        %2969 = vmatprep.subr.mxu0 0.0
        %2970 = vmatpush1.msra.mxu0 0.0
        %2971 = vmatprep.subr.mxu0 0.0
        %2972 = vmatpush1.msra.mxu0 0.0
        %2973 = vmatprep.subr.mxu0 0.0
        %2974 = vmatpush1.msra.mxu0 0.0
        %2975 = vmatprep.mubr.f32.mxu0 0.0
        %2976 = vmatmul.mubr.f32.gmra.mrb[0].mxu0 %v2909
        %v2977 = vpop.f32.mrb[0].mxu0
        %v2978 = vadd.f32 0.0, %v2977
        %v2979 = vpop.f32.mrb[0].mxu0
        %2980 = vdwg.mxu0
        %v2982 = vsel %vm1280, %v2661, 0
        %2984 = vmatprep.subr.mxu0 0.0
        %2985 = vmatpush1.msra.mxu0 %v1222
        %2986 = vmatprep.subr.mxu0 0.0
        %2987 = vmatpush1.msra.mxu0 0.0
        %2988 = vmatprep.subr.mxu0 0.0
        %2989 = vmatpush1.msra.mxu0 0.0
        %2990 = vmatprep.subr.mxu0 0.0
        %2991 = vmatpush1.msra.mxu0 0.0
        %2992 = vmatprep.subr.mxu0 0.0
        %2993 = vmatpush1.msra.mxu0 0.0
        %2994 = vmatprep.subr.mxu0 0.0
        %2995 = vmatpush1.msra.mxu0 0.0
        %2996 = vmatprep.subr.mxu0 0.0
        %2997 = vmatpush1.msra.mxu0 0.0
        %2998 = vmatprep.subr.mxu0 0.0
        %2999 = vmatpush1.msra.mxu0 0.0
        %3000 = vmatprep.subr.mxu0 0.0
        %3001 = vmatpush1.msra.mxu0 0.0
        %3002 = vmatprep.subr.mxu0 0.0
        %3003 = vmatpush1.msra.mxu0 0.0
        %3004 = vmatprep.subr.mxu0 0.0
        %3005 = vmatpush1.msra.mxu0 0.0
        %3006 = vmatprep.subr.mxu0 0.0
        %3007 = vmatpush1.msra.mxu0 0.0
        %3008 = vmatprep.subr.mxu0 0.0
        %3009 = vmatpush1.msra.mxu0 0.0
        %3010 = vmatprep.subr.mxu0 0.0
        %3011 = vmatpush1.msra.mxu0 0.0
        %3012 = vmatprep.subr.mxu0 0.0
        %3013 = vmatpush1.msra.mxu0 0.0
        %3014 = vmatprep.subr.mxu0 0.0
        %3015 = vmatpush1.msra.mxu0 0.0
        %3016 = vmatprep.subr.mxu0 0.0
        %3017 = vmatpush1.msra.mxu0 0.0
        %3018 = vmatprep.subr.mxu0 0.0
        %3019 = vmatpush1.msra.mxu0 0.0
        %3020 = vmatprep.subr.mxu0 0.0
        %3021 = vmatpush1.msra.mxu0 0.0
        %3022 = vmatprep.subr.mxu0 0.0
        %3023 = vmatpush1.msra.mxu0 0.0
        %3024 = vmatprep.subr.mxu0 0.0
        %3025 = vmatpush1.msra.mxu0 0.0
        %3026 = vmatprep.subr.mxu0 0.0
        %3027 = vmatpush1.msra.mxu0 0.0
        %3028 = vmatprep.subr.mxu0 0.0
        %3029 = vmatpush1.msra.mxu0 0.0
        %3030 = vmatprep.subr.mxu0 0.0
        %3031 = vmatpush1.msra.mxu0 0.0
        %3032 = vmatprep.subr.mxu0 0.0
        %3033 = vmatpush1.msra.mxu0 0.0
        %3034 = vmatprep.subr.mxu0 0.0
        %3035 = vmatpush1.msra.mxu0 0.0
        %3036 = vmatprep.subr.mxu0 0.0
        %3037 = vmatpush1.msra.mxu0 0.0
        %3038 = vmatprep.subr.mxu0 0.0
        %3039 = vmatpush1.msra.mxu0 0.0
        %3040 = vmatprep.subr.mxu0 0.0
        %3041 = vmatpush1.msra.mxu0 0.0
        %3042 = vmatprep.subr.mxu0 0.0
        %3043 = vmatpush1.msra.mxu0 0.0
        %3044 = vmatprep.subr.mxu0 0.0
        %3045 = vmatpush1.msra.mxu0 0.0
        %3046 = vmatprep.subr.mxu0 0.0
        %3047 = vmatpush1.msra.mxu0 0.0
        %3048 = vmatprep.mubr.f32.mxu0 0.0
        %3049 = vmatmul.mubr.f32.gmra.mrb[0].mxu0 %v2982
        %v3050 = vpop.f32.mrb[0].mxu0
        %v3051 = vadd.f32 0.0, %v3050
        %v3052 = vpop.f32.mrb[0].mxu0
        %3053 = vdwg.mxu0
        %v3055 = vsel %vm1280, %v2662, 0
        %3057 = vmatprep.subr.mxu0 0.0
        %3058 = vmatpush1.msra.mxu0 %v1227
        %3059 = vmatprep.subr.mxu0 0.0
        %3060 = vmatpush1.msra.mxu0 0.0
        %3061 = vmatprep.subr.mxu0 0.0
        %3062 = vmatpush1.msra.mxu0 0.0
        %3063 = vmatprep.subr.mxu0 0.0
        %3064 = vmatpush1.msra.mxu0 0.0
        %3065 = vmatprep.subr.mxu0 0.0
        %3066 = vmatpush1.msra.mxu0 0.0
        %3067 = vmatprep.subr.mxu0 0.0
        %3068 = vmatpush1.msra.mxu0 0.0
        %3069 = vmatprep.subr.mxu0 0.0
        %3070 = vmatpush1.msra.mxu0 0.0
        %3071 = vmatprep.subr.mxu0 0.0
        %3072 = vmatpush1.msra.mxu0 0.0
        %3073 = vmatprep.subr.mxu0 0.0
        %3074 = vmatpush1.msra.mxu0 0.0
        %3075 = vmatprep.subr.mxu0 0.0
        %3076 = vmatpush1.msra.mxu0 0.0
        %3077 = vmatprep.subr.mxu0 0.0
        %3078 = vmatpush1.msra.mxu0 0.0
        %3079 = vmatprep.subr.mxu0 0.0
        %3080 = vmatpush1.msra.mxu0 0.0
        %3081 = vmatprep.subr.mxu0 0.0
        %3082 = vmatpush1.msra.mxu0 0.0
        %3083 = vmatprep.subr.mxu0 0.0
        %3084 = vmatpush1.msra.mxu0 0.0
        %3085 = vmatprep.subr.mxu0 0.0
        %3086 = vmatpush1.msra.mxu0 0.0
        %3087 = vmatprep.subr.mxu0 0.0
        %3088 = vmatpush1.msra.mxu0 0.0
        %3089 = vmatprep.subr.mxu0 0.0
        %3090 = vmatpush1.msra.mxu0 0.0
        %3091 = vmatprep.subr.mxu0 0.0
        %3092 = vmatpush1.msra.mxu0 0.0
        %3093 = vmatprep.subr.mxu0 0.0
        %3094 = vmatpush1.msra.mxu0 0.0
        %3095 = vmatprep.subr.mxu0 0.0
        %3096 = vmatpush1.msra.mxu0 0.0
        %3097 = vmatprep.subr.mxu0 0.0
        %3098 = vmatpush1.msra.mxu0 0.0
        %3099 = vmatprep.subr.mxu0 0.0
        %3100 = vmatpush1.msra.mxu0 0.0
        %3101 = vmatprep.subr.mxu0 0.0
        %3102 = vmatpush1.msra.mxu0 0.0
        %3103 = vmatprep.subr.mxu0 0.0
        %3104 = vmatpush1.msra.mxu0 0.0
        %3105 = vmatprep.subr.mxu0 0.0
        %3106 = vmatpush1.msra.mxu0 0.0
        %3107 = vmatprep.subr.mxu0 0.0
        %3108 = vmatpush1.msra.mxu0 0.0
        %3109 = vmatprep.subr.mxu0 0.0
        %3110 = vmatpush1.msra.mxu0 0.0
        %3111 = vmatprep.subr.mxu0 0.0
        %3112 = vmatpush1.msra.mxu0 0.0
        %3113 = vmatprep.subr.mxu0 0.0
        %3114 = vmatpush1.msra.mxu0 0.0
        %3115 = vmatprep.subr.mxu0 0.0
        %3116 = vmatpush1.msra.mxu0 0.0
        %3117 = vmatprep.subr.mxu0 0.0
        %3118 = vmatpush1.msra.mxu0 0.0
        %3119 = vmatprep.subr.mxu0 0.0
        %3120 = vmatpush1.msra.mxu0 0.0
        %3121 = vmatprep.mubr.f32.mxu0 0.0
        %3122 = vmatmul.mubr.f32.gmra.mrb[0].mxu0 %v3055
        %v3123 = vpop.f32.mrb[0].mxu0
        %v3124 = vadd.f32 0.0, %v3123
        %v3125 = vpop.f32.mrb[0].mxu0
        %3126 = vdwg.mxu0
        %v3128 = vsel %vm1280, %v2663, 0
        %3130 = vmatprep.subr.mxu0 0.0
        %3131 = vmatpush1.msra.mxu0 %v1232
        %3132 = vmatprep.subr.mxu0 0.0
        %3133 = vmatpush1.msra.mxu0 0.0
        %3134 = vmatprep.subr.mxu0 0.0
        %3135 = vmatpush1.msra.mxu0 0.0
        %3136 = vmatprep.subr.mxu0 0.0
        %3137 = vmatpush1.msra.mxu0 0.0
        %3138 = vmatprep.subr.mxu0 0.0
        %3139 = vmatpush1.msra.mxu0 0.0
        %3140 = vmatprep.subr.mxu0 0.0
        %3141 = vmatpush1.msra.mxu0 0.0
        %3142 = vmatprep.subr.mxu0 0.0
        %3143 = vmatpush1.msra.mxu0 0.0
        %3144 = vmatprep.subr.mxu0 0.0
        %3145 = vmatpush1.msra.mxu0 0.0
        %3146 = vmatprep.subr.mxu0 0.0
        %3147 = vmatpush1.msra.mxu0 0.0
        %3148 = vmatprep.subr.mxu0 0.0
        %3149 = vmatpush1.msra.mxu0 0.0
        %3150 = vmatprep.subr.mxu0 0.0
        %3151 = vmatpush1.msra.mxu0 0.0
        %3152 = vmatprep.subr.mxu0 0.0
        %3153 = vmatpush1.msra.mxu0 0.0
        %3154 = vmatprep.subr.mxu0 0.0
        %3155 = vmatpush1.msra.mxu0 0.0
        %3156 = vmatprep.subr.mxu0 0.0
        %3157 = vmatpush1.msra.mxu0 0.0
        %3158 = vmatprep.subr.mxu0 0.0
        %3159 = vmatpush1.msra.mxu0 0.0
        %3160 = vmatprep.subr.mxu0 0.0
        %3161 = vmatpush1.msra.mxu0 0.0
        %3162 = vmatprep.subr.mxu0 0.0
        %3163 = vmatpush1.msra.mxu0 0.0
        %3164 = vmatprep.subr.mxu0 0.0
        %3165 = vmatpush1.msra.mxu0 0.0
        %3166 = vmatprep.subr.mxu0 0.0
        %3167 = vmatpush1.msra.mxu0 0.0
        %3168 = vmatprep.subr.mxu0 0.0
        %3169 = vmatpush1.msra.mxu0 0.0
        %3170 = vmatprep.subr.mxu0 0.0
        %3171 = vmatpush1.msra.mxu0 0.0
        %3172 = vmatprep.subr.mxu0 0.0
        %3173 = vmatpush1.msra.mxu0 0.0
        %3174 = vmatprep.subr.mxu0 0.0
        %3175 = vmatpush1.msra.mxu0 0.0
        %3176 = vmatprep.subr.mxu0 0.0
        %3177 = vmatpush1.msra.mxu0 0.0
        %3178 = vmatprep.subr.mxu0 0.0
        %3179 = vmatpush1.msra.mxu0 0.0
        %3180 = vmatprep.subr.mxu0 0.0
        %3181 = vmatpush1.msra.mxu0 0.0
        %3182 = vmatprep.subr.mxu0 0.0
        %3183 = vmatpush1.msra.mxu0 0.0
        %3184 = vmatprep.subr.mxu0 0.0
        %3185 = vmatpush1.msra.mxu0 0.0
        %3186 = vmatprep.subr.mxu0 0.0
        %3187 = vmatpush1.msra.mxu0 0.0
        %3188 = vmatprep.subr.mxu0 0.0
        %3189 = vmatpush1.msra.mxu0 0.0
        %3190 = vmatprep.subr.mxu0 0.0
        %3191 = vmatpush1.msra.mxu0 0.0
        %3192 = vmatprep.subr.mxu0 0.0
        %3193 = vmatpush1.msra.mxu0 0.0
        %3194 = vmatprep.mubr.f32.mxu0 0.0
        %3195 = vmatmul.mubr.f32.gmra.mrb[0].mxu0 %v3128
        %v3196 = vpop.f32.mrb[0].mxu0
        %v3197 = vadd.f32 0.0, %v3196
        %v3198 = vpop.f32.mrb[0].mxu0
        %3199 = vdwg.mxu0
        %v3201 = vsel %vm1280, %v2664, 0
        %3203 = vmatprep.subr.mxu0 0.0
        %3204 = vmatpush1.msra.mxu0 %v1237
        %3205 = vmatprep.subr.mxu0 0.0
        %3206 = vmatpush1.msra.mxu0 0.0
        %3207 = vmatprep.subr.mxu0 0.0
        %3208 = vmatpush1.msra.mxu0 0.0
        %3209 = vmatprep.subr.mxu0 0.0
        %3210 = vmatpush1.msra.mxu0 0.0
        %3211 = vmatprep.subr.mxu0 0.0
        %3212 = vmatpush1.msra.mxu0 0.0
        %3213 = vmatprep.subr.mxu0 0.0
        %3214 = vmatpush1.msra.mxu0 0.0
        %3215 = vmatprep.subr.mxu0 0.0
        %3216 = vmatpush1.msra.mxu0 0.0
        %3217 = vmatprep.subr.mxu0 0.0
        %3218 = vmatpush1.msra.mxu0 0.0
        %3219 = vmatprep.subr.mxu0 0.0
        %3220 = vmatpush1.msra.mxu0 0.0
        %3221 = vmatprep.subr.mxu0 0.0
        %3222 = vmatpush1.msra.mxu0 0.0
        %3223 = vmatprep.subr.mxu0 0.0
        %3224 = vmatpush1.msra.mxu0 0.0
        %3225 = vmatprep.subr.mxu0 0.0
        %3226 = vmatpush1.msra.mxu0 0.0
        %3227 = vmatprep.subr.mxu0 0.0
        %3228 = vmatpush1.msra.mxu0 0.0
        %3229 = vmatprep.subr.mxu0 0.0
        %3230 = vmatpush1.msra.mxu0 0.0
        %3231 = vmatprep.subr.mxu0 0.0
        %3232 = vmatpush1.msra.mxu0 0.0
        %3233 = vmatprep.subr.mxu0 0.0
        %3234 = vmatpush1.msra.mxu0 0.0
        %3235 = vmatprep.subr.mxu0 0.0
        %3236 = vmatpush1.msra.mxu0 0.0
        %3237 = vmatprep.subr.mxu0 0.0
        %3238 = vmatpush1.msra.mxu0 0.0
        %3239 = vmatprep.subr.mxu0 0.0
        %3240 = vmatpush1.msra.mxu0 0.0
        %3241 = vmatprep.subr.mxu0 0.0
        %3242 = vmatpush1.msra.mxu0 0.0
        %3243 = vmatprep.subr.mxu0 0.0
        %3244 = vmatpush1.msra.mxu0 0.0
        %3245 = vmatprep.subr.mxu0 0.0
        %3246 = vmatpush1.msra.mxu0 0.0
        %3247 = vmatprep.subr.mxu0 0.0
        %3248 = vmatpush1.msra.mxu0 0.0
        %3249 = vmatprep.subr.mxu0 0.0
        %3250 = vmatpush1.msra.mxu0 0.0
        %3251 = vmatprep.subr.mxu0 0.0
        %3252 = vmatpush1.msra.mxu0 0.0
        %3253 = vmatprep.subr.mxu0 0.0
        %3254 = vmatpush1.msra.mxu0 0.0
        %3255 = vmatprep.subr.mxu0 0.0
        %3256 = vmatpush1.msra.mxu0 0.0
        %3257 = vmatprep.subr.mxu0 0.0
        %3258 = vmatpush1.msra.mxu0 0.0
        %3259 = vmatprep.subr.mxu0 0.0
        %3260 = vmatpush1.msra.mxu0 0.0
        %3261 = vmatprep.subr.mxu0 0.0
        %3262 = vmatpush1.msra.mxu0 0.0
        %3263 = vmatprep.subr.mxu0 0.0
        %3264 = vmatpush1.msra.mxu0 0.0
        %3265 = vmatprep.subr.mxu0 0.0
        %3266 = vmatpush1.msra.mxu0 0.0
        %3267 = vmatprep.mubr.f32.mxu0 0.0
        %3268 = vmatmul.mubr.f32.gmra.mrb[0].mxu0 %v3201
        %v3269 = vpop.f32.mrb[0].mxu0
        %v3270 = vadd.f32 0.0, %v3269
        %v3271 = vpop.f32.mrb[0].mxu0
        %3272 = vdwg.mxu0
        %v3274 = vsel %vm1280, %v2665, 0
        %3276 = vmatprep.subr.mxu0 0.0
        %3277 = vmatpush1.msra.mxu0 %v1242
        %3278 = vmatprep.subr.mxu0 0.0
        %3279 = vmatpush1.msra.mxu0 0.0
        %3280 = vmatprep.subr.mxu0 0.0
        %3281 = vmatpush1.msra.mxu0 0.0
        %3282 = vmatprep.subr.mxu0 0.0
        %3283 = vmatpush1.msra.mxu0 0.0
        %3284 = vmatprep.subr.mxu0 0.0
        %3285 = vmatpush1.msra.mxu0 0.0
        %3286 = vmatprep.subr.mxu0 0.0
        %3287 = vmatpush1.msra.mxu0 0.0
        %3288 = vmatprep.subr.mxu0 0.0
        %3289 = vmatpush1.msra.mxu0 0.0
        %3290 = vmatprep.subr.mxu0 0.0
        %3291 = vmatpush1.msra.mxu0 0.0
        %3292 = vmatprep.subr.mxu0 0.0
        %3293 = vmatpush1.msra.mxu0 0.0
        %3294 = vmatprep.subr.mxu0 0.0
        %3295 = vmatpush1.msra.mxu0 0.0
        %3296 = vmatprep.subr.mxu0 0.0
        %3297 = vmatpush1.msra.mxu0 0.0
        %3298 = vmatprep.subr.mxu0 0.0
        %3299 = vmatpush1.msra.mxu0 0.0
        %3300 = vmatprep.subr.mxu0 0.0
        %3301 = vmatpush1.msra.mxu0 0.0
        %3302 = vmatprep.subr.mxu0 0.0
        %3303 = vmatpush1.msra.mxu0 0.0
        %3304 = vmatprep.subr.mxu0 0.0
        %3305 = vmatpush1.msra.mxu0 0.0
        %3306 = vmatprep.subr.mxu0 0.0
        %3307 = vmatpush1.msra.mxu0 0.0
        %3308 = vmatprep.subr.mxu0 0.0
        %3309 = vmatpush1.msra.mxu0 0.0
        %3310 = vmatprep.subr.mxu0 0.0
        %3311 = vmatpush1.msra.mxu0 0.0
        %3312 = vmatprep.subr.mxu0 0.0
        %3313 = vmatpush1.msra.mxu0 0.0
        %3314 = vmatprep.subr.mxu0 0.0
        %3315 = vmatpush1.msra.mxu0 0.0
        %3316 = vmatprep.subr.mxu0 0.0
        %3317 = vmatpush1.msra.mxu0 0.0
        %3318 = vmatprep.subr.mxu0 0.0
        %3319 = vmatpush1.msra.mxu0 0.0
        %3320 = vmatprep.subr.mxu0 0.0
        %3321 = vmatpush1.msra.mxu0 0.0
        %3322 = vmatprep.subr.mxu0 0.0
        %3323 = vmatpush1.msra.mxu0 0.0
        %3324 = vmatprep.subr.mxu0 0.0
        %3325 = vmatpush1.msra.mxu0 0.0
        %3326 = vmatprep.subr.mxu0 0.0
        %3327 = vmatpush1.msra.mxu0 0.0
        %3328 = vmatprep.subr.mxu0 0.0
        %3329 = vmatpush1.msra.mxu0 0.0
        %3330 = vmatprep.subr.mxu0 0.0
        %3331 = vmatpush1.msra.mxu0 0.0
        %3332 = vmatprep.subr.mxu0 0.0
        %3333 = vmatpush1.msra.mxu0 0.0
        %3334 = vmatprep.subr.mxu0 0.0
        %3335 = vmatpush1.msra.mxu0 0.0
        %3336 = vmatprep.subr.mxu0 0.0
        %3337 = vmatpush1.msra.mxu0 0.0
        %3338 = vmatprep.subr.mxu0 0.0
        %3339 = vmatpush1.msra.mxu0 0.0
        %3340 = vmatprep.mubr.f32.mxu0 0.0
        %3341 = vmatmul.mubr.f32.gmra.mrb[0].mxu0 %v3274
        %v3342 = vpop.f32.mrb[0].mxu0
        %v3343 = vadd.f32 0.0, %v3342
        %v3344 = vpop.f32.mrb[0].mxu0
        %3345 = vdwg.mxu0
        %v3347 = vsel %vm1280, %v2666, 0
        %3349 = vmatprep.subr.mxu0 0.0
        %3350 = vmatpush1.msra.mxu0 %v1247
        %3351 = vmatprep.subr.mxu0 0.0
        %3352 = vmatpush1.msra.mxu0 0.0
        %3353 = vmatprep.subr.mxu0 0.0
        %3354 = vmatpush1.msra.mxu0 0.0
        %3355 = vmatprep.subr.mxu0 0.0
        %3356 = vmatpush1.msra.mxu0 0.0
        %3357 = vmatprep.subr.mxu0 0.0
        %3358 = vmatpush1.msra.mxu0 0.0
        %3359 = vmatprep.subr.mxu0 0.0
        %3360 = vmatpush1.msra.mxu0 0.0
        %3361 = vmatprep.subr.mxu0 0.0
        %3362 = vmatpush1.msra.mxu0 0.0
        %3363 = vmatprep.subr.mxu0 0.0
        %3364 = vmatpush1.msra.mxu0 0.0
        %3365 = vmatprep.subr.mxu0 0.0
        %3366 = vmatpush1.msra.mxu0 0.0
        %3367 = vmatprep.subr.mxu0 0.0
        %3368 = vmatpush1.msra.mxu0 0.0
        %3369 = vmatprep.subr.mxu0 0.0
        %3370 = vmatpush1.msra.mxu0 0.0
        %3371 = vmatprep.subr.mxu0 0.0
        %3372 = vmatpush1.msra.mxu0 0.0
        %3373 = vmatprep.subr.mxu0 0.0
        %3374 = vmatpush1.msra.mxu0 0.0
        %3375 = vmatprep.subr.mxu0 0.0
        %3376 = vmatpush1.msra.mxu0 0.0
        %3377 = vmatprep.subr.mxu0 0.0
        %3378 = vmatpush1.msra.mxu0 0.0
        %3379 = vmatprep.subr.mxu0 0.0
        %3380 = vmatpush1.msra.mxu0 0.0
        %3381 = vmatprep.subr.mxu0 0.0
        %3382 = vmatpush1.msra.mxu0 0.0
        %3383 = vmatprep.subr.mxu0 0.0
        %3384 = vmatpush1.msra.mxu0 0.0
        %3385 = vmatprep.subr.mxu0 0.0
        %3386 = vmatpush1.msra.mxu0 0.0
        %3387 = vmatprep.subr.mxu0 0.0
        %3388 = vmatpush1.msra.mxu0 0.0
        %3389 = vmatprep.subr.mxu0 0.0
        %3390 = vmatpush1.msra.mxu0 0.0
        %3391 = vmatprep.subr.mxu0 0.0
        %3392 = vmatpush1.msra.mxu0 0.0
        %3393 = vmatprep.subr.mxu0 0.0
        %3394 = vmatpush1.msra.mxu0 0.0
        %3395 = vmatprep.subr.mxu0 0.0
        %3396 = vmatpush1.msra.mxu0 0.0
        %3397 = vmatprep.subr.mxu0 0.0
        %3398 = vmatpush1.msra.mxu0 0.0
        %3399 = vmatprep.subr.mxu0 0.0
        %3400 = vmatpush1.msra.mxu0 0.0
        %3401 = vmatprep.subr.mxu0 0.0
        %3402 = vmatpush1.msra.mxu0 0.0
        %3403 = vmatprep.subr.mxu0 0.0
        %3404 = vmatpush1.msra.mxu0 0.0
        %3405 = vmatprep.subr.mxu0 0.0
        %3406 = vmatpush1.msra.mxu0 0.0
        %3407 = vmatprep.subr.mxu0 0.0
        %3408 = vmatpush1.msra.mxu0 0.0
        %3409 = vmatprep.subr.mxu0 0.0
        %3410 = vmatpush1.msra.mxu0 0.0
        %3411 = vmatprep.subr.mxu0 0.0
        %3412 = vmatpush1.msra.mxu0 0.0
        %3413 = vmatprep.mubr.f32.mxu0 0.0
        %3414 = vmatmul.mubr.f32.gmra.mrb[0].mxu0 %v3347
        %v3415 = vpop.f32.mrb[0].mxu0
        %v3416 = vadd.f32 0.0, %v3415
        %v3417 = vpop.f32.mrb[0].mxu0
        %3418 = vdwg.mxu0
        %v3420 = vsel %vm1280, %v2667, 0
        %3422 = vmatprep.subr.mxu0 0.0
        %3423 = vmatpush1.msra.mxu0 %v1252
        %3424 = vmatprep.subr.mxu0 0.0
        %3425 = vmatpush1.msra.mxu0 0.0
        %3426 = vmatprep.subr.mxu0 0.0
        %3427 = vmatpush1.msra.mxu0 0.0
        %3428 = vmatprep.subr.mxu0 0.0
        %3429 = vmatpush1.msra.mxu0 0.0
        %3430 = vmatprep.subr.mxu0 0.0
        %3431 = vmatpush1.msra.mxu0 0.0
        %3432 = vmatprep.subr.mxu0 0.0
        %3433 = vmatpush1.msra.mxu0 0.0
        %3434 = vmatprep.subr.mxu0 0.0
        %3435 = vmatpush1.msra.mxu0 0.0
        %3436 = vmatprep.subr.mxu0 0.0
        %3437 = vmatpush1.msra.mxu0 0.0
        %3438 = vmatprep.subr.mxu0 0.0
        %3439 = vmatpush1.msra.mxu0 0.0
        %3440 = vmatprep.subr.mxu0 0.0
        %3441 = vmatpush1.msra.mxu0 0.0
        %3442 = vmatprep.subr.mxu0 0.0
        %3443 = vmatpush1.msra.mxu0 0.0
        %3444 = vmatprep.subr.mxu0 0.0
        %3445 = vmatpush1.msra.mxu0 0.0
        %3446 = vmatprep.subr.mxu0 0.0
        %3447 = vmatpush1.msra.mxu0 0.0
        %3448 = vmatprep.subr.mxu0 0.0
        %3449 = vmatpush1.msra.mxu0 0.0
        %3450 = vmatprep.subr.mxu0 0.0
        %3451 = vmatpush1.msra.mxu0 0.0
        %3452 = vmatprep.subr.mxu0 0.0
        %3453 = vmatpush1.msra.mxu0 0.0
        %3454 = vmatprep.subr.mxu0 0.0
        %3455 = vmatpush1.msra.mxu0 0.0
        %3456 = vmatprep.subr.mxu0 0.0
        %3457 = vmatpush1.msra.mxu0 0.0
        %3458 = vmatprep.subr.mxu0 0.0
        %3459 = vmatpush1.msra.mxu0 0.0
        %3460 = vmatprep.subr.mxu0 0.0
        %3461 = vmatpush1.msra.mxu0 0.0
        %3462 = vmatprep.subr.mxu0 0.0
        %3463 = vmatpush1.msra.mxu0 0.0
        %3464 = vmatprep.subr.mxu0 0.0
        %3465 = vmatpush1.msra.mxu0 0.0
        %3466 = vmatprep.subr.mxu0 0.0
        %3467 = vmatpush1.msra.mxu0 0.0
        %3468 = vmatprep.subr.mxu0 0.0
        %3469 = vmatpush1.msra.mxu0 0.0
        %3470 = vmatprep.subr.mxu0 0.0
        %3471 = vmatpush1.msra.mxu0 0.0
        %3472 = vmatprep.subr.mxu0 0.0
        %3473 = vmatpush1.msra.mxu0 0.0
        %3474 = vmatprep.subr.mxu0 0.0
        %3475 = vmatpush1.msra.mxu0 0.0
        %3476 = vmatprep.subr.mxu0 0.0
        %3477 = vmatpush1.msra.mxu0 0.0
        %3478 = vmatprep.subr.mxu0 0.0
        %3479 = vmatpush1.msra.mxu0 0.0
        %3480 = vmatprep.subr.mxu0 0.0
        %3481 = vmatpush1.msra.mxu0 0.0
        %3482 = vmatprep.subr.mxu0 0.0
        %3483 = vmatpush1.msra.mxu0 0.0
        %3484 = vmatprep.subr.mxu0 0.0
        %3485 = vmatpush1.msra.mxu0 0.0
        %3486 = vmatprep.mubr.f32.mxu0 0.0
        %3487 = vmatmul.mubr.f32.gmra.mrb[0].mxu0 %v3420
        %v3488 = vpop.f32.mrb[0].mxu0
        %v3489 = vadd.f32 0.0, %v3488
        %v3490 = vpop.f32.mrb[0].mxu0
        %3491 = vdwg.mxu0
        %v3493 = vsel %vm1280, %v2668, 0
        %3495 = vmatprep.subr.mxu0 0.0
        %3496 = vmatpush1.msra.mxu0 %v1257
        %3497 = vmatprep.subr.mxu0 0.0
        %3498 = vmatpush1.msra.mxu0 0.0
        %3499 = vmatprep.subr.mxu0 0.0
        %3500 = vmatpush1.msra.mxu0 0.0
        %3501 = vmatprep.subr.mxu0 0.0
        %3502 = vmatpush1.msra.mxu0 0.0
        %3503 = vmatprep.subr.mxu0 0.0
        %3504 = vmatpush1.msra.mxu0 0.0
        %3505 = vmatprep.subr.mxu0 0.0
        %3506 = vmatpush1.msra.mxu0 0.0
        %3507 = vmatprep.subr.mxu0 0.0
        %3508 = vmatpush1.msra.mxu0 0.0
        %3509 = vmatprep.subr.mxu0 0.0
        %3510 = vmatpush1.msra.mxu0 0.0
        %3511 = vmatprep.subr.mxu0 0.0
        %3512 = vmatpush1.msra.mxu0 0.0
        %3513 = vmatprep.subr.mxu0 0.0
        %3514 = vmatpush1.msra.mxu0 0.0
        %3515 = vmatprep.subr.mxu0 0.0
        %3516 = vmatpush1.msra.mxu0 0.0
        %3517 = vmatprep.subr.mxu0 0.0
        %3518 = vmatpush1.msra.mxu0 0.0
        %3519 = vmatprep.subr.mxu0 0.0
        %3520 = vmatpush1.msra.mxu0 0.0
        %3521 = vmatprep.subr.mxu0 0.0
        %3522 = vmatpush1.msra.mxu0 0.0
        %3523 = vmatprep.subr.mxu0 0.0
        %3524 = vmatpush1.msra.mxu0 0.0
        %3525 = vmatprep.subr.mxu0 0.0
        %3526 = vmatpush1.msra.mxu0 0.0
        %3527 = vmatprep.subr.mxu0 0.0
        %3528 = vmatpush1.msra.mxu0 0.0
        %3529 = vmatprep.subr.mxu0 0.0
        %3530 = vmatpush1.msra.mxu0 0.0
        %3531 = vmatprep.subr.mxu0 0.0
        %3532 = vmatpush1.msra.mxu0 0.0
        %3533 = vmatprep.subr.mxu0 0.0
        %3534 = vmatpush1.msra.mxu0 0.0
        %3535 = vmatprep.subr.mxu0 0.0
        %3536 = vmatpush1.msra.mxu0 0.0
        %3537 = vmatprep.subr.mxu0 0.0
        %3538 = vmatpush1.msra.mxu0 0.0
        %3539 = vmatprep.subr.mxu0 0.0
        %3540 = vmatpush1.msra.mxu0 0.0
        %3541 = vmatprep.subr.mxu0 0.0
        %3542 = vmatpush1.msra.mxu0 0.0
        %3543 = vmatprep.subr.mxu0 0.0
        %3544 = vmatpush1.msra.mxu0 0.0
        %3545 = vmatprep.subr.mxu0 0.0
        %3546 = vmatpush1.msra.mxu0 0.0
        %3547 = vmatprep.subr.mxu0 0.0
        %3548 = vmatpush1.msra.mxu0 0.0
        %3549 = vmatprep.subr.mxu0 0.0
        %3550 = vmatpush1.msra.mxu0 0.0
        %3551 = vmatprep.subr.mxu0 0.0
        %3552 = vmatpush1.msra.mxu0 0.0
        %3553 = vmatprep.subr.mxu0 0.0
        %3554 = vmatpush1.msra.mxu0 0.0
        %3555 = vmatprep.subr.mxu0 0.0
        %3556 = vmatpush1.msra.mxu0 0.0
        %3557 = vmatprep.subr.mxu0 0.0
        %3558 = vmatpush1.msra.mxu0 0.0
        %3559 = vmatprep.mubr.f32.mxu0 0.0
        %3560 = vmatmul.mubr.f32.gmra.mrb[0].mxu0 %v3493
        %v3561 = vpop.f32.mrb[0].mxu0
        %v3562 = vadd.f32 0.0, %v3561
        %v3563 = vpop.f32.mrb[0].mxu0
        %3564 = vdwg.mxu0
        %v3566 = vsel %vm1280, %v2669, 0
        %3568 = vmatprep.subr.mxu0 0.0
        %3569 = vmatpush1.msra.mxu0 %v1262
        %3570 = vmatprep.subr.mxu0 0.0
        %3571 = vmatpush1.msra.mxu0 0.0
        %3572 = vmatprep.subr.mxu0 0.0
        %3573 = vmatpush1.msra.mxu0 0.0
        %3574 = vmatprep.subr.mxu0 0.0
        %3575 = vmatpush1.msra.mxu0 0.0
        %3576 = vmatprep.subr.mxu0 0.0
        %3577 = vmatpush1.msra.mxu0 0.0
        %3578 = vmatprep.subr.mxu0 0.0
        %3579 = vmatpush1.msra.mxu0 0.0
        %3580 = vmatprep.subr.mxu0 0.0
        %3581 = vmatpush1.msra.mxu0 0.0
        %3582 = vmatprep.subr.mxu0 0.0
        %3583 = vmatpush1.msra.mxu0 0.0
        %3584 = vmatprep.subr.mxu0 0.0
        %3585 = vmatpush1.msra.mxu0 0.0
        %3586 = vmatprep.subr.mxu0 0.0
        %3587 = vmatpush1.msra.mxu0 0.0
        %3588 = vmatprep.subr.mxu0 0.0
        %3589 = vmatpush1.msra.mxu0 0.0
        %3590 = vmatprep.subr.mxu0 0.0
        %3591 = vmatpush1.msra.mxu0 0.0
        %3592 = vmatprep.subr.mxu0 0.0
        %3593 = vmatpush1.msra.mxu0 0.0
        %3594 = vmatprep.subr.mxu0 0.0
        %3595 = vmatpush1.msra.mxu0 0.0
        %3596 = vmatprep.subr.mxu0 0.0
        %3597 = vmatpush1.msra.mxu0 0.0
        %3598 = vmatprep.subr.mxu0 0.0
        %3599 = vmatpush1.msra.mxu0 0.0
        %3600 = vmatprep.subr.mxu0 0.0
        %3601 = vmatpush1.msra.mxu0 0.0
        %3602 = vmatprep.subr.mxu0 0.0
        %3603 = vmatpush1.msra.mxu0 0.0
        %3604 = vmatprep.subr.mxu0 0.0
        %3605 = vmatpush1.msra.mxu0 0.0
        %3606 = vmatprep.subr.mxu0 0.0
        %3607 = vmatpush1.msra.mxu0 0.0
        %3608 = vmatprep.subr.mxu0 0.0
        %3609 = vmatpush1.msra.mxu0 0.0
        %3610 = vmatprep.subr.mxu0 0.0
        %3611 = vmatpush1.msra.mxu0 0.0
        %3612 = vmatprep.subr.mxu0 0.0
        %3613 = vmatpush1.msra.mxu0 0.0
        %3614 = vmatprep.subr.mxu0 0.0
        %3615 = vmatpush1.msra.mxu0 0.0
        %3616 = vmatprep.subr.mxu0 0.0
        %3617 = vmatpush1.msra.mxu0 0.0
        %3618 = vmatprep.subr.mxu0 0.0
        %3619 = vmatpush1.msra.mxu0 0.0
        %3620 = vmatprep.subr.mxu0 0.0
        %3621 = vmatpush1.msra.mxu0 0.0
        %3622 = vmatprep.subr.mxu0 0.0
        %3623 = vmatpush1.msra.mxu0 0.0
        %3624 = vmatprep.subr.mxu0 0.0
        %3625 = vmatpush1.msra.mxu0 0.0
        %3626 = vmatprep.subr.mxu0 0.0
        %3627 = vmatpush1.msra.mxu0 0.0
        %3628 = vmatprep.subr.mxu0 0.0
        %3629 = vmatpush1.msra.mxu0 0.0
        %3630 = vmatprep.subr.mxu0 0.0
        %3631 = vmatpush1.msra.mxu0 0.0
        %3632 = vmatprep.mubr.f32.mxu0 0.0
        %3633 = vmatmul.mubr.f32.gmra.mrb[0].mxu0 %v3566
        %v3634 = vpop.f32.mrb[0].mxu0
        %v3635 = vadd.f32 0.0, %v3634
        %v3636 = vpop.f32.mrb[0].mxu0
        %3637 = vdwg.mxu0
        %v3639 = vsel %vm1280, %v2670, 0
        %3641 = vmatprep.subr.mxu0 0.0
        %3642 = vmatpush1.msra.mxu0 %v1267
        %3643 = vmatprep.subr.mxu0 0.0
        %3644 = vmatpush1.msra.mxu0 0.0
        %3645 = vmatprep.subr.mxu0 0.0
        %3646 = vmatpush1.msra.mxu0 0.0
        %3647 = vmatprep.subr.mxu0 0.0
        %3648 = vmatpush1.msra.mxu0 0.0
        %3649 = vmatprep.subr.mxu0 0.0
        %3650 = vmatpush1.msra.mxu0 0.0
        %3651 = vmatprep.subr.mxu0 0.0
        %3652 = vmatpush1.msra.mxu0 0.0
        %3653 = vmatprep.subr.mxu0 0.0
        %3654 = vmatpush1.msra.mxu0 0.0
        %3655 = vmatprep.subr.mxu0 0.0
        %3656 = vmatpush1.msra.mxu0 0.0
        %3657 = vmatprep.subr.mxu0 0.0
        %3658 = vmatpush1.msra.mxu0 0.0
        %3659 = vmatprep.subr.mxu0 0.0
        %3660 = vmatpush1.msra.mxu0 0.0
        %3661 = vmatprep.subr.mxu0 0.0
        %3662 = vmatpush1.msra.mxu0 0.0
        %3663 = vmatprep.subr.mxu0 0.0
        %3664 = vmatpush1.msra.mxu0 0.0
        %3665 = vmatprep.subr.mxu0 0.0
        %3666 = vmatpush1.msra.mxu0 0.0
        %3667 = vmatprep.subr.mxu0 0.0
        %3668 = vmatpush1.msra.mxu0 0.0
        %3669 = vmatprep.subr.mxu0 0.0
        %3670 = vmatpush1.msra.mxu0 0.0
        %3671 = vmatprep.subr.mxu0 0.0
        %3672 = vmatpush1.msra.mxu0 0.0
        %3673 = vmatprep.subr.mxu0 0.0
        %3674 = vmatpush1.msra.mxu0 0.0
        %3675 = vmatprep.subr.mxu0 0.0
        %3676 = vmatpush1.msra.mxu0 0.0
        %3677 = vmatprep.subr.mxu0 0.0
        %3678 = vmatpush1.msra.mxu0 0.0
        %3679 = vmatprep.subr.mxu0 0.0
        %3680 = vmatpush1.msra.mxu0 0.0
        %3681 = vmatprep.subr.mxu0 0.0
        %3682 = vmatpush1.msra.mxu0 0.0
        %3683 = vmatprep.subr.mxu0 0.0
        %3684 = vmatpush1.msra.mxu0 0.0
        %3685 = vmatprep.subr.mxu0 0.0
        %3686 = vmatpush1.msra.mxu0 0.0
        %3687 = vmatprep.subr.mxu0 0.0
        %3688 = vmatpush1.msra.mxu0 0.0
        %3689 = vmatprep.subr.mxu0 0.0
        %3690 = vmatpush1.msra.mxu0 0.0
        %3691 = vmatprep.subr.mxu0 0.0
        %3692 = vmatpush1.msra.mxu0 0.0
        %3693 = vmatprep.subr.mxu0 0.0
        %3694 = vmatpush1.msra.mxu0 0.0
        %3695 = vmatprep.subr.mxu0 0.0
        %3696 = vmatpush1.msra.mxu0 0.0
        %3697 = vmatprep.subr.mxu0 0.0
        %3698 = vmatpush1.msra.mxu0 0.0
        %3699 = vmatprep.subr.mxu0 0.0
        %3700 = vmatpush1.msra.mxu0 0.0
        %3701 = vmatprep.subr.mxu0 0.0
        %3702 = vmatpush1.msra.mxu0 0.0
        %3703 = vmatprep.subr.mxu0 0.0
        %3704 = vmatpush1.msra.mxu0 0.0
        %3705 = vmatprep.mubr.f32.mxu0 0.0
        %3706 = vmatmul.mubr.f32.gmra.mrb[0].mxu0 %v3639
        %v3707 = vpop.f32.mrb[0].mxu0
        %v3708 = vadd.f32 0.0, %v3707
        %v3709 = vpop.f32.mrb[0].mxu0
        %3710 = vdwg.mxu0
        %v3712 = vsel %vm1280, %v2671, 0
        %3714 = vmatprep.subr.mxu0 0.0
        %3715 = vmatpush1.msra.mxu0 %v1272
        %3716 = vmatprep.subr.mxu0 0.0
        %3717 = vmatpush1.msra.mxu0 0.0
        %3718 = vmatprep.subr.mxu0 0.0
        %3719 = vmatpush1.msra.mxu0 0.0
        %3720 = vmatprep.subr.mxu0 0.0
        %3721 = vmatpush1.msra.mxu0 0.0
        %3722 = vmatprep.subr.mxu0 0.0
        %3723 = vmatpush1.msra.mxu0 0.0
        %3724 = vmatprep.subr.mxu0 0.0
        %3725 = vmatpush1.msra.mxu0 0.0
        %3726 = vmatprep.subr.mxu0 0.0
        %3727 = vmatpush1.msra.mxu0 0.0
        %3728 = vmatprep.subr.mxu0 0.0
        %3729 = vmatpush1.msra.mxu0 0.0
        %3730 = vmatprep.subr.mxu0 0.0
        %3731 = vmatpush1.msra.mxu0 0.0
        %3732 = vmatprep.subr.mxu0 0.0
        %3733 = vmatpush1.msra.mxu0 0.0
        %3734 = vmatprep.subr.mxu0 0.0
        %3735 = vmatpush1.msra.mxu0 0.0
        %3736 = vmatprep.subr.mxu0 0.0
        %3737 = vmatpush1.msra.mxu0 0.0
        %3738 = vmatprep.subr.mxu0 0.0
        %3739 = vmatpush1.msra.mxu0 0.0
        %3740 = vmatprep.subr.mxu0 0.0
        %3741 = vmatpush1.msra.mxu0 0.0
        %3742 = vmatprep.subr.mxu0 0.0
        %3743 = vmatpush1.msra.mxu0 0.0
        %3744 = vmatprep.subr.mxu0 0.0
        %3745 = vmatpush1.msra.mxu0 0.0
        %3746 = vmatprep.subr.mxu0 0.0
        %3747 = vmatpush1.msra.mxu0 0.0
        %3748 = vmatprep.subr.mxu0 0.0
        %3749 = vmatpush1.msra.mxu0 0.0
        %3750 = vmatprep.subr.mxu0 0.0
        %3751 = vmatpush1.msra.mxu0 0.0
        %3752 = vmatprep.subr.mxu0 0.0
        %3753 = vmatpush1.msra.mxu0 0.0
        %3754 = vmatprep.subr.mxu0 0.0
        %3755 = vmatpush1.msra.mxu0 0.0
        %3756 = vmatprep.subr.mxu0 0.0
        %3757 = vmatpush1.msra.mxu0 0.0
        %3758 = vmatprep.subr.mxu0 0.0
        %3759 = vmatpush1.msra.mxu0 0.0
        %3760 = vmatprep.subr.mxu0 0.0
        %3761 = vmatpush1.msra.mxu0 0.0
        %3762 = vmatprep.subr.mxu0 0.0
        %3763 = vmatpush1.msra.mxu0 0.0
        %3764 = vmatprep.subr.mxu0 0.0
        %3765 = vmatpush1.msra.mxu0 0.0
        %3766 = vmatprep.subr.mxu0 0.0
        %3767 = vmatpush1.msra.mxu0 0.0
        %3768 = vmatprep.subr.mxu0 0.0
        %3769 = vmatpush1.msra.mxu0 0.0
        %3770 = vmatprep.subr.mxu0 0.0
        %3771 = vmatpush1.msra.mxu0 0.0
        %3772 = vmatprep.subr.mxu0 0.0
        %3773 = vmatpush1.msra.mxu0 0.0
        %3774 = vmatprep.subr.mxu0 0.0
        %3775 = vmatpush1.msra.mxu0 0.0
        %3776 = vmatprep.subr.mxu0 0.0
        %3777 = vmatpush1.msra.mxu0 0.0
        %3778 = vmatprep.mubr.f32.mxu0 0.0
        %3779 = vmatmul.mubr.f32.gmra.mrb[0].mxu0 %v3712
        %v3780 = vpop.f32.mrb[0].mxu0
        %v3781 = vadd.f32 0.0, %v3780
        %v3782 = vpop.f32.mrb[0].mxu0
        %3783 = vdwg.mxu0
        %v3785 = vsel %vm1280, %v2672, 0
        %3787 = vmatprep.subr.mxu0 0.0
        %3788 = vmatpush1.msra.mxu0 %v1277
        %3789 = vmatprep.subr.mxu0 0.0
        %3790 = vmatpush1.msra.mxu0 0.0
        %3791 = vmatprep.subr.mxu0 0.0
        %3792 = vmatpush1.msra.mxu0 0.0
        %3793 = vmatprep.subr.mxu0 0.0
        %3794 = vmatpush1.msra.mxu0 0.0
        %3795 = vmatprep.subr.mxu0 0.0
        %3796 = vmatpush1.msra.mxu0 0.0
        %3797 = vmatprep.subr.mxu0 0.0
        %3798 = vmatpush1.msra.mxu0 0.0
        %3799 = vmatprep.subr.mxu0 0.0
        %3800 = vmatpush1.msra.mxu0 0.0
        %3801 = vmatprep.subr.mxu0 0.0
        %3802 = vmatpush1.msra.mxu0 0.0
        %3803 = vmatprep.subr.mxu0 0.0
        %3804 = vmatpush1.msra.mxu0 0.0
        %3805 = vmatprep.subr.mxu0 0.0
        %3806 = vmatpush1.msra.mxu0 0.0
        %3807 = vmatprep.subr.mxu0 0.0
        %3808 = vmatpush1.msra.mxu0 0.0
        %3809 = vmatprep.subr.mxu0 0.0
        %3810 = vmatpush1.msra.mxu0 0.0
        %3811 = vmatprep.subr.mxu0 0.0
        %3812 = vmatpush1.msra.mxu0 0.0
        %3813 = vmatprep.subr.mxu0 0.0
        %3814 = vmatpush1.msra.mxu0 0.0
        %3815 = vmatprep.subr.mxu0 0.0
        %3816 = vmatpush1.msra.mxu0 0.0
        %3817 = vmatprep.subr.mxu0 0.0
        %3818 = vmatpush1.msra.mxu0 0.0
        %3819 = vmatprep.subr.mxu0 0.0
        %3820 = vmatpush1.msra.mxu0 0.0
        %3821 = vmatprep.subr.mxu0 0.0
        %3822 = vmatpush1.msra.mxu0 0.0
        %3823 = vmatprep.subr.mxu0 0.0
        %3824 = vmatpush1.msra.mxu0 0.0
        %3825 = vmatprep.subr.mxu0 0.0
        %3826 = vmatpush1.msra.mxu0 0.0
        %3827 = vmatprep.subr.mxu0 0.0
        %3828 = vmatpush1.msra.mxu0 0.0
        %3829 = vmatprep.subr.mxu0 0.0
        %3830 = vmatpush1.msra.mxu0 0.0
        %3831 = vmatprep.subr.mxu0 0.0
        %3832 = vmatpush1.msra.mxu0 0.0
        %3833 = vmatprep.subr.mxu0 0.0
        %3834 = vmatpush1.msra.mxu0 0.0
        %3835 = vmatprep.subr.mxu0 0.0
        %3836 = vmatpush1.msra.mxu0 0.0
        %3837 = vmatprep.subr.mxu0 0.0
        %3838 = vmatpush1.msra.mxu0 0.0
        %3839 = vmatprep.subr.mxu0 0.0
        %3840 = vmatpush1.msra.mxu0 0.0
        %3841 = vmatprep.subr.mxu0 0.0
        %3842 = vmatpush1.msra.mxu0 0.0
        %3843 = vmatprep.subr.mxu0 0.0
        %3844 = vmatpush1.msra.mxu0 0.0
        %3845 = vmatprep.subr.mxu0 0.0
        %3846 = vmatpush1.msra.mxu0 0.0
        %3847 = vmatprep.subr.mxu0 0.0
        %3848 = vmatpush1.msra.mxu0 0.0
        %3849 = vmatprep.subr.mxu0 0.0
        %3850 = vmatpush1.msra.mxu0 0.0
        %3851 = vmatprep.mubr.f32.mxu0 0.0
        %3852 = vmatmul.mubr.f32.gmra.mrb[0].mxu0 %v3785
        %v3853 = vpop.f32.mrb[0].mxu0
        %v3854 = vadd.f32 0.0, %v3853
        %v3855 = vpop.f32.mrb[0].mxu0
        %3856 = vdwg.mxu0
        %v3858 = vsel %vm1280, %v2759, 0
        %v3861 = vsel %vm1280, %v2832, 0
        %v3864 = vsel %vm1280, %v2905, 0
        %v3867 = vsel %vm1280, %v2978, 0
        %v3870 = vsel %vm1280, %v3051, 0
        %v3873 = vsel %vm1280, %v3124, 0
        %v3876 = vsel %vm1280, %v3197, 0
        %v3879 = vsel %vm1280, %v3270, 0
        %v3882 = vsel %vm1280, %v3343, 0
        %v3885 = vsel %vm1280, %v3416, 0
        %v3888 = vsel %vm1280, %v3489, 0
        %v3891 = vsel %vm1280, %v3562, 0
        %v3894 = vsel %vm1280, %v3635, 0
        %v3897 = vsel %vm1280, %v3708, 0
        %v3900 = vsel %vm1280, %v3781, 0
        %v3903 = vsel %vm1280, %v3854, 0
        %3905 = vmatprep.subr.mxu0 0.0
        %3906 = vmatpush1.msra.mxu0 %v662
        %3907 = vmatprep.subr.mxu0 0.0
        %3908 = vmatpush1.msra.mxu0 0.0
        %3909 = vmatprep.subr.mxu0 0.0
        %3910 = vmatpush1.msra.mxu0 0.0
        %3911 = vmatprep.subr.mxu0 0.0
        %3912 = vmatpush1.msra.mxu0 0.0
        %3913 = vmatprep.subr.mxu0 0.0
        %3914 = vmatpush1.msra.mxu0 0.0
        %3915 = vmatprep.subr.mxu0 0.0
        %3916 = vmatpush1.msra.mxu0 0.0
        %3917 = vmatprep.subr.mxu0 0.0
        %3918 = vmatpush1.msra.mxu0 0.0
        %3919 = vmatprep.subr.mxu0 0.0
        %3920 = vmatpush1.msra.mxu0 0.0
        %3921 = vmatprep.subr.mxu0 0.0
        %3922 = vmatpush1.msra.mxu0 0.0
        %3923 = vmatprep.subr.mxu0 0.0
        %3924 = vmatpush1.msra.mxu0 0.0
        %3925 = vmatprep.subr.mxu0 0.0
        %3926 = vmatpush1.msra.mxu0 0.0
        %3927 = vmatprep.subr.mxu0 0.0
        %3928 = vmatpush1.msra.mxu0 0.0
        %3929 = vmatprep.subr.mxu0 0.0
        %3930 = vmatpush1.msra.mxu0 0.0
        %3931 = vmatprep.subr.mxu0 0.0
        %3932 = vmatpush1.msra.mxu0 0.0
        %3933 = vmatprep.subr.mxu0 0.0
        %3934 = vmatpush1.msra.mxu0 0.0
        %3935 = vmatprep.subr.mxu0 0.0
        %3936 = vmatpush1.msra.mxu0 0.0
        %3937 = vmatprep.subr.mxu0 0.0
        %3938 = vmatpush1.msra.mxu0 0.0
        %3939 = vmatprep.subr.mxu0 0.0
        %3940 = vmatpush1.msra.mxu0 0.0
        %3941 = vmatprep.subr.mxu0 0.0
        %3942 = vmatpush1.msra.mxu0 0.0
        %3943 = vmatprep.subr.mxu0 0.0
        %3944 = vmatpush1.msra.mxu0 0.0
        %3945 = vmatprep.subr.mxu0 0.0
        %3946 = vmatpush1.msra.mxu0 0.0
        %3947 = vmatprep.subr.mxu0 0.0
        %3948 = vmatpush1.msra.mxu0 0.0
        %3949 = vmatprep.subr.mxu0 0.0
        %3950 = vmatpush1.msra.mxu0 0.0
        %3951 = vmatprep.subr.mxu0 0.0
        %3952 = vmatpush1.msra.mxu0 0.0
        %3953 = vmatprep.subr.mxu0 0.0
        %3954 = vmatpush1.msra.mxu0 0.0
        %3955 = vmatprep.subr.mxu0 0.0
        %3956 = vmatpush1.msra.mxu0 0.0
        %3957 = vmatprep.subr.mxu0 0.0
        %3958 = vmatpush1.msra.mxu0 0.0
        %3959 = vmatprep.subr.mxu0 0.0
        %3960 = vmatpush1.msra.mxu0 0.0
        %3961 = vmatprep.subr.mxu0 0.0
        %3962 = vmatpush1.msra.mxu0 0.0
        %3963 = vmatprep.subr.mxu0 0.0
        %3964 = vmatpush1.msra.mxu0 0.0
        %3965 = vmatprep.subr.mxu0 0.0
        %3966 = vmatpush1.msra.mxu0 0.0
        %3967 = vmatprep.subr.mxu0 0.0
        %3968 = vmatpush1.msra.mxu0 0.0
        %3969 = vmatprep.mubr.f32.mxu0 0.0
        %3970 = vmatmul.mubr.f32.gmra.mrb[0].mxu0 %v3858
        %v3971 = vpop.f32.mrb[0].mxu0
        %v3972 = vadd.f32 0.0, %v3971
        %v3973 = vpop.f32.mrb[0].mxu0
        %3974 = vmatprep.mubr.f32.mxu0 0.0
        %3975 = vmatmul.mubr.f32.gmra.mrb[0].mxu0 %v3861
        %v3976 = vpop.f32.mrb[0].mxu0
        %v3977 = vadd.f32 0.0, %v3976
        %v3978 = vpop.f32.mrb[0].mxu0
        %3979 = vmatprep.mubr.f32.mxu0 0.0
        %3980 = vmatmul.mubr.f32.gmra.mrb[0].mxu0 %v3864
        %v3981 = vpop.f32.mrb[0].mxu0
        %v3982 = vadd.f32 0.0, %v3981
        %v3983 = vpop.f32.mrb[0].mxu0
        %3984 = vmatprep.mubr.f32.mxu0 0.0
        %3985 = vmatmul.mubr.f32.gmra.mrb[0].mxu0 %v3867
        %v3986 = vpop.f32.mrb[0].mxu0
        %v3987 = vadd.f32 0.0, %v3986
        %v3988 = vpop.f32.mrb[0].mxu0
        %3989 = vmatprep.mubr.f32.mxu0 0.0
        %3990 = vmatmul.mubr.f32.gmra.mrb[0].mxu0 %v3870
        %v3991 = vpop.f32.mrb[0].mxu0
        %v3992 = vadd.f32 0.0, %v3991
        %v3993 = vpop.f32.mrb[0].mxu0
        %3994 = vmatprep.mubr.f32.mxu0 0.0
        %3995 = vmatmul.mubr.f32.gmra.mrb[0].mxu0 %v3873
        %v3996 = vpop.f32.mrb[0].mxu0
        %v3997 = vadd.f32 0.0, %v3996
        %v3998 = vpop.f32.mrb[0].mxu0
        %3999 = vmatprep.mubr.f32.mxu0 0.0
        %4000 = vmatmul.mubr.f32.gmra.mrb[0].mxu0 %v3876
        %v4001 = vpop.f32.mrb[0].mxu0
        %v4002 = vadd.f32 0.0, %v4001
        %v4003 = vpop.f32.mrb[0].mxu0
        %4004 = vmatprep.mubr.f32.mxu0 0.0
        %4005 = vmatmul.mubr.f32.gmra.mrb[0].mxu0 %v3879
        %v4006 = vpop.f32.mrb[0].mxu0
        %v4007 = vadd.f32 0.0, %v4006
        %v4008 = vpop.f32.mrb[0].mxu0
        %4009 = vmatprep.mubr.f32.mxu0 0.0
        %4010 = vmatmul.mubr.f32.gmra.mrb[0].mxu0 %v3882
        %v4011 = vpop.f32.mrb[0].mxu0
        %v4012 = vadd.f32 0.0, %v4011
        %v4013 = vpop.f32.mrb[0].mxu0
        %4014 = vmatprep.mubr.f32.mxu0 0.0
        %4015 = vmatmul.mubr.f32.gmra.mrb[0].mxu0 %v3885
        %v4016 = vpop.f32.mrb[0].mxu0
        %v4017 = vadd.f32 0.0, %v4016
        %v4018 = vpop.f32.mrb[0].mxu0
        %4019 = vmatprep.mubr.f32.mxu0 0.0
        %4020 = vmatmul.mubr.f32.gmra.mrb[0].mxu0 %v3888
        %v4021 = vpop.f32.mrb[0].mxu0
        %v4022 = vadd.f32 0.0, %v4021
        %v4023 = vpop.f32.mrb[0].mxu0
        %4024 = vmatprep.mubr.f32.mxu0 0.0
        %4025 = vmatmul.mubr.f32.gmra.mrb[0].mxu0 %v3891
        %v4026 = vpop.f32.mrb[0].mxu0
        %v4027 = vadd.f32 0.0, %v4026
        %v4028 = vpop.f32.mrb[0].mxu0
        %4029 = vmatprep.mubr.f32.mxu0 0.0
        %4030 = vmatmul.mubr.f32.gmra.mrb[0].mxu0 %v3894
        %v4031 = vpop.f32.mrb[0].mxu0
        %v4032 = vadd.f32 0.0, %v4031
        %v4033 = vpop.f32.mrb[0].mxu0
        %4034 = vmatprep.mubr.f32.mxu0 0.0
        %4035 = vmatmul.mubr.f32.gmra.mrb[0].mxu0 %v3897
        %v4036 = vpop.f32.mrb[0].mxu0
        %v4037 = vadd.f32 0.0, %v4036
        %v4038 = vpop.f32.mrb[0].mxu0
        %4039 = vmatprep.mubr.f32.mxu0 0.0
        %4040 = vmatmul.mubr.f32.gmra.mrb[0].mxu0 %v3900
        %v4041 = vpop.f32.mrb[0].mxu0
        %v4042 = vadd.f32 0.0, %v4041
        %v4043 = vpop.f32.mrb[0].mxu0
        %4044 = vmatprep.mubr.f32.mxu0 0.0
        %4045 = vmatmul.mubr.f32.gmra.mrb[0].mxu0 %v3903
        %v4046 = vpop.f32.mrb[0].mxu0
        %v4047 = vadd.f32 0.0, %v4046
        %v4048 = vpop.f32.mrb[0].mxu0
        %4049 = vdwg.mxu0
        %p4050 = scmp.eq.s32.totalorder %s29, 0
        // Predicated region
        $region65: #{tpu_custom_call.1} parent=63 // pred_check
          %p4051 = pneg %p4050
        $region66: #{tpu_custom_call.1} parent=63 // pred_check_branch
          %4053 = sbr.rel (%p4051) target = $region68
        $region67: #{tpu_custom_call.1} parent=63 // pred_region
          %v4054 = vld [vmem:[%s10] sm:$0x1]
          %v4056 = vlaneseq
          %v4057 = vshrl.u32 %v4056, 7
          %v4058 = vsub.s32 0, %v4057
          %v4059 = vrot.slane %v4054, %v4058
          %v4061 = vadd.f32 %v3972, %v4059
          %v4062 = vadd.f32 %v3977, %v4059
          %v4063 = vadd.f32 %v3982, %v4059
          %v4064 = vadd.f32 %v3987, %v4059
          %v4065 = vadd.f32 %v3992, %v4059
          %v4066 = vadd.f32 %v3997, %v4059
          %v4067 = vadd.f32 %v4002, %v4059
          %v4068 = vadd.f32 %v4007, %v4059
          %v4069 = vadd.f32 %v4012, %v4059
          %v4070 = vadd.f32 %v4017, %v4059
          %v4071 = vadd.f32 %v4022, %v4059
          %v4072 = vadd.f32 %v4027, %v4059
          %v4073 = vadd.f32 %v4032, %v4059
          %v4074 = vadd.f32 %v4037, %v4059
          %v4075 = vadd.f32 %v4042, %v4059
          %v4076 = vadd.f32 %v4047, %v4059
          %4077 = vst.msk [vmem:[%s599] sm:$0xff] %vm670, %v4061
          %4078 = vst.msk [vmem:[%s599 + $0x8] sm:$0xff] %vm670, %v4062
          %4079 = vst.msk [vmem:[%s599 + $0x10] sm:$0xff] %vm670, %v4063
          %4080 = vst.msk [vmem:[%s599 + $0x18] sm:$0xff] %vm670, %v4064
          %4081 = vst.msk [vmem:[%s599 + $0x20] sm:$0xff] %vm670, %v4065
          %4082 = vst.msk [vmem:[%s599 + $0x28] sm:$0xff] %vm670, %v4066
          %4083 = vst.msk [vmem:[%s599 + $0x30] sm:$0xff] %vm670, %v4067
          %4084 = vst.msk [vmem:[%s599 + $0x38] sm:$0xff] %vm670, %v4068
          %4085 = vst.msk [vmem:[%s599 + $0x40] sm:$0xff] %vm670, %v4069
          %4086 = vst.msk [vmem:[%s599 + $0x48] sm:$0xff] %vm670, %v4070
          %4087 = vst.msk [vmem:[%s599 + $0x50] sm:$0xff] %vm670, %v4071
          %4088 = vst.msk [vmem:[%s599 + $0x58] sm:$0xff] %vm670, %v4072
          %4089 = vst.msk [vmem:[%s599 + $0x60] sm:$0xff] %vm670, %v4073
          %4090 = vst.msk [vmem:[%s599 + $0x68] sm:$0xff] %vm670, %v4074
          %4091 = vst.msk [vmem:[%s599 + $0x70] sm:$0xff] %vm670, %v4075
          %4092 = vst.msk [vmem:[%s599 + $0x78] sm:$0xff] %vm670, %v4076
        $region68: #{tpu_custom_call.1} parent=63 // pred_fallthru
          _
        %p4093 = scmp.ne.s32.totalorder %s29, 0
        // Predicated region
        $region69: #{tpu_custom_call.1} parent=63 // pred_check
          %p4094 = pneg %p4093
        $region70: #{tpu_custom_call.1} parent=63 // pred_check_branch
          %4096 = sbr.rel (%p4094) target = $region72
        $region71: #{tpu_custom_call.1} parent=63 // pred_region
          %v4097 = vld [vmem:[%s599] sm:$0xff]
          %v4098 = vld [vmem:[%s599 + $0x8] sm:$0xff]
          %v4099 = vld [vmem:[%s599 + $0x10] sm:$0xff]
          %v4100 = vld [vmem:[%s599 + $0x18] sm:$0xff]
          %v4101 = vld [vmem:[%s599 + $0x20] sm:$0xff]
          %v4102 = vld [vmem:[%s599 + $0x28] sm:$0xff]
          %v4103 = vld [vmem:[%s599 + $0x30] sm:$0xff]
          %v4104 = vld [vmem:[%s599 + $0x38] sm:$0xff]
          %v4105 = vld [vmem:[%s599 + $0x40] sm:$0xff]
          %v4106 = vld [vmem:[%s599 + $0x48] sm:$0xff]
          %v4107 = vld [vmem:[%s599 + $0x50] sm:$0xff]
          %v4108 = vld [vmem:[%s599 + $0x58] sm:$0xff]
          %v4109 = vld [vmem:[%s599 + $0x60] sm:$0xff]
          %v4110 = vld [vmem:[%s599 + $0x68] sm:$0xff]
          %v4111 = vld [vmem:[%s599 + $0x70] sm:$0xff]
          %v4112 = vld [vmem:[%s599 + $0x78] sm:$0xff]
          %v4113 = vadd.f32 %v4097, %v3972
          %v4114 = vadd.f32 %v4098, %v3977
          %v4115 = vadd.f32 %v4099, %v3982
          %v4116 = vadd.f32 %v4100, %v3987
          %v4117 = vadd.f32 %v4101, %v3992
          %v4118 = vadd.f32 %v4102, %v3997
          %v4119 = vadd.f32 %v4103, %v4002
          %v4120 = vadd.f32 %v4104, %v4007
          %v4121 = vadd.f32 %v4105, %v4012
          %v4122 = vadd.f32 %v4106, %v4017
          %v4123 = vadd.f32 %v4107, %v4022
          %v4124 = vadd.f32 %v4108, %v4027
          %v4125 = vadd.f32 %v4109, %v4032
          %v4126 = vadd.f32 %v4110, %v4037
          %v4127 = vadd.f32 %v4111, %v4042
          %v4128 = vadd.f32 %v4112, %v4047
          %4129 = vst.msk [vmem:[%s599] sm:$0xff] %vm670, %v4113
          %4130 = vst.msk [vmem:[%s599 + $0x8] sm:$0xff] %vm670, %v4114
          %4131 = vst.msk [vmem:[%s599 + $0x10] sm:$0xff] %vm670, %v4115
          %4132 = vst.msk [vmem:[%s599 + $0x18] sm:$0xff] %vm670, %v4116
          %4133 = vst.msk [vmem:[%s599 + $0x20] sm:$0xff] %vm670, %v4117
          %4134 = vst.msk [vmem:[%s599 + $0x28] sm:$0xff] %vm670, %v4118
          %4135 = vst.msk [vmem:[%s599 + $0x30] sm:$0xff] %vm670, %v4119
          %4136 = vst.msk [vmem:[%s599 + $0x38] sm:$0xff] %vm670, %v4120
          %4137 = vst.msk [vmem:[%s599 + $0x40] sm:$0xff] %vm670, %v4121
          %4138 = vst.msk [vmem:[%s599 + $0x48] sm:$0xff] %vm670, %v4122
          %4139 = vst.msk [vmem:[%s599 + $0x50] sm:$0xff] %vm670, %v4123
          %4140 = vst.msk [vmem:[%s599 + $0x58] sm:$0xff] %vm670, %v4124
          %4141 = vst.msk [vmem:[%s599 + $0x60] sm:$0xff] %vm670, %v4125
          %4142 = vst.msk [vmem:[%s599 + $0x68] sm:$0xff] %vm670, %v4126
          %4143 = vst.msk [vmem:[%s599 + $0x70] sm:$0xff] %vm670, %v4127
          %4144 = vst.msk [vmem:[%s599 + $0x78] sm:$0xff] %vm670, %v4128
        $region72: #{tpu_custom_call.1} parent=63 // pred_fallthru
          _
        %s4145 = smul.u32 16, %s28
        %p4146 = scmp.lt.s32.totalorder %s4145, 15
        %s4147 = scalar_select %p4146, %s4145, 15
        %s4148 = smul.addr %s4147, 8
        %s4149 = scalar_lea.vmem %s11, %s4148
        %s4150 = sand.u32 %s353, 1
        %s4151 = sand.u32 %s353, 1
        %s4152 = smul.addr %s4151, 128
        %s4153 = scalar_lea.vmem [#allocation2], %s4152
        // Predicated region
        $region73: #{tpu_custom_call.1} parent=63 // pred_check
          %p4154 = pneg %p335
        $region74: #{tpu_custom_call.1} parent=63 // pred_check_branch
          %4156 = sbr.rel (%p4154) target = $region76
        $region75: #{tpu_custom_call.1} parent=63 // pred_region
          %s4157 = smul.u32 16, %s28
        $region76: #{tpu_custom_call.1} parent=63 // pred_fallthru
          _
        // Predicated region
        $region77: #{tpu_custom_call.1} parent=63 // pred_check
          %p4158 = pneg %p363
        $region78: #{tpu_custom_call.1} parent=63 // pred_check_branch
          %4160 = sbr.rel (%p4158) target = $region80
        $region79: #{tpu_custom_call.1} parent=63 // pred_region
          %s4161 = smul.u32 16, %s28
          %s4162 = smul.addr %s4161, 4
          %s4163 = sadd.s32 %s29, %s4162
          %s4164 = smul.addr %s4163, 8
          %s4165 = scalar_lea.vmem %s12, %s4164
          // Predicated region
          $region81: #{tpu_custom_call.1} parent=79 // pred_check
            _
          $region82: #{tpu_custom_call.1} parent=79 // pred_check_branch
            %4167 = sbr.rel (0) target = $region84
          $region83: #{tpu_custom_call.1} parent=79 // pred_region
            // Predicated region
            $region85: #{tpu_custom_call.1} parent=83 // pred_check
              _
            $region86: #{tpu_custom_call.1} parent=83 // pred_check_branch
              %4169 = sbr.rel (0) target = $region88
            $region87: #{tpu_custom_call.1} parent=83 // pred_region
              // Predicated region
              $region100: #{tpu_custom_call.1} parent=87 // pred_check
                _
              $region101: #{tpu_custom_call.1} parent=87 // pred_check_branch
                %4214 = sbr.rel (0) target = $region103
              $region102: #{tpu_custom_call.1} parent=87 // pred_region
                loop: start=0, step=1, limit=1
                $region104: #{tpu_custom_call.1} parent=102 // loop_pre_header
                  _
                $region105: #{tpu_custom_call.1} parent=102 // loop_header
                  %s4216 = sphi 0, %s4220
                  %p4217 = scmp.ge.s32.totalorder %s4216, 1
                  %s4221 = sphi %s4153, %s4153
                  %s4222 = sphi %s4165, %s4165
                $region106: #{tpu_custom_call.1} parent=102 // loop_header_branch
                  %4219 = sbr.rel (%p4217) target = $region110
                $region107: #{tpu_custom_call.1} parent=102 // loop_body
                  %v4223 = vld [vmem:[%s4221] sm:$0xff]
                  %4224 = vst [vmem:[%s4222] sm:$0xff] %v4223
                  %v4225 = vld [vmem:[%s4221 + $0x8] sm:$0xff]
                  %4226 = vst [vmem:[%s4222 + $0x20] sm:$0xff] %v4225
                  %v4227 = vld [vmem:[%s4221 + $0x10] sm:$0xff]
                  %4228 = vst [vmem:[%s4222 + $0x40] sm:$0xff] %v4227
                  %v4229 = vld [vmem:[%s4221 + $0x18] sm:$0xff]
                  %4230 = vst [vmem:[%s4222 + $0x60] sm:$0xff] %v4229
                  %v4231 = vld [vmem:[%s4221 + $0x20] sm:$0xff]
                  %4232 = vst [vmem:[%s4222 + $0x80] sm:$0xff] %v4231
                  %v4233 = vld [vmem:[%s4221 + $0x28] sm:$0xff]
                  %4234 = vst [vmem:[%s4222 + $0xa0] sm:$0xff] %v4233
                  %v4235 = vld [vmem:[%s4221 + $0x30] sm:$0xff]
                  %4236 = vst [vmem:[%s4222 + $0xc0] sm:$0xff] %v4235
                  %v4237 = vld [vmem:[%s4221 + $0x38] sm:$0xff]
                  %4238 = vst [vmem:[%s4222 + $0xe0] sm:$0xff] %v4237
                  %v4239 = vld [vmem:[%s4221 + $0x40] sm:$0xff]
                  %4240 = vst [vmem:[%s4222 + $0x100] sm:$0xff] %v4239
                  %v4241 = vld [vmem:[%s4221 + $0x48] sm:$0xff]
                  %4242 = vst [vmem:[%s4222 + $0x120] sm:$0xff] %v4241
                  %v4243 = vld [vmem:[%s4221 + $0x50] sm:$0xff]
                  %4244 = vst [vmem:[%s4222 + $0x140] sm:$0xff] %v4243
                  %v4245 = vld [vmem:[%s4221 + $0x58] sm:$0xff]
                  %4246 = vst [vmem:[%s4222 + $0x160] sm:$0xff] %v4245
                  %v4247 = vld [vmem:[%s4221 + $0x60] sm:$0xff]
                  %4248 = vst [vmem:[%s4222 + $0x180] sm:$0xff] %v4247
                  %v4249 = vld [vmem:[%s4221 + $0x68] sm:$0xff]
                  %4250 = vst [vmem:[%s4222 + $0x1a0] sm:$0xff] %v4249
                  %v4251 = vld [vmem:[%s4221 + $0x70] sm:$0xff]
                  %4252 = vst [vmem:[%s4222 + $0x1c0] sm:$0xff] %v4251
                  %v4253 = vld [vmem:[%s4221 + $0x78] sm:$0xff]
                  %4254 = vst [vmem:[%s4222 + $0x1e0] sm:$0xff] %v4253
                $region108: #{tpu_custom_call.1} parent=102 // loop_footer
                  %s4220 = sadd.s32 1, %s4216
                $region109: #{tpu_custom_call.1} parent=102 // loop_footer_branch
                  %4215 = sbr.rel target = $region105
                $region110: #{tpu_custom_call.1} parent=102 // loop_exit
                  _
              $region103: #{tpu_custom_call.1} parent=87 // pred_fallthru
                _
              // Predicated region
              $region111: #{tpu_custom_call.1} parent=87 // pred_check
                _
              $region112: #{tpu_custom_call.1} parent=87 // pred_check_branch
                %4256 = sbr.rel target = $region114
              $region113: #{tpu_custom_call.1} parent=87 // pred_region
                _
              $region114: #{tpu_custom_call.1} parent=87 // pred_fallthru
                _
            $region88: #{tpu_custom_call.1} parent=83 // pred_fallthru
              _
            // Predicated region
            $region89: #{tpu_custom_call.1} parent=83 // pred_check
              _
            $region90: #{tpu_custom_call.1} parent=83 // pred_check_branch
              %4171 = sbr.rel target = $region92
            $region91: #{tpu_custom_call.1} parent=83 // pred_region
              loop: start=0, step=1, limit=1
              $region93: #{tpu_custom_call.1} parent=91 // loop_pre_header
                _
              $region94: #{tpu_custom_call.1} parent=91 // loop_header
                %s4174 = sphi 0, %s4178
                %p4175 = scmp.ge.s32.totalorder %s4174, 1
                %s4179 = sphi %s4153, %s4153
                %s4180 = sphi %s4165, %s4165
              $region95: #{tpu_custom_call.1} parent=91 // loop_header_branch
                %4177 = sbr.rel (%p4175) target = $region99
              $region96: #{tpu_custom_call.1} parent=91 // loop_body
                %v4181 = vld [vmem:[%s4179] sm:$0xff]
                %4182 = vst [vmem:[%s4180] sm:$0xff] %v4181
                %v4183 = vld [vmem:[%s4179 + $0x8] sm:$0xff]
                %4184 = vst [vmem:[%s4180 + $0x20] sm:$0xff] %v4183
                %v4185 = vld [vmem:[%s4179 + $0x10] sm:$0xff]
                %4186 = vst [vmem:[%s4180 + $0x40] sm:$0xff] %v4185
                %v4187 = vld [vmem:[%s4179 + $0x18] sm:$0xff]
                %4188 = vst [vmem:[%s4180 + $0x60] sm:$0xff] %v4187
                %v4189 = vld [vmem:[%s4179 + $0x20] sm:$0xff]
                %4190 = vst [vmem:[%s4180 + $0x80] sm:$0xff] %v4189
                %v4191 = vld [vmem:[%s4179 + $0x28] sm:$0xff]
                %4192 = vst [vmem:[%s4180 + $0xa0] sm:$0xff] %v4191
                %v4193 = vld [vmem:[%s4179 + $0x30] sm:$0xff]
                %4194 = vst [vmem:[%s4180 + $0xc0] sm:$0xff] %v4193
                %v4195 = vld [vmem:[%s4179 + $0x38] sm:$0xff]
                %4196 = vst [vmem:[%s4180 + $0xe0] sm:$0xff] %v4195
                %v4197 = vld [vmem:[%s4179 + $0x40] sm:$0xff]
                %4198 = vst [vmem:[%s4180 + $0x100] sm:$0xff] %v4197
                %v4199 = vld [vmem:[%s4179 + $0x48] sm:$0xff]
                %4200 = vst [vmem:[%s4180 + $0x120] sm:$0xff] %v4199
                %v4201 = vld [vmem:[%s4179 + $0x50] sm:$0xff]
                %4202 = vst [vmem:[%s4180 + $0x140] sm:$0xff] %v4201
                %v4203 = vld [vmem:[%s4179 + $0x58] sm:$0xff]
                %4204 = vst [vmem:[%s4180 + $0x160] sm:$0xff] %v4203
                %v4205 = vld [vmem:[%s4179 + $0x60] sm:$0xff]
                %4206 = vst [vmem:[%s4180 + $0x180] sm:$0xff] %v4205
                %v4207 = vld [vmem:[%s4179 + $0x68] sm:$0xff]
                %4208 = vst [vmem:[%s4180 + $0x1a0] sm:$0xff] %v4207
                %v4209 = vld [vmem:[%s4179 + $0x70] sm:$0xff]
                %4210 = vst [vmem:[%s4180 + $0x1c0] sm:$0xff] %v4209
                %v4211 = vld [vmem:[%s4179 + $0x78] sm:$0xff]
                %4212 = vst [vmem:[%s4180 + $0x1e0] sm:$0xff] %v4211
              $region97: #{tpu_custom_call.1} parent=91 // loop_footer
                %s4178 = sadd.s32 1, %s4174
              $region98: #{tpu_custom_call.1} parent=91 // loop_footer_branch
                %4173 = sbr.rel target = $region94
              $region99: #{tpu_custom_call.1} parent=91 // loop_exit
                _
            $region92: #{tpu_custom_call.1} parent=83 // pred_fallthru
              _
          $region84: #{tpu_custom_call.1} parent=79 // pred_fallthru
            _
          %4257 = vnop
        $region80: #{tpu_custom_call.1} parent=63 // pred_fallthru
          _
        // Predicated region
        $region115: #{tpu_custom_call.1} parent=63 // pred_check
          %p4258 = pneg %p335
        $region116: #{tpu_custom_call.1} parent=63 // pred_check_branch
          %4260 = sbr.rel (%p4258) target = $region118
        $region117: #{tpu_custom_call.1} parent=63 // pred_region
          %s4261 = smul.u32 16, %s28
          %p4262 = scmp.lt.s32.totalorder %s4261, 15
          %s4263 = scalar_select %p4262, %s4261, 15
          %s4264 = smul.addr %s4263, 8
          %s4265 = scalar_lea.vmem %s11, %s4264
        $region118: #{tpu_custom_call.1} parent=63 // pred_fallthru
          _
      $region64: #{tpu_custom_call.1} parent=5 // pred_fallthru
        _
      %p4266 = scmp.le.s32.totalorder 2, %s19
      // Predicated region
      $region119: #{tpu_custom_call.1} parent=5 // pred_check
        %p4267 = pneg %p4266
      $region120: #{tpu_custom_call.1} parent=5 // pred_check_branch
        %4269 = sbr.rel (%p4267) target = $region122
      $region121: #{tpu_custom_call.1} parent=5 // pred_region
        %s4270 = ssub.s32 %s19, 2
        // Predicated region
        $region123: #{tpu_custom_call.1} parent=121 // pred_check
          %p4271 = pneg %p369
        $region124: #{tpu_custom_call.1} parent=121 // pred_check_branch
          %4273 = sbr.rel (%p4271) target = $region126
        $region125: #{tpu_custom_call.1} parent=121 // pred_region
          %s4274 = sand.u32 %s354, 1
          %s4275 = sand.u32 %s354, 1
          %s4276 = smul.addr %s4275, 128
          %s4277 = scalar_lea.vmem [#allocation2], %s4276
        $region126: #{tpu_custom_call.1} parent=121 // pred_fallthru
          _
      $region122: #{tpu_custom_call.1} parent=5 // pred_fallthru
        _
    $region6: #{tpu_custom_call.1} parent=1 // loop_footer
      %s23 = sadd.s32 1, %s19
    $region7: #{tpu_custom_call.1} parent=1 // loop_footer_branch
      %18 = sbr.rel target = $region3
    $region8: #{tpu_custom_call.1} parent=1 // loop_exit
      _

</llo_original>
